<compile_context>
chip_gen: v7x
topology: tpu7x:2x2x1
jax: 0.10.0
libtpu: 0.0.40
codegen_flags: <defaults>
</compile_context>

<pallas_src>
import functools

import jax
import jax.numpy as jnp
from jax.experimental import pallas as pl
from jax.experimental.pallas import tpu as pltpu


def _encoder_layer_kernel(x_ref, ln1_g_ref, ln1_b_ref, wqkv_ref, wo_ref,
                          ln2_g_ref, ln2_b_ref, w1_ref, b1_ref, w2_ref, b2_ref,
                          o_ref, ctx_ref, *, n_heads, head_dim, seq_len,
                          batch_block, eps, mxu_dtype):
    H, D, L, Bb = n_heads, head_dim, seq_len, batch_block
    HD = H * D
    x = x_ref[...]                                   # (Bb*L, dim) f32

    def mm(a):                                       # cast MXU operands only
        return a.astype(mxu_dtype)

    def layer_norm(v, gamma2d, beta2d):              # all-f32 elementwise (v5e-safe)
        mu = jnp.mean(v, axis=-1, keepdims=True)
        c = v - mu
        var = jnp.mean(c * c, axis=-1, keepdims=True)
        inv = jax.lax.rsqrt(var + eps)               # EUP, no divide
        return c * inv * gamma2d + beta2d

    # ---------------- norm1 ----------------
    xn = layer_norm(x, ln1_g_ref[...], ln1_b_ref[...])            # (Bb*L, dim)

    # ---------------- fused QKV: single lane-dense, dim-deep matmul ----------
    qkv = jnp.dot(mm(xn), wqkv_ref[...],
                  preferred_element_type=jnp.float32)             # (Bb*L, 3*HD)

    # Additive diagonal mask (self-attention on own position forbidden).
    # Built once from (L, L) iotas; broadcasts over the batch dim.
    # NOTE: -1e30 (finite) -> exp underflows to exactly 0 for L > 1; for the
    # degenerate L == 1 case it yields uniform attention instead of NaN.
    row = jax.lax.broadcasted_iota(jnp.int32, (L, L), 0)
    col = jax.lax.broadcasted_iota(jnp.int32, (L, L), 1)
    diag_neg = jnp.where(row == col, -1e30, 0.0).astype(jnp.float32)[None]  # (1,L,L)

    # ---------------- per-head attention (working set (Bb, L, L)) ------------
    for h in range(H):                               # static, small head loop
        q_h = qkv[:, h * D:(h + 1) * D].reshape(Bb, L, D)          # scale in Wq
        k_h = qkv[:, HD + h * D:HD + (h + 1) * D].reshape(Bb, L, D)
        v_h = qkv[:, 2 * HD + h * D:2 * HD + (h + 1) * D].reshape(Bb, L, D)

        s = jnp.einsum('bld,bsd->bls', mm(q_h), mm(k_h),
                       preferred_element_type=jnp.float32) + diag_neg  # (Bb,L,L)
        m = jnp.max(s, axis=-1, keepdims=True)
        e = jnp.exp(s - m)                                         # f32 softmax math
        p = e * pl.reciprocal(jnp.sum(e, axis=-1, keepdims=True), approx=True)

        ctx_h = jnp.einsum('bls,bsd->bld', mm(p), mm(v_h),
                           preferred_element_type=jnp.float32)     # (Bb, L, D)
        # Assemble per-head context into lane slice h*D of the (Bb*L, HD) scratch.
        ctx_ref[:, h * D:(h + 1) * D] = ctx_h.reshape(Bb * L, D)

    # Single HD-deep output projection (== concat-heads @ Wo^T).
    attn_out = jnp.dot(mm(ctx_ref[...]), wo_ref[...],
                       preferred_element_type=jnp.float32)         # (Bb*L, dim)

    x2 = xn + attn_out
    # ---------------- norm2 ----------------
    x3 = layer_norm(x2, ln2_g_ref[...], ln2_b_ref[...])

    # ---------------- position-wise FFN ----------------
    hdn = jnp.dot(mm(x3), w1_ref[...],
                  preferred_element_type=jnp.float32) + b1_ref[...]   # (Bb*L, hidden)
    # tanh-approx GELU (EUP tanh); see TODO about exact erf GELU.
    hdn = 0.5 * hdn * (1.0 + jnp.tanh(
        0.7978845608028654 * (hdn + 0.044715 * hdn * hdn * hdn)))
    f = jnp.dot(mm(hdn), w2_ref[...],
                preferred_element_type=jnp.float32) + b2_ref[...]     # (Bb*L, dim)

    o_ref[...] = (x3 + f).astype(o_ref.dtype)


def encoder_layer(x, params, *, n_heads, head_dim, eps=1e-5,
                  mxu_dtype=jnp.bfloat16, block_batch=None):
    """Fused NILMFormer EncoderLayer forward (eval mode).

    params (all 'pre-transposed' so y = x @ W_t):
      ln1_g, ln1_b, ln2_g, ln2_b : (dim,)
      wq_t, wk_t, wv_t           : (dim, H*D)
      wo_t                       : (H*D, dim)
      w1_t : (dim, hidden), b1 : (hidden,), w2_t : (hidden, dim), b2 : (dim,)

    mxu_dtype=bfloat16 is the recommended default on v5e/v6e/v7x (bf16 MXU
    operands, f32 accumulation + f32 LayerNorm/softmax/GELU math).
    """
    B, L, dim = x.shape
    H, D = n_heads, head_dim
    HD = H * D
    hidden = params['w1_t'].shape[1]
    scale = 1.0 / (D ** 0.5)

    if block_batch is None:
        bb = max(1, min(B, 512 // max(L, 1)))     # ~512 rows per grid step target
        bb = min(bb, max(1, B // 2))              # keep >=2 grid steps when possible
        while B % bb:
            bb -= 1
        block_batch = bb
    Bb = block_batch
    assert B % Bb == 0, "block_batch must divide the batch size"

    # Packed lane-dense weight layouts (no head-minor D padding); fold 1/sqrt(D)
    # into Wq wrapper-side (runs once under XLA, free).
    wqkv = jnp.concatenate([params['wq_t'] * scale, params['wk_t'],
                            params['wv_t']], axis=1).astype(mxu_dtype)  # (dim, 3*HD)
    wo = params['wo_t'].astype(mxu_dtype)                               # (HD, dim)
    w1 = params['w1_t'].astype(mxu_dtype)                               # (dim, hidden)
    w2 = params['w2_t'].astype(mxu_dtype)                               # (hidden, dim)
    ln1_g = params['ln1_g'].reshape(1, dim).astype(jnp.float32)
    ln1_b = params['ln1_b'].reshape(1, dim).astype(jnp.float32)
    ln2_g = params['ln2_g'].reshape(1, dim).astype(jnp.float32)
    ln2_b = params['ln2_b'].reshape(1, dim).astype(jnp.float32)
    b1 = params['b1'].reshape(1, hidden).astype(jnp.float32)
    b2 = params['b2'].reshape(1, dim).astype(jnp.float32)

    x2d = x.reshape(B * L, dim)          # flattened rows -> 2D lane-dense slabs

    kernel = functools.partial(_encoder_layer_kernel, n_heads=H, head_dim=D,
                               seq_len=L, batch_block=Bb, eps=eps,
                               mxu_dtype=mxu_dtype)

    def run(single_buffer_weights):
        def wspec(shape):
            # Resident weights (constant index_map): single-buffer to halve
            # their VMEM footprint when supported.
            if single_buffer_weights:
                return pl.BlockSpec(shape, lambda i: (0, 0),
                                    pipeline_mode=pl.Buffered(1))
            return pl.BlockSpec(shape, lambda i: (0, 0))

        return pl.pallas_call(
            kernel,
            out_shape=jax.ShapeDtypeStruct((B * L, dim), x.dtype),
            grid_spec=pltpu.PrefetchScalarGridSpec(
                num_scalar_prefetch=0,
                grid=(B // Bb,),
                in_specs=[
                    pl.BlockSpec((Bb * L, dim), lambda i: (i, 0)),   # x rows
                    pl.BlockSpec((1, dim), lambda i: (0, 0)),        # ln1 gamma
                    pl.BlockSpec((1, dim), lambda i: (0, 0)),        # ln1 beta
                    wspec((dim, 3 * HD)),                            # fused Wqkv
                    wspec((HD, dim)),                                # Wo
                    pl.BlockSpec((1, dim), lambda i: (0, 0)),        # ln2 gamma
                    pl.BlockSpec((1, dim), lambda i: (0, 0)),        # ln2 beta
                    wspec((dim, hidden)),                            # W1^T
                    pl.BlockSpec((1, hidden), lambda i: (0, 0)),     # b1
                    wspec((hidden, dim)),                            # W2^T
                    pl.BlockSpec((1, dim), lambda i: (0, 0)),        # b2
                ],
                out_specs=pl.BlockSpec((Bb * L, dim), lambda i: (i, 0)),
                scratch_shapes=[pltpu.VMEM((Bb * L, HD), jnp.float32)],  # ctx
            ),
            compiler_params=pltpu.CompilerParams(
                dimension_semantics=("parallel",),       # row blocks independent
                vmem_limit_bytes=64 * 1024 * 1024),
        )(x2d, ln1_g, ln1_b, wqkv, wo, ln2_g, ln2_b, w1, b1, w2, b2)

    try:
        out2d = run(single_buffer_weights=True)
    except Exception:
        # Fallback for JAX builds without BlockSpec.pipeline_mode support.
        out2d = run(single_buffer_weights=False)
    return out2d.reshape(B, L, dim)


def _reference(x, p, n_heads, head_dim, eps):
    """Pure-JAX mirror of the PyTorch EncoderLayer.forward (eval mode)."""
    B, L, dim = x.shape
    H, D = n_heads, head_dim

    def ln(v, g, b):
        mu = v.mean(-1, keepdims=True)
        var = ((v - mu) ** 2).mean(-1, keepdims=True)
        return (v - mu) / jnp.sqrt(var + eps) * g + b

    xn = ln(x, p['ln1_g'], p['ln1_b'])
    q = (xn @ p['wq_t']).reshape(B, L, H, D)
    k = (xn @ p['wk_t']).reshape(B, L, H, D)
    v = (xn @ p['wv_t']).reshape(B, L, H, D)
    scale = 1.0 / (D ** 0.5)
    scores = jnp.einsum('blhe,bshe->bhls', q, k)
    diag = jnp.eye(L, dtype=bool)[None, None]
    attn = jax.nn.softmax(jnp.where(diag, -jnp.inf, scale * scores), axis=-1)
    a = jnp.einsum('bhls,bshd->blhd', attn, v).reshape(B, L, H * D) @ p['wo_t']
    x2 = xn + a
    x3 = ln(x2, p['ln2_g'], p['ln2_b'])
    h = jax.nn.gelu(x3 @ p['w1_t'] + p['b1'], approximate=True)
    f = h @ p['w2_t'] + p['b2']
    return x3 + f


if __name__ == "__main__":
    B, L, dim = 4, 8, 32          # batch, seqlen, d_model
    n_heads, head_dim = 4, 8      # head_dim = d_model // n_head
    hidden = 4 * dim              # pffn_ratio = 4
    eps = 1e-5
    hd = n_heads * head_dim

    key = jax.random.PRNGKey(0)
    ks = jax.random.split(key, 12)
    x = jax.random.normal(ks[0], (B, L, dim), dtype=jnp.float32)
    p = dict(
        ln1_g=1.0 + 0.1 * jax.random.normal(ks[1], (dim,), jnp.float32),
        ln1_b=0.1 * jax.random.normal(ks[2], (dim,), jnp.float32),
        wq_t=0.1 * jax.random.normal(ks[3], (dim, hd), jnp.float32),
        wk_t=0.1 * jax.random.normal(ks[4], (dim, hd), jnp.float32),
        wv_t=0.1 * jax.random.normal(ks[5], (dim, hd), jnp.float32),
        wo_t=0.1 * jax.random.normal(ks[6], (hd, dim), jnp.float32),
        ln2_g=1.0 + 0.1 * jax.random.normal(ks[7], (dim,), jnp.float32),
        ln2_b=0.1 * jax.random.normal(ks[8], (dim,), jnp.float32),
        w1_t=0.1 * jax.random.normal(ks[9], (dim, hidden), jnp.float32),
        b1=0.1 * jax.random.normal(ks[10], (hidden,), jnp.float32),
        w2_t=0.1 * jax.random.normal(ks[11], (hidden, dim), jnp.float32),
        b2=jnp.zeros((dim,), jnp.float32),
    )

    ref = _reference(x, p, n_heads, head_dim, eps)

    # f32 MXU path (tight check). 2 batches per grid step -> grid of 2 parallel steps.
    out = encoder_layer(x, p, n_heads=n_heads, head_dim=head_dim, eps=eps,
                        mxu_dtype=jnp.float32)
    out = jax.block_until_ready(out)
    assert out.shape == (B, L, dim)
    assert jnp.allclose(out, ref, atol=2e-3, rtol=2e-3), \
        float(jnp.max(jnp.abs(out - ref)))

    # Default bf16 MXU-operand path (recommended on v5e/v6e/v7x): f32 accumulation
    # and f32 softmax/LayerNorm/GELU; looser tolerance from bf16 operand rounding
    # (incl. attention probabilities and the 1/sqrt(D)-folded Wq).
    out_bf16 = jax.block_until_ready(
        encoder_layer(x, p, n_heads=n_heads, head_dim=head_dim, eps=eps))
    assert jnp.allclose(out_bf16, ref, atol=5e-2, rtol=5e-2), \
        float(jnp.max(jnp.abs(out_bf16 - ref)))

    print("KERNEL_OK")
</pallas_src>

<mosaic_0001>
module attributes {stable_mosaic.version = 11 : i64} {
  func.func @_encoder_layer_kernel(%arg0: i32, %arg1: memref<16x32xf32, #tpu.memory_space<vmem>>, %arg2: memref<1x32xf32, #tpu.memory_space<vmem>>, %arg3: memref<1x32xf32, #tpu.memory_space<vmem>>, %arg4: memref<32x96xf32, #tpu.memory_space<vmem>>, %arg5: memref<32x32xf32, #tpu.memory_space<vmem>>, %arg6: memref<1x32xf32, #tpu.memory_space<vmem>>, %arg7: memref<1x32xf32, #tpu.memory_space<vmem>>, %arg8: memref<32x128xf32, #tpu.memory_space<vmem>>, %arg9: memref<1x128xf32, #tpu.memory_space<vmem>>, %arg10: memref<128x32xf32, #tpu.memory_space<vmem>>, %arg11: memref<1x32xf32, #tpu.memory_space<vmem>>, %arg12: memref<16x32xf32, #tpu.memory_space<vmem>>, %arg13: memref<16x32xf32, #tpu.memory_space<vmem>>) attributes {dimension_semantics = [#tpu.dimension_semantics<parallel>], iteration_bounds = array<i64: 2>, scalar_prefetch = 0 : i64, scratch_operands = 1 : i64, tpu.core_type = #tpu.core_type<tc>, window_params = [{transform_indices = @transform_0, window_bounds = array<i64: 16, 32>}, {pipeline_mode = #tpu.pipeline_mode<synchronous>, transform_indices = @transform_1, window_bounds = array<i64: 1, 32>}, {pipeline_mode = #tpu.pipeline_mode<synchronous>, transform_indices = @transform_2, window_bounds = array<i64: 1, 32>}, {pipeline_mode = #tpu.pipeline_mode<synchronous>, transform_indices = @transform_3, window_bounds = array<i64: 32, 96>}, {pipeline_mode = #tpu.pipeline_mode<synchronous>, transform_indices = @transform_4, window_bounds = array<i64: 32, 32>}, {pipeline_mode = #tpu.pipeline_mode<synchronous>, transform_indices = @transform_5, window_bounds = array<i64: 1, 32>}, {pipeline_mode = #tpu.pipeline_mode<synchronous>, transform_indices = @transform_6, window_bounds = array<i64: 1, 32>}, {pipeline_mode = #tpu.pipeline_mode<synchronous>, transform_indices = @transform_7, window_bounds = array<i64: 32, 128>}, {pipeline_mode = #tpu.pipeline_mode<synchronous>, transform_indices = @transform_8, window_bounds = array<i64: 1, 128>}, {pipeline_mode = #tpu.pipeline_mode<synchronous>, transform_indices = @transform_9, window_bounds = array<i64: 128, 32>}, {pipeline_mode = #tpu.pipeline_mode<synchronous>, transform_indices = @transform_10, window_bounds = array<i64: 1, 32>}, {transform_indices = @transform_11, window_bounds = array<i64: 16, 32>}]} {
    %c0 = arith.constant 0 : index
    %c0_0 = arith.constant 0 : index
    %0 = vector.load %arg1[%c0, %c0_0] : memref<16x32xf32, #tpu.memory_space<vmem>>, vector<16x32xf32>
    %c0_1 = arith.constant 0 : index
    %c0_2 = arith.constant 0 : index
    %1 = vector.load %arg2[%c0_1, %c0_2] : memref<1x32xf32, #tpu.memory_space<vmem>>, vector<1x32xf32>
    %c0_3 = arith.constant 0 : index
    %c0_4 = arith.constant 0 : index
    %2 = vector.load %arg3[%c0_3, %c0_4] : memref<1x32xf32, #tpu.memory_space<vmem>>, vector<1x32xf32>
    %cst = arith.constant dense<0.000000e+00> : vector<16xf32>
    %3 = vector.multi_reduction <add>, %0, %cst [1] : vector<16x32xf32> to vector<16xf32>
    %4 = vector.shape_cast %3 : vector<16xf32> to vector<16x1xf32>
    %cst_5 = arith.constant 3.200000e+01 : f32
    %5 = vector.broadcast %cst_5 : f32 to vector<16x1xf32>
    %6 = arith.divf %4, %5 : vector<16x1xf32>
    %7 = vector.broadcast %6 : vector<16x1xf32> to vector<16x32xf32>
    %8 = arith.subf %0, %7 : vector<16x32xf32>
    %9 = arith.mulf %8, %8 : vector<16x32xf32>
    %cst_6 = arith.constant dense<0.000000e+00> : vector<16xf32>
    %10 = vector.multi_reduction <add>, %9, %cst_6 [1] : vector<16x32xf32> to vector<16xf32>
    %11 = vector.shape_cast %10 : vector<16xf32> to vector<16x1xf32>
    %cst_7 = arith.constant 3.200000e+01 : f32
    %12 = vector.broadcast %cst_7 : f32 to vector<16x1xf32>
    %13 = arith.divf %11, %12 : vector<16x1xf32>
    %cst_8 = arith.constant 9.99999974E-6 : f32
    %14 = vector.broadcast %cst_8 : f32 to vector<16x1xf32>
    %15 = arith.addf %13, %14 : vector<16x1xf32>
    %16 = math.rsqrt %15 : vector<16x1xf32>
    %17 = vector.broadcast %16 : vector<16x1xf32> to vector<16x32xf32>
    %18 = arith.mulf %8, %17 : vector<16x32xf32>
    %19 = vector.broadcast %1 : vector<1x32xf32> to vector<16x32xf32>
    %20 = arith.mulf %18, %19 : vector<16x32xf32>
    %21 = vector.broadcast %2 : vector<1x32xf32> to vector<16x32xf32>
    %22 = arith.addf %20, %21 : vector<16x32xf32>
    %c0_9 = arith.constant 0 : index
    %c0_10 = arith.constant 0 : index
    %23 = vector.load %arg4[%c0_9, %c0_10] : memref<32x96xf32, #tpu.memory_space<vmem>>, vector<32x96xf32>
    %cst_11 = arith.constant dense<0.000000e+00> : vector<16x96xf32>
    %24 = tpu.matmul %22, %23, %cst_11 {dimension_numbers = #tpu.dot_dimension_numbers<[1], [0], [0], [1], [0, 0, 1, 1], [], []>} : vector<16x32xf32>, vector<32x96xf32>, vector<16x96xf32> -> vector<16x96xf32>
    %25 = tpu.iota {dimensions = array<i32: 0>} : vector<8x8xi32>
    %26 = tpu.iota {dimensions = array<i32: 1>} : vector<8x8xi32>
    %27 = arith.cmpi eq, %25, %26 : vector<8x8xi32>
    %cst_12 = arith.constant -1.000000e+30 : f32
    %cst_13 = arith.constant 0.000000e+00 : f32
    %28 = vector.broadcast %cst_12 : f32 to vector<8x8xf32>
    %29 = vector.broadcast %cst_13 : f32 to vector<8x8xf32>
    %30 = arith.select %27, %28, %29 : vector<8x8xi1>, vector<8x8xf32>
    %31 = vector.shape_cast %30 : vector<8x8xf32> to vector<1x8x8xf32>
    %32 = vector.extract_strided_slice %24 {offsets = [0, 0], sizes = [16, 8], strides = [1, 1]} : vector<16x96xf32> to vector<16x8xf32>
    %33 = vector.shape_cast %32 : vector<16x8xf32> to vector<2x8x8xf32>
    %34 = vector.extract_strided_slice %24 {offsets = [0, 32], sizes = [16, 8], strides = [1, 1]} : vector<16x96xf32> to vector<16x8xf32>
    %35 = vector.shape_cast %34 : vector<16x8xf32> to vector<2x8x8xf32>
    %36 = vector.extract_strided_slice %24 {offsets = [0, 64], sizes = [16, 8], strides = [1, 1]} : vector<16x96xf32> to vector<16x8xf32>
    %37 = vector.shape_cast %36 : vector<16x8xf32> to vector<2x8x8xf32>
    "tpu.trace_start"() <{level = 10 : i32, message = "bld,bsd->bls"}> : () -> ()
    %cst_14 = arith.constant dense<0.000000e+00> : vector<2x8x8xf32>
    %38 = tpu.matmul %33, %35, %cst_14 {dimension_numbers = #tpu.dot_dimension_numbers<[2], [2], [1], [1], [0, 0, 0, 1, 1, 1], [0], [0]>} : vector<2x8x8xf32>, vector<2x8x8xf32>, vector<2x8x8xf32> -> vector<2x8x8xf32>
    "tpu.trace_stop"() : () -> ()
    %39 = vector.broadcast %31 : vector<1x8x8xf32> to vector<2x8x8xf32>
    %40 = arith.addf %38, %39 : vector<2x8x8xf32>
    %cst_15 = arith.constant dense<0xFF800000> : vector<2x8xf32>
    %41 = vector.multi_reduction <maximumf>, %40, %cst_15 [2] : vector<2x8x8xf32> to vector<2x8xf32>
    %42 = vector.shape_cast %41 : vector<2x8xf32> to vector<2x8x1xf32>
    %43 = vector.broadcast %42 : vector<2x8x1xf32> to vector<2x8x8xf32>
    %44 = arith.subf %40, %43 : vector<2x8x8xf32>
    %45 = math.exp %44 : vector<2x8x8xf32>
    %cst_16 = arith.constant dense<0.000000e+00> : vector<2x8xf32>
    %46 = vector.multi_reduction <add>, %45, %cst_16 [2] : vector<2x8x8xf32> to vector<2x8xf32>
    %47 = vector.shape_cast %46 : vector<2x8xf32> to vector<2x8x1xf32>
    %48 = tpu.reciprocal %47 {approx = true} : vector<2x8x1xf32> -> vector<2x8x1xf32>
    %49 = vector.broadcast %48 : vector<2x8x1xf32> to vector<2x8x8xf32>
    %50 = arith.mulf %45, %49 : vector<2x8x8xf32>
    "tpu.trace_start"() <{level = 10 : i32, message = "bls,bsd->bld"}> : () -> ()
    %cst_17 = arith.constant dense<0.000000e+00> : vector<2x8x8xf32>
    %51 = tpu.matmul %50, %37, %cst_17 {dimension_numbers = #tpu.dot_dimension_numbers<[2], [1], [1], [2], [0, 0, 0, 1, 1, 2], [0], [0]>} : vector<2x8x8xf32>, vector<2x8x8xf32>, vector<2x8x8xf32> -> vector<2x8x8xf32>
    "tpu.trace_stop"() : () -> ()
    %52 = vector.shape_cast %51 : vector<2x8x8xf32> to vector<16x8xf32>
    %c0_18 = arith.constant 0 : index
    %c0_19 = arith.constant 0 : index
    %53 = vector.load %arg13[%c0_18, %c0_19] : memref<16x32xf32, #tpu.memory_space<vmem>>, vector<16x8xf32>
    tpu.vector_store %arg13[%c0_18, %c0_19], %52 {strides = array<i32>} : memref<16x32xf32, #tpu.memory_space<vmem>>, vector<16x8xf32>,
    %54 = vector.extract_strided_slice %24 {offsets = [0, 8], sizes = [16, 8], strides = [1, 1]} : vector<16x96xf32> to vector<16x8xf32>
    %55 = vector.shape_cast %54 : vector<16x8xf32> to vector<2x8x8xf32>
    %56 = vector.extract_strided_slice %24 {offsets = [0, 40], sizes = [16, 8], strides = [1, 1]} : vector<16x96xf32> to vector<16x8xf32>
    %57 = vector.shape_cast %56 : vector<16x8xf32> to vector<2x8x8xf32>
    %58 = vector.extract_strided_slice %24 {offsets = [0, 72], sizes = [16, 8], strides = [1, 1]} : vector<16x96xf32> to vector<16x8xf32>
    %59 = vector.shape_cast %58 : vector<16x8xf32> to vector<2x8x8xf32>
    "tpu.trace_start"() <{level = 10 : i32, message = "bld,bsd->bls"}> : () -> ()
    %cst_20 = arith.constant dense<0.000000e+00> : vector<2x8x8xf32>
    %60 = tpu.matmul %55, %57, %cst_20 {dimension_numbers = #tpu.dot_dimension_numbers<[2], [2], [1], [1], [0, 0, 0, 1, 1, 1], [0], [0]>} : vector<2x8x8xf32>, vector<2x8x8xf32>, vector<2x8x8xf32> -> vector<2x8x8xf32>
    "tpu.trace_stop"() : () -> ()
    %61 = vector.broadcast %31 : vector<1x8x8xf32> to vector<2x8x8xf32>
    %62 = arith.addf %60, %61 : vector<2x8x8xf32>
    %cst_21 = arith.constant dense<0xFF800000> : vector<2x8xf32>
    %63 = vector.multi_reduction <maximumf>, %62, %cst_21 [2] : vector<2x8x8xf32> to vector<2x8xf32>
    %64 = vector.shape_cast %63 : vector<2x8xf32> to vector<2x8x1xf32>
    %65 = vector.broadcast %64 : vector<2x8x1xf32> to vector<2x8x8xf32>
    %66 = arith.subf %62, %65 : vector<2x8x8xf32>
    %67 = math.exp %66 : vector<2x8x8xf32>
    %cst_22 = arith.constant dense<0.000000e+00> : vector<2x8xf32>
    %68 = vector.multi_reduction <add>, %67, %cst_22 [2] : vector<2x8x8xf32> to vector<2x8xf32>
    %69 = vector.shape_cast %68 : vector<2x8xf32> to vector<2x8x1xf32>
    %70 = tpu.reciprocal %69 {approx = true} : vector<2x8x1xf32> -> vector<2x8x1xf32>
    %71 = vector.broadcast %70 : vector<2x8x1xf32> to vector<2x8x8xf32>
    %72 = arith.mulf %67, %71 : vector<2x8x8xf32>
    "tpu.trace_start"() <{level = 10 : i32, message = "bls,bsd->bld"}> : () -> ()
    %cst_23 = arith.constant dense<0.000000e+00> : vector<2x8x8xf32>
    %73 = tpu.matmul %72, %59, %cst_23 {dimension_numbers = #tpu.dot_dimension_numbers<[2], [1], [1], [2], [0, 0, 0, 1, 1, 2], [0], [0]>} : vector<2x8x8xf32>, vector<2x8x8xf32>, vector<2x8x8xf32> -> vector<2x8x8xf32>
    "tpu.trace_stop"() : () -> ()
    %74 = vector.shape_cast %73 : vector<2x8x8xf32> to vector<16x8xf32>
    %c0_24 = arith.constant 0 : index
    %c8 = arith.constant 8 : index
    %75 = vector.load %arg13[%c0_24, %c8] : memref<16x32xf32, #tpu.memory_space<vmem>>, vector<16x8xf32>
    tpu.vector_store %arg13[%c0_24, %c8], %74 {strides = array<i32>} : memref<16x32xf32, #tpu.memory_space<vmem>>, vector<16x8xf32>,
    %76 = vector.extract_strided_slice %24 {offsets = [0, 16], sizes = [16, 8], strides = [1, 1]} : vector<16x96xf32> to vector<16x8xf32>
    %77 = vector.shape_cast %76 : vector<16x8xf32> to vector<2x8x8xf32>
    %78 = vector.extract_strided_slice %24 {offsets = [0, 48], sizes = [16, 8], strides = [1, 1]} : vector<16x96xf32> to vector<16x8xf32>
    %79 = vector.shape_cast %78 : vector<16x8xf32> to vector<2x8x8xf32>
    %80 = vector.extract_strided_slice %24 {offsets = [0, 80], sizes = [16, 8], strides = [1, 1]} : vector<16x96xf32> to vector<16x8xf32>
    %81 = vector.shape_cast %80 : vector<16x8xf32> to vector<2x8x8xf32>
    "tpu.trace_start"() <{level = 10 : i32, message = "bld,bsd->bls"}> : () -> ()
    %cst_25 = arith.constant dense<0.000000e+00> : vector<2x8x8xf32>
    %82 = tpu.matmul %77, %79, %cst_25 {dimension_numbers = #tpu.dot_dimension_numbers<[2], [2], [1], [1], [0, 0, 0, 1, 1, 1], [0], [0]>} : vector<2x8x8xf32>, vector<2x8x8xf32>, vector<2x8x8xf32> -> vector<2x8x8xf32>
    "tpu.trace_stop"() : () -> ()
    %83 = vector.broadcast %31 : vector<1x8x8xf32> to vector<2x8x8xf32>
    %84 = arith.addf %82, %83 : vector<2x8x8xf32>
    %cst_26 = arith.constant dense<0xFF800000> : vector<2x8xf32>
    %85 = vector.multi_reduction <maximumf>, %84, %cst_26 [2] : vector<2x8x8xf32> to vector<2x8xf32>
    %86 = vector.shape_cast %85 : vector<2x8xf32> to vector<2x8x1xf32>
    %87 = vector.broadcast %86 : vector<2x8x1xf32> to vector<2x8x8xf32>
    %88 = arith.subf %84, %87 : vector<2x8x8xf32>
    %89 = math.exp %88 : vector<2x8x8xf32>
    %cst_27 = arith.constant dense<0.000000e+00> : vector<2x8xf32>
    %90 = vector.multi_reduction <add>, %89, %cst_27 [2] : vector<2x8x8xf32> to vector<2x8xf32>
    %91 = vector.shape_cast %90 : vector<2x8xf32> to vector<2x8x1xf32>
    %92 = tpu.reciprocal %91 {approx = true} : vector<2x8x1xf32> -> vector<2x8x1xf32>
    %93 = vector.broadcast %92 : vector<2x8x1xf32> to vector<2x8x8xf32>
    %94 = arith.mulf %89, %93 : vector<2x8x8xf32>
    "tpu.trace_start"() <{level = 10 : i32, message = "bls,bsd->bld"}> : () -> ()
    %cst_28 = arith.constant dense<0.000000e+00> : vector<2x8x8xf32>
    %95 = tpu.matmul %94, %81, %cst_28 {dimension_numbers = #tpu.dot_dimension_numbers<[2], [1], [1], [2], [0, 0, 0, 1, 1, 2], [0], [0]>} : vector<2x8x8xf32>, vector<2x8x8xf32>, vector<2x8x8xf32> -> vector<2x8x8xf32>
    "tpu.trace_stop"() : () -> ()
    %96 = vector.shape_cast %95 : vector<2x8x8xf32> to vector<16x8xf32>
    %c0_29 = arith.constant 0 : index
    %c16 = arith.constant 16 : index
    %97 = vector.load %arg13[%c0_29, %c16] : memref<16x32xf32, #tpu.memory_space<vmem>>, vector<16x8xf32>
    tpu.vector_store %arg13[%c0_29, %c16], %96 {strides = array<i32>} : memref<16x32xf32, #tpu.memory_space<vmem>>, vector<16x8xf32>,
    %98 = vector.extract_strided_slice %24 {offsets = [0, 24], sizes = [16, 8], strides = [1, 1]} : vector<16x96xf32> to vector<16x8xf32>
    %99 = vector.shape_cast %98 : vector<16x8xf32> to vector<2x8x8xf32>
    %100 = vector.extract_strided_slice %24 {offsets = [0, 56], sizes = [16, 8], strides = [1, 1]} : vector<16x96xf32> to vector<16x8xf32>
    %101 = vector.shape_cast %100 : vector<16x8xf32> to vector<2x8x8xf32>
    %102 = vector.extract_strided_slice %24 {offsets = [0, 88], sizes = [16, 8], strides = [1, 1]} : vector<16x96xf32> to vector<16x8xf32>
    %103 = vector.shape_cast %102 : vector<16x8xf32> to vector<2x8x8xf32>
    "tpu.trace_start"() <{level = 10 : i32, message = "bld,bsd->bls"}> : () -> ()
    %cst_30 = arith.constant dense<0.000000e+00> : vector<2x8x8xf32>
    %104 = tpu.matmul %99, %101, %cst_30 {dimension_numbers = #tpu.dot_dimension_numbers<[2], [2], [1], [1], [0, 0, 0, 1, 1, 1], [0], [0]>} : vector<2x8x8xf32>, vector<2x8x8xf32>, vector<2x8x8xf32> -> vector<2x8x8xf32>
    "tpu.trace_stop"() : () -> ()
    %105 = vector.broadcast %31 : vector<1x8x8xf32> to vector<2x8x8xf32>
    %106 = arith.addf %104, %105 : vector<2x8x8xf32>
    %cst_31 = arith.constant dense<0xFF800000> : vector<2x8xf32>
    %107 = vector.multi_reduction <maximumf>, %106, %cst_31 [2] : vector<2x8x8xf32> to vector<2x8xf32>
    %108 = vector.shape_cast %107 : vector<2x8xf32> to vector<2x8x1xf32>
    %109 = vector.broadcast %108 : vector<2x8x1xf32> to vector<2x8x8xf32>
    %110 = arith.subf %106, %109 : vector<2x8x8xf32>
    %111 = math.exp %110 : vector<2x8x8xf32>
    %cst_32 = arith.constant dense<0.000000e+00> : vector<2x8xf32>
    %112 = vector.multi_reduction <add>, %111, %cst_32 [2] : vector<2x8x8xf32> to vector<2x8xf32>
    %113 = vector.shape_cast %112 : vector<2x8xf32> to vector<2x8x1xf32>
    %114 = tpu.reciprocal %113 {approx = true} : vector<2x8x1xf32> -> vector<2x8x1xf32>
    %115 = vector.broadcast %114 : vector<2x8x1xf32> to vector<2x8x8xf32>
    %116 = arith.mulf %111, %115 : vector<2x8x8xf32>
    "tpu.trace_start"() <{level = 10 : i32, message = "bls,bsd->bld"}> : () -> ()
    %cst_33 = arith.constant dense<0.000000e+00> : vector<2x8x8xf32>
    %117 = tpu.matmul %116, %103, %cst_33 {dimension_numbers = #tpu.dot_dimension_numbers<[2], [1], [1], [2], [0, 0, 0, 1, 1, 2], [0], [0]>} : vector<2x8x8xf32>, vector<2x8x8xf32>, vector<2x8x8xf32> -> vector<2x8x8xf32>
    "tpu.trace_stop"() : () -> ()
    %118 = vector.shape_cast %117 : vector<2x8x8xf32> to vector<16x8xf32>
    %c0_34 = arith.constant 0 : index
    %c24 = arith.constant 24 : index
    %119 = vector.load %arg13[%c0_34, %c24] : memref<16x32xf32, #tpu.memory_space<vmem>>, vector<16x8xf32>
    tpu.vector_store %arg13[%c0_34, %c24], %118 {strides = array<i32>} : memref<16x32xf32, #tpu.memory_space<vmem>>, vector<16x8xf32>,
    %c0_35 = arith.constant 0 : index
    %c0_36 = arith.constant 0 : index
    %120 = vector.load %arg13[%c0_35, %c0_36] : memref<16x32xf32, #tpu.memory_space<vmem>>, vector<16x32xf32>
    %c0_37 = arith.constant 0 : index
    %c0_38 = arith.constant 0 : index
    %121 = vector.load %arg5[%c0_37, %c0_38] : memref<32x32xf32, #tpu.memory_space<vmem>>, vector<32x32xf32>
    %cst_39 = arith.constant dense<0.000000e+00> : vector<16x32xf32>
    %122 = tpu.matmul %120, %121, %cst_39 {dimension_numbers = #tpu.dot_dimension_numbers<[1], [0], [0], [1], [0, 0, 1, 1], [], []>} : vector<16x32xf32>, vector<32x32xf32>, vector<16x32xf32> -> vector<16x32xf32>
    %123 = arith.addf %22, %122 : vector<16x32xf32>
    %c0_40 = arith.constant 0 : index
    %c0_41 = arith.constant 0 : index
    %124 = vector.load %arg6[%c0_40, %c0_41] : memref<1x32xf32, #tpu.memory_space<vmem>>, vector<1x32xf32>
    %c0_42 = arith.constant 0 : index
    %c0_43 = arith.constant 0 : index
    %125 = vector.load %arg7[%c0_42, %c0_43] : memref<1x32xf32, #tpu.memory_space<vmem>>, vector<1x32xf32>
    %cst_44 = arith.constant dense<0.000000e+00> : vector<16xf32>
    %126 = vector.multi_reduction <add>, %123, %cst_44 [1] : vector<16x32xf32> to vector<16xf32>
    %127 = vector.shape_cast %126 : vector<16xf32> to vector<16x1xf32>
    %cst_45 = arith.constant 3.200000e+01 : f32
    %128 = vector.broadcast %cst_45 : f32 to vector<16x1xf32>
    %129 = arith.divf %127, %128 : vector<16x1xf32>
    %130 = vector.broadcast %129 : vector<16x1xf32> to vector<16x32xf32>
    %131 = arith.subf %123, %130 : vector<16x32xf32>
    %132 = arith.mulf %131, %131 : vector<16x32xf32>
    %cst_46 = arith.constant dense<0.000000e+00> : vector<16xf32>
    %133 = vector.multi_reduction <add>, %132, %cst_46 [1] : vector<16x32xf32> to vector<16xf32>
    %134 = vector.shape_cast %133 : vector<16xf32> to vector<16x1xf32>
    %cst_47 = arith.constant 3.200000e+01 : f32
    %135 = vector.broadcast %cst_47 : f32 to vector<16x1xf32>
    %136 = arith.divf %134, %135 : vector<16x1xf32>
    %cst_48 = arith.constant 9.99999974E-6 : f32
    %137 = vector.broadcast %cst_48 : f32 to vector<16x1xf32>
    %138 = arith.addf %136, %137 : vector<16x1xf32>
    %139 = math.rsqrt %138 : vector<16x1xf32>
    %140 = vector.broadcast %139 : vector<16x1xf32> to vector<16x32xf32>
    %141 = arith.mulf %131, %140 : vector<16x32xf32>
    %142 = vector.broadcast %124 : vector<1x32xf32> to vector<16x32xf32>
    %143 = arith.mulf %141, %142 : vector<16x32xf32>
    %144 = vector.broadcast %125 : vector<1x32xf32> to vector<16x32xf32>
    %145 = arith.addf %143, %144 : vector<16x32xf32>
    %c0_49 = arith.constant 0 : index
    %c0_50 = arith.constant 0 : index
    %146 = vector.load %arg8[%c0_49, %c0_50] : memref<32x128xf32, #tpu.memory_space<vmem>>, vector<32x128xf32>
    %cst_51 = arith.constant dense<0.000000e+00> : vector<16x128xf32>
    %147 = tpu.matmul %145, %146, %cst_51 {dimension_numbers = #tpu.dot_dimension_numbers<[1], [0], [0], [1], [0, 0, 1, 1], [], []>} : vector<16x32xf32>, vector<32x128xf32>, vector<16x128xf32> -> vector<16x128xf32>
    %c0_52 = arith.constant 0 : index
    %c0_53 = arith.constant 0 : index
    %148 = vector.load %arg9[%c0_52, %c0_53] : memref<1x128xf32, #tpu.memory_space<vmem>>, vector<1x128xf32>
    %149 = vector.broadcast %148 : vector<1x128xf32> to vector<16x128xf32>
    %150 = arith.addf %147, %149 : vector<16x128xf32>
    %cst_54 = arith.constant 5.000000e-01 : f32
    %151 = vector.broadcast %cst_54 : f32 to vector<16x128xf32>
    %152 = arith.mulf %151, %150 : vector<16x128xf32>
    %cst_55 = arith.constant 4.471500e-02 : f32
    %153 = vector.broadcast %cst_55 : f32 to vector<16x128xf32>
    %154 = arith.mulf %153, %150 : vector<16x128xf32>
    %155 = arith.mulf %154, %150 : vector<16x128xf32>
    %156 = arith.mulf %155, %150 : vector<16x128xf32>
    %157 = arith.addf %150, %156 : vector<16x128xf32>
    %cst_56 = arith.constant 0.797884583 : f32
    %158 = vector.broadcast %cst_56 : f32 to vector<16x128xf32>
    %159 = arith.mulf %158, %157 : vector<16x128xf32>
    %160 = math.tanh %159 : vector<16x128xf32>
    %cst_57 = arith.constant 1.000000e+00 : f32
    %161 = vector.broadcast %cst_57 : f32 to vector<16x128xf32>
    %162 = arith.addf %161, %160 : vector<16x128xf32>
    %163 = arith.mulf %152, %162 : vector<16x128xf32>
    %c0_58 = arith.constant 0 : index
    %c0_59 = arith.constant 0 : index
    %164 = vector.load %arg10[%c0_58, %c0_59] : memref<128x32xf32, #tpu.memory_space<vmem>>, vector<128x32xf32>
    %cst_60 = arith.constant dense<0.000000e+00> : vector<16x32xf32>
    %165 = tpu.matmul %163, %164, %cst_60 {dimension_numbers = #tpu.dot_dimension_numbers<[1], [0], [0], [1], [0, 0, 1, 1], [], []>} : vector<16x128xf32>, vector<128x32xf32>, vector<16x32xf32> -> vector<16x32xf32>
    %c0_61 = arith.constant 0 : index
    %c0_62 = arith.constant 0 : index
    %166 = vector.load %arg11[%c0_61, %c0_62] : memref<1x32xf32, #tpu.memory_space<vmem>>, vector<1x32xf32>
    %167 = vector.broadcast %166 : vector<1x32xf32> to vector<16x32xf32>
    %168 = arith.addf %165, %167 : vector<16x32xf32>
    %169 = arith.addf %145, %168 : vector<16x32xf32>
    %c0_63 = arith.constant 0 : index
    %c0_64 = arith.constant 0 : index
    %170 = vector.load %arg12[%c0_63, %c0_64] : memref<16x32xf32, #tpu.memory_space<vmem>>, vector<16x32xf32>
    tpu.vector_store %arg12[%c0_63, %c0_64], %169 {strides = array<i32>} : memref<16x32xf32, #tpu.memory_space<vmem>>, vector<16x32xf32>,
    return
  }
  func.func @transform_0(%arg0: i32) -> (i32, i32) {
    %c0_i32 = arith.constant 0 : i32
    %c0_i32_0 = arith.constant 0 : i32
    return %arg0, %c0_i32 : i32, i32
  }
  func.func @transform_1(%arg0: i32) -> (i32, i32) {
    %c0_i32 = arith.constant 0 : i32
    %c0_i32_0 = arith.constant 0 : i32
    %c0_i32_1 = arith.constant 0 : i32
    return %c0_i32, %c0_i32_0 : i32, i32
  }
  func.func @transform_2(%arg0: i32) -> (i32, i32) {
    %c0_i32 = arith.constant 0 : i32
    %c0_i32_0 = arith.constant 0 : i32
    %c0_i32_1 = arith.constant 0 : i32
    return %c0_i32, %c0_i32_0 : i32, i32
  }
  func.func @transform_3(%arg0: i32) -> (i32, i32) {
    %c0_i32 = arith.constant 0 : i32
    %c0_i32_0 = arith.constant 0 : i32
    %c0_i32_1 = arith.constant 0 : i32
    return %c0_i32, %c0_i32_0 : i32, i32
  }
  func.func @transform_4(%arg0: i32) -> (i32, i32) {
    %c0_i32 = arith.constant 0 : i32
    %c0_i32_0 = arith.constant 0 : i32
    %c0_i32_1 = arith.constant 0 : i32
    return %c0_i32, %c0_i32_0 : i32, i32
  }
  func.func @transform_5(%arg0: i32) -> (i32, i32) {
    %c0_i32 = arith.constant 0 : i32
    %c0_i32_0 = arith.constant 0 : i32
    %c0_i32_1 = arith.constant 0 : i32
    return %c0_i32, %c0_i32_0 : i32, i32
  }
  func.func @transform_6(%arg0: i32) -> (i32, i32) {
    %c0_i32 = arith.constant 0 : i32
    %c0_i32_0 = arith.constant 0 : i32
    %c0_i32_1 = arith.constant 0 : i32
    return %c0_i32, %c0_i32_0 : i32, i32
  }
  func.func @transform_7(%arg0: i32) -> (i32, i32) {
    %c0_i32 = arith.constant 0 : i32
    %c0_i32_0 = arith.constant 0 : i32
    %c0_i32_1 = arith.constant 0 : i32
    return %c0_i32, %c0_i32_0 : i32, i32
  }
  func.func @transform_8(%arg0: i32) -> (i32, i32) {
    %c0_i32 = arith.constant 0 : i32
    %c0_i32_0 = arith.constant 0 : i32
    %c0_i32_1 = arith.constant 0 : i32
    return %c0_i32, %c0_i32_0 : i32, i32
  }
  func.func @transform_9(%arg0: i32) -> (i32, i32) {
    %c0_i32 = arith.constant 0 : i32
    %c0_i32_0 = arith.constant 0 : i32
    %c0_i32_1 = arith.constant 0 : i32
    return %c0_i32, %c0_i32_0 : i32, i32
  }
  func.func @transform_10(%arg0: i32) -> (i32, i32) {
    %c0_i32 = arith.constant 0 : i32
    %c0_i32_0 = arith.constant 0 : i32
    %c0_i32_1 = arith.constant 0 : i32
    return %c0_i32, %c0_i32_0 : i32, i32
  }
  func.func @transform_11(%arg0: i32) -> (i32, i32) {
    %c0_i32 = arith.constant 0 : i32
    %c0_i32_0 = arith.constant 0 : i32
    return %arg0, %c0_i32 : i32, i32
  }
}

module attributes {stable_mosaic.version = 11 : i64} {
  func.func @_encoder_layer_kernel(%arg0: i32, %arg1: memref<16x32xf32, #tpu.memory_space<vmem>>, %arg2: memref<1x32xf32, #tpu.memory_space<vmem>>, %arg3: memref<1x32xf32, #tpu.memory_space<vmem>>, %arg4: memref<32x96xf32, #tpu.memory_space<vmem>>, %arg5: memref<32x32xf32, #tpu.memory_space<vmem>>, %arg6: memref<1x32xf32, #tpu.memory_space<vmem>>, %arg7: memref<1x32xf32, #tpu.memory_space<vmem>>, %arg8: memref<32x128xf32, #tpu.memory_space<vmem>>, %arg9: memref<1x128xf32, #tpu.memory_space<vmem>>, %arg10: memref<128x32xf32, #tpu.memory_space<vmem>>, %arg11: memref<1x32xf32, #tpu.memory_space<vmem>>, %arg12: memref<16x32xf32, #tpu.memory_space<vmem>>, %arg13: memref<16x32xf32, #tpu.memory_space<vmem>>) attributes {dimension_semantics = [#tpu.dimension_semantics<parallel>], iteration_bounds = array<i64: 2>, scalar_prefetch = 0 : i64, scratch_operands = 1 : i64, tpu.core_type = #tpu.core_type<tc>, window_params = [{transform_indices = @transform_0, window_bounds = array<i64: 16, 32>}, {pipeline_mode = #tpu.pipeline_mode<synchronous>, transform_indices = @transform_1, window_bounds = array<i64: 1, 32>}, {pipeline_mode = #tpu.pipeline_mode<synchronous>, transform_indices = @transform_2, window_bounds = array<i64: 1, 32>}, {pipeline_mode = #tpu.pipeline_mode<synchronous>, transform_indices = @transform_3, window_bounds = array<i64: 32, 96>}, {pipeline_mode = #tpu.pipeline_mode<synchronous>, transform_indices = @transform_4, window_bounds = array<i64: 32, 32>}, {pipeline_mode = #tpu.pipeline_mode<synchronous>, transform_indices = @transform_5, window_bounds = array<i64: 1, 32>}, {pipeline_mode = #tpu.pipeline_mode<synchronous>, transform_indices = @transform_6, window_bounds = array<i64: 1, 32>}, {pipeline_mode = #tpu.pipeline_mode<synchronous>, transform_indices = @transform_7, window_bounds = array<i64: 32, 128>}, {pipeline_mode = #tpu.pipeline_mode<synchronous>, transform_indices = @transform_8, window_bounds = array<i64: 1, 128>}, {pipeline_mode = #tpu.pipeline_mode<synchronous>, transform_indices = @transform_9, window_bounds = array<i64: 128, 32>}, {pipeline_mode = #tpu.pipeline_mode<synchronous>, transform_indices = @transform_10, window_bounds = array<i64: 1, 32>}, {transform_indices = @transform_11, window_bounds = array<i64: 16, 32>}]} {
    %c0 = arith.constant 0 : index
    %c0_0 = arith.constant 0 : index
    %0 = vector.load %arg1[%c0, %c0_0] : memref<16x32xf32, #tpu.memory_space<vmem>>, vector<16x32xf32>
    %c0_1 = arith.constant 0 : index
    %c0_2 = arith.constant 0 : index
    %1 = vector.load %arg2[%c0_1, %c0_2] : memref<1x32xf32, #tpu.memory_space<vmem>>, vector<1x32xf32>
    %c0_3 = arith.constant 0 : index
    %c0_4 = arith.constant 0 : index
    %2 = vector.load %arg3[%c0_3, %c0_4] : memref<1x32xf32, #tpu.memory_space<vmem>>, vector<1x32xf32>
    %cst = arith.constant dense<0.000000e+00> : vector<16xf32>
    %3 = vector.multi_reduction <add>, %0, %cst [1] : vector<16x32xf32> to vector<16xf32>
    %4 = vector.shape_cast %3 : vector<16xf32> to vector<16x1xf32>
    %cst_5 = arith.constant 3.200000e+01 : f32
    %5 = vector.broadcast %cst_5 : f32 to vector<16x1xf32>
    %6 = arith.divf %4, %5 : vector<16x1xf32>
    %7 = vector.broadcast %6 : vector<16x1xf32> to vector<16x32xf32>
    %8 = arith.subf %0, %7 : vector<16x32xf32>
    %9 = arith.mulf %8, %8 : vector<16x32xf32>
    %cst_6 = arith.constant dense<0.000000e+00> : vector<16xf32>
    %10 = vector.multi_reduction <add>, %9, %cst_6 [1] : vector<16x32xf32> to vector<16xf32>
    %11 = vector.shape_cast %10 : vector<16xf32> to vector<16x1xf32>
    %cst_7 = arith.constant 3.200000e+01 : f32
    %12 = vector.broadcast %cst_7 : f32 to vector<16x1xf32>
    %13 = arith.divf %11, %12 : vector<16x1xf32>
    %cst_8 = arith.constant 9.99999974E-6 : f32
    %14 = vector.broadcast %cst_8 : f32 to vector<16x1xf32>
    %15 = arith.addf %13, %14 : vector<16x1xf32>
    %16 = math.rsqrt %15 : vector<16x1xf32>
    %17 = vector.broadcast %16 : vector<16x1xf32> to vector<16x32xf32>
    %18 = arith.mulf %8, %17 : vector<16x32xf32>
    %19 = vector.broadcast %1 : vector<1x32xf32> to vector<16x32xf32>
    %20 = arith.mulf %18, %19 : vector<16x32xf32>
    %21 = vector.broadcast %2 : vector<1x32xf32> to vector<16x32xf32>
    %22 = arith.addf %20, %21 : vector<16x32xf32>
    %c0_9 = arith.constant 0 : index
    %c0_10 = arith.constant 0 : index
    %23 = vector.load %arg4[%c0_9, %c0_10] : memref<32x96xf32, #tpu.memory_space<vmem>>, vector<32x96xf32>
    %cst_11 = arith.constant dense<0.000000e+00> : vector<16x96xf32>
    %24 = tpu.matmul %22, %23, %cst_11 {dimension_numbers = #tpu.dot_dimension_numbers<[1], [0], [0], [1], [0, 0, 1, 1], [], []>} : vector<16x32xf32>, vector<32x96xf32>, vector<16x96xf32> -> vector<16x96xf32>
    %25 = tpu.iota {dimensions = array<i32: 0>} : vector<8x8xi32>
    %26 = tpu.iota {dimensions = array<i32: 1>} : vector<8x8xi32>
    %27 = arith.cmpi eq, %25, %26 : vector<8x8xi32>
    %cst_12 = arith.constant -1.000000e+30 : f32
    %cst_13 = arith.constant 0.000000e+00 : f32
    %28 = vector.broadcast %cst_12 : f32 to vector<8x8xf32>
    %29 = vector.broadcast %cst_13 : f32 to vector<8x8xf32>
    %30 = arith.select %27, %28, %29 : vector<8x8xi1>, vector<8x8xf32>
    %31 = vector.shape_cast %30 : vector<8x8xf32> to vector<1x8x8xf32>
    %32 = vector.extract_strided_slice %24 {offsets = [0, 0], sizes = [16, 8], strides = [1, 1]} : vector<16x96xf32> to vector<16x8xf32>
    %33 = vector.shape_cast %32 : vector<16x8xf32> to vector<2x8x8xf32>
    %34 = vector.extract_strided_slice %24 {offsets = [0, 32], sizes = [16, 8], strides = [1, 1]} : vector<16x96xf32> to vector<16x8xf32>
    %35 = vector.shape_cast %34 : vector<16x8xf32> to vector<2x8x8xf32>
    %36 = vector.extract_strided_slice %24 {offsets = [0, 64], sizes = [16, 8], strides = [1, 1]} : vector<16x96xf32> to vector<16x8xf32>
    %37 = vector.shape_cast %36 : vector<16x8xf32> to vector<2x8x8xf32>
    "tpu.trace_start"() <{level = 10 : i32, message = "bld,bsd->bls"}> : () -> ()
    %cst_14 = arith.constant dense<0.000000e+00> : vector<2x8x8xf32>
    %38 = tpu.matmul %33, %35, %cst_14 {dimension_numbers = #tpu.dot_dimension_numbers<[2], [2], [1], [1], [0, 0, 0, 1, 1, 1], [0], [0]>} : vector<2x8x8xf32>, vector<2x8x8xf32>, vector<2x8x8xf32> -> vector<2x8x8xf32>
    "tpu.trace_stop"() : () -> ()
    %39 = vector.broadcast %31 : vector<1x8x8xf32> to vector<2x8x8xf32>
    %40 = arith.addf %38, %39 : vector<2x8x8xf32>
    %cst_15 = arith.constant dense<0xFF800000> : vector<2x8xf32>
    %41 = vector.multi_reduction <maximumf>, %40, %cst_15 [2] : vector<2x8x8xf32> to vector<2x8xf32>
    %42 = vector.shape_cast %41 : vector<2x8xf32> to vector<2x8x1xf32>
    %43 = vector.broadcast %42 : vector<2x8x1xf32> to vector<2x8x8xf32>
    %44 = arith.subf %40, %43 : vector<2x8x8xf32>
    %45 = math.exp %44 : vector<2x8x8xf32>
    %cst_16 = arith.constant dense<0.000000e+00> : vector<2x8xf32>
    %46 = vector.multi_reduction <add>, %45, %cst_16 [2] : vector<2x8x8xf32> to vector<2x8xf32>
    %47 = vector.shape_cast %46 : vector<2x8xf32> to vector<2x8x1xf32>
    %48 = tpu.reciprocal %47 {approx = true} : vector<2x8x1xf32> -> vector<2x8x1xf32>
    %49 = vector.broadcast %48 : vector<2x8x1xf32> to vector<2x8x8xf32>
    %50 = arith.mulf %45, %49 : vector<2x8x8xf32>
    "tpu.trace_start"() <{level = 10 : i32, message = "bls,bsd->bld"}> : () -> ()
    %cst_17 = arith.constant dense<0.000000e+00> : vector<2x8x8xf32>
    %51 = tpu.matmul %50, %37, %cst_17 {dimension_numbers = #tpu.dot_dimension_numbers<[2], [1], [1], [2], [0, 0, 0, 1, 1, 2], [0], [0]>} : vector<2x8x8xf32>, vector<2x8x8xf32>, vector<2x8x8xf32> -> vector<2x8x8xf32>
    "tpu.trace_stop"() : () -> ()
    %52 = vector.shape_cast %51 : vector<2x8x8xf32> to vector<16x8xf32>
    %c0_18 = arith.constant 0 : index
    %c0_19 = arith.constant 0 : index
    %53 = vector.load %arg13[%c0_18, %c0_19] : memref<16x32xf32, #tpu.memory_space<vmem>>, vector<16x8xf32>
    tpu.vector_store %arg13[%c0_18, %c0_19], %52 {strides = array<i32>} : memref<16x32xf32, #tpu.memory_space<vmem>>, vector<16x8xf32>,
    %54 = vector.extract_strided_slice %24 {offsets = [0, 8], sizes = [16, 8], strides = [1, 1]} : vector<16x96xf32> to vector<16x8xf32>
    %55 = vector.shape_cast %54 : vector<16x8xf32> to vector<2x8x8xf32>
    %56 = vector.extract_strided_slice %24 {offsets = [0, 40], sizes = [16, 8], strides = [1, 1]} : vector<16x96xf32> to vector<16x8xf32>
    %57 = vector.shape_cast %56 : vector<16x8xf32> to vector<2x8x8xf32>
    %58 = vector.extract_strided_slice %24 {offsets = [0, 72], sizes = [16, 8], strides = [1, 1]} : vector<16x96xf32> to vector<16x8xf32>
    %59 = vector.shape_cast %58 : vector<16x8xf32> to vector<2x8x8xf32>
    "tpu.trace_start"() <{level = 10 : i32, message = "bld,bsd->bls"}> : () -> ()
    %cst_20 = arith.constant dense<0.000000e+00> : vector<2x8x8xf32>
    %60 = tpu.matmul %55, %57, %cst_20 {dimension_numbers = #tpu.dot_dimension_numbers<[2], [2], [1], [1], [0, 0, 0, 1, 1, 1], [0], [0]>} : vector<2x8x8xf32>, vector<2x8x8xf32>, vector<2x8x8xf32> -> vector<2x8x8xf32>
    "tpu.trace_stop"() : () -> ()
    %61 = vector.broadcast %31 : vector<1x8x8xf32> to vector<2x8x8xf32>
    %62 = arith.addf %60, %61 : vector<2x8x8xf32>
    %cst_21 = arith.constant dense<0xFF800000> : vector<2x8xf32>
    %63 = vector.multi_reduction <maximumf>, %62, %cst_21 [2] : vector<2x8x8xf32> to vector<2x8xf32>
    %64 = vector.shape_cast %63 : vector<2x8xf32> to vector<2x8x1xf32>
    %65 = vector.broadcast %64 : vector<2x8x1xf32> to vector<2x8x8xf32>
    %66 = arith.subf %62, %65 : vector<2x8x8xf32>
    %67 = math.exp %66 : vector<2x8x8xf32>
    %cst_22 = arith.constant dense<0.000000e+00> : vector<2x8xf32>
    %68 = vector.multi_reduction <add>, %67, %cst_22 [2] : vector<2x8x8xf32> to vector<2x8xf32>
    %69 = vector.shape_cast %68 : vector<2x8xf32> to vector<2x8x1xf32>
    %70 = tpu.reciprocal %69 {approx = true} : vector<2x8x1xf32> -> vector<2x8x1xf32>
    %71 = vector.broadcast %70 : vector<2x8x1xf32> to vector<2x8x8xf32>
    %72 = arith.mulf %67, %71 : vector<2x8x8xf32>
    "tpu.trace_start"() <{level = 10 : i32, message = "bls,bsd->bld"}> : () -> ()
    %cst_23 = arith.constant dense<0.000000e+00> : vector<2x8x8xf32>
    %73 = tpu.matmul %72, %59, %cst_23 {dimension_numbers = #tpu.dot_dimension_numbers<[2], [1], [1], [2], [0, 0, 0, 1, 1, 2], [0], [0]>} : vector<2x8x8xf32>, vector<2x8x8xf32>, vector<2x8x8xf32> -> vector<2x8x8xf32>
    "tpu.trace_stop"() : () -> ()
    %74 = vector.shape_cast %73 : vector<2x8x8xf32> to vector<16x8xf32>
    %c0_24 = arith.constant 0 : index
    %c8 = arith.constant 8 : index
    %75 = vector.load %arg13[%c0_24, %c8] : memref<16x32xf32, #tpu.memory_space<vmem>>, vector<16x8xf32>
    tpu.vector_store %arg13[%c0_24, %c8], %74 {strides = array<i32>} : memref<16x32xf32, #tpu.memory_space<vmem>>, vector<16x8xf32>,
    %76 = vector.extract_strided_slice %24 {offsets = [0, 16], sizes = [16, 8], strides = [1, 1]} : vector<16x96xf32> to vector<16x8xf32>
    %77 = vector.shape_cast %76 : vector<16x8xf32> to vector<2x8x8xf32>
    %78 = vector.extract_strided_slice %24 {offsets = [0, 48], sizes = [16, 8], strides = [1, 1]} : vector<16x96xf32> to vector<16x8xf32>
    %79 = vector.shape_cast %78 : vector<16x8xf32> to vector<2x8x8xf32>
    %80 = vector.extract_strided_slice %24 {offsets = [0, 80], sizes = [16, 8], strides = [1, 1]} : vector<16x96xf32> to vector<16x8xf32>
    %81 = vector.shape_cast %80 : vector<16x8xf32> to vector<2x8x8xf32>
    "tpu.trace_start"() <{level = 10 : i32, message = "bld,bsd->bls"}> : () -> ()
    %cst_25 = arith.constant dense<0.000000e+00> : vector<2x8x8xf32>
    %82 = tpu.matmul %77, %79, %cst_25 {dimension_numbers = #tpu.dot_dimension_numbers<[2], [2], [1], [1], [0, 0, 0, 1, 1, 1], [0], [0]>} : vector<2x8x8xf32>, vector<2x8x8xf32>, vector<2x8x8xf32> -> vector<2x8x8xf32>
    "tpu.trace_stop"() : () -> ()
    %83 = vector.broadcast %31 : vector<1x8x8xf32> to vector<2x8x8xf32>
    %84 = arith.addf %82, %83 : vector<2x8x8xf32>
    %cst_26 = arith.constant dense<0xFF800000> : vector<2x8xf32>
    %85 = vector.multi_reduction <maximumf>, %84, %cst_26 [2] : vector<2x8x8xf32> to vector<2x8xf32>
    %86 = vector.shape_cast %85 : vector<2x8xf32> to vector<2x8x1xf32>
    %87 = vector.broadcast %86 : vector<2x8x1xf32> to vector<2x8x8xf32>
    %88 = arith.subf %84, %87 : vector<2x8x8xf32>
    %89 = math.exp %88 : vector<2x8x8xf32>
    %cst_27 = arith.constant dense<0.000000e+00> : vector<2x8xf32>
    %90 = vector.multi_reduction <add>, %89, %cst_27 [2] : vector<2x8x8xf32> to vector<2x8xf32>
    %91 = vector.shape_cast %90 : vector<2x8xf32> to vector<2x8x1xf32>
    %92 = tpu.reciprocal %91 {approx = true} : vector<2x8x1xf32> -> vector<2x8x1xf32>
    %93 = vector.broadcast %92 : vector<2x8x1xf32> to vector<2x8x8xf32>
    %94 = arith.mulf %89, %93 : vector<2x8x8xf32>
    "tpu.trace_start"() <{level = 10 : i32, message = "bls,bsd->bld"}> : () -> ()
    %cst_28 = arith.constant dense<0.000000e+00> : vector<2x8x8xf32>
    %95 = tpu.matmul %94, %81, %cst_28 {dimension_numbers = #tpu.dot_dimension_numbers<[2], [1], [1], [2], [0, 0, 0, 1, 1, 2], [0], [0]>} : vector<2x8x8xf32>, vector<2x8x8xf32>, vector<2x8x8xf32> -> vector<2x8x8xf32>
    "tpu.trace_stop"() : () -> ()
    %96 = vector.shape_cast %95 : vector<2x8x8xf32> to vector<16x8xf32>
    %c0_29 = arith.constant 0 : index
    %c16 = arith.constant 16 : index
    %97 = vector.load %arg13[%c0_29, %c16] : memref<16x32xf32, #tpu.memory_space<vmem>>, vector<16x8xf32>
    tpu.vector_store %arg13[%c0_29, %c16], %96 {strides = array<i32>} : memref<16x32xf32, #tpu.memory_space<vmem>>, vector<16x8xf32>,
    %98 = vector.extract_strided_slice %24 {offsets = [0, 24], sizes = [16, 8], strides = [1, 1]} : vector<16x96xf32> to vector<16x8xf32>
    %99 = vector.shape_cast %98 : vector<16x8xf32> to vector<2x8x8xf32>
    %100 = vector.extract_strided_slice %24 {offsets = [0, 56], sizes = [16, 8], strides = [1, 1]} : vector<16x96xf32> to vector<16x8xf32>
    %101 = vector.shape_cast %100 : vector<16x8xf32> to vector<2x8x8xf32>
    %102 = vector.extract_strided_slice %24 {offsets = [0, 88], sizes = [16, 8], strides = [1, 1]} : vector<16x96xf32> to vector<16x8xf32>
    %103 = vector.shape_cast %102 : vector<16x8xf32> to vector<2x8x8xf32>
    "tpu.trace_start"() <{level = 10 : i32, message = "bld,bsd->bls"}> : () -> ()
    %cst_30 = arith.constant dense<0.000000e+00> : vector<2x8x8xf32>
    %104 = tpu.matmul %99, %101, %cst_30 {dimension_numbers = #tpu.dot_dimension_numbers<[2], [2], [1], [1], [0, 0, 0, 1, 1, 1], [0], [0]>} : vector<2x8x8xf32>, vector<2x8x8xf32>, vector<2x8x8xf32> -> vector<2x8x8xf32>
    "tpu.trace_stop"() : () -> ()
    %105 = vector.broadcast %31 : vector<1x8x8xf32> to vector<2x8x8xf32>
    %106 = arith.addf %104, %105 : vector<2x8x8xf32>
    %cst_31 = arith.constant dense<0xFF800000> : vector<2x8xf32>
    %107 = vector.multi_reduction <maximumf>, %106, %cst_31 [2] : vector<2x8x8xf32> to vector<2x8xf32>
    %108 = vector.shape_cast %107 : vector<2x8xf32> to vector<2x8x1xf32>
    %109 = vector.broadcast %108 : vector<2x8x1xf32> to vector<2x8x8xf32>
    %110 = arith.subf %106, %109 : vector<2x8x8xf32>
    %111 = math.exp %110 : vector<2x8x8xf32>
    %cst_32 = arith.constant dense<0.000000e+00> : vector<2x8xf32>
    %112 = vector.multi_reduction <add>, %111, %cst_32 [2] : vector<2x8x8xf32> to vector<2x8xf32>
    %113 = vector.shape_cast %112 : vector<2x8xf32> to vector<2x8x1xf32>
    %114 = tpu.reciprocal %113 {approx = true} : vector<2x8x1xf32> -> vector<2x8x1xf32>
    %115 = vector.broadcast %114 : vector<2x8x1xf32> to vector<2x8x8xf32>
    %116 = arith.mulf %111, %115 : vector<2x8x8xf32>
    "tpu.trace_start"() <{level = 10 : i32, message = "bls,bsd->bld"}> : () -> ()
    %cst_33 = arith.constant dense<0.000000e+00> : vector<2x8x8xf32>
    %117 = tpu.matmul %116, %103, %cst_33 {dimension_numbers = #tpu.dot_dimension_numbers<[2], [1], [1], [2], [0, 0, 0, 1, 1, 2], [0], [0]>} : vector<2x8x8xf32>, vector<2x8x8xf32>, vector<2x8x8xf32> -> vector<2x8x8xf32>
    "tpu.trace_stop"() : () -> ()
    %118 = vector.shape_cast %117 : vector<2x8x8xf32> to vector<16x8xf32>
    %c0_34 = arith.constant 0 : index
    %c24 = arith.constant 24 : index
    %119 = vector.load %arg13[%c0_34, %c24] : memref<16x32xf32, #tpu.memory_space<vmem>>, vector<16x8xf32>
    tpu.vector_store %arg13[%c0_34, %c24], %118 {strides = array<i32>} : memref<16x32xf32, #tpu.memory_space<vmem>>, vector<16x8xf32>,
    %c0_35 = arith.constant 0 : index
    %c0_36 = arith.constant 0 : index
    %120 = vector.load %arg13[%c0_35, %c0_36] : memref<16x32xf32, #tpu.memory_space<vmem>>, vector<16x32xf32>
    %c0_37 = arith.constant 0 : index
    %c0_38 = arith.constant 0 : index
    %121 = vector.load %arg5[%c0_37, %c0_38] : memref<32x32xf32, #tpu.memory_space<vmem>>, vector<32x32xf32>
    %cst_39 = arith.constant dense<0.000000e+00> : vector<16x32xf32>
    %122 = tpu.matmul %120, %121, %cst_39 {dimension_numbers = #tpu.dot_dimension_numbers<[1], [0], [0], [1], [0, 0, 1, 1], [], []>} : vector<16x32xf32>, vector<32x32xf32>, vector<16x32xf32> -> vector<16x32xf32>
    %123 = arith.addf %22, %122 : vector<16x32xf32>
    %c0_40 = arith.constant 0 : index
    %c0_41 = arith.constant 0 : index
    %124 = vector.load %arg6[%c0_40, %c0_41] : memref<1x32xf32, #tpu.memory_space<vmem>>, vector<1x32xf32>
    %c0_42 = arith.constant 0 : index
    %c0_43 = arith.constant 0 : index
    %125 = vector.load %arg7[%c0_42, %c0_43] : memref<1x32xf32, #tpu.memory_space<vmem>>, vector<1x32xf32>
    %cst_44 = arith.constant dense<0.000000e+00> : vector<16xf32>
    %126 = vector.multi_reduction <add>, %123, %cst_44 [1] : vector<16x32xf32> to vector<16xf32>
    %127 = vector.shape_cast %126 : vector<16xf32> to vector<16x1xf32>
    %cst_45 = arith.constant 3.200000e+01 : f32
    %128 = vector.broadcast %cst_45 : f32 to vector<16x1xf32>
    %129 = arith.divf %127, %128 : vector<16x1xf32>
    %130 = vector.broadcast %129 : vector<16x1xf32> to vector<16x32xf32>
    %131 = arith.subf %123, %130 : vector<16x32xf32>
    %132 = arith.mulf %131, %131 : vector<16x32xf32>
    %cst_46 = arith.constant dense<0.000000e+00> : vector<16xf32>
    %133 = vector.multi_reduction <add>, %132, %cst_46 [1] : vector<16x32xf32> to vector<16xf32>
    %134 = vector.shape_cast %133 : vector<16xf32> to vector<16x1xf32>
    %cst_47 = arith.constant 3.200000e+01 : f32
    %135 = vector.broadcast %cst_47 : f32 to vector<16x1xf32>
    %136 = arith.divf %134, %135 : vector<16x1xf32>
    %cst_48 = arith.constant 9.99999974E-6 : f32
    %137 = vector.broadcast %cst_48 : f32 to vector<16x1xf32>
    %138 = arith.addf %136, %137 : vector<16x1xf32>
    %139 = math.rsqrt %138 : vector<16x1xf32>
    %140 = vector.broadcast %139 : vector<16x1xf32> to vector<16x32xf32>
    %141 = arith.mulf %131, %140 : vector<16x32xf32>
    %142 = vector.broadcast %124 : vector<1x32xf32> to vector<16x32xf32>
    %143 = arith.mulf %141, %142 : vector<16x32xf32>
    %144 = vector.broadcast %125 : vector<1x32xf32> to vector<16x32xf32>
    %145 = arith.addf %143, %144 : vector<16x32xf32>
    %c0_49 = arith.constant 0 : index
    %c0_50 = arith.constant 0 : index
    %146 = vector.load %arg8[%c0_49, %c0_50] : memref<32x128xf32, #tpu.memory_space<vmem>>, vector<32x128xf32>
    %cst_51 = arith.constant dense<0.000000e+00> : vector<16x128xf32>
    %147 = tpu.matmul %145, %146, %cst_51 {dimension_numbers = #tpu.dot_dimension_numbers<[1], [0], [0], [1], [0, 0, 1, 1], [], []>} : vector<16x32xf32>, vector<32x128xf32>, vector<16x128xf32> -> vector<16x128xf32>
    %c0_52 = arith.constant 0 : index
    %c0_53 = arith.constant 0 : index
    %148 = vector.load %arg9[%c0_52, %c0_53] : memref<1x128xf32, #tpu.memory_space<vmem>>, vector<1x128xf32>
    %149 = vector.broadcast %148 : vector<1x128xf32> to vector<16x128xf32>
    %150 = arith.addf %147, %149 : vector<16x128xf32>
    %cst_54 = arith.constant 5.000000e-01 : f32
    %151 = vector.broadcast %cst_54 : f32 to vector<16x128xf32>
    %152 = arith.mulf %151, %150 : vector<16x128xf32>
    %cst_55 = arith.constant 4.471500e-02 : f32
    %153 = vector.broadcast %cst_55 : f32 to vector<16x128xf32>
    %154 = arith.mulf %153, %150 : vector<16x128xf32>
    %155 = arith.mulf %154, %150 : vector<16x128xf32>
    %156 = arith.mulf %155, %150 : vector<16x128xf32>
    %157 = arith.addf %150, %156 : vector<16x128xf32>
    %cst_56 = arith.constant 0.797884583 : f32
    %158 = vector.broadcast %cst_56 : f32 to vector<16x128xf32>
    %159 = arith.mulf %158, %157 : vector<16x128xf32>
    %160 = math.tanh %159 : vector<16x128xf32>
    %cst_57 = arith.constant 1.000000e+00 : f32
    %161 = vector.broadcast %cst_57 : f32 to vector<16x128xf32>
    %162 = arith.addf %161, %160 : vector<16x128xf32>
    %163 = arith.mulf %152, %162 : vector<16x128xf32>
    %c0_58 = arith.constant 0 : index
    %c0_59 = arith.constant 0 : index
    %164 = vector.load %arg10[%c0_58, %c0_59] : memref<128x32xf32, #tpu.memory_space<vmem>>, vector<128x32xf32>
    %cst_60 = arith.constant dense<0.000000e+00> : vector<16x32xf32>
    %165 = tpu.matmul %163, %164, %cst_60 {dimension_numbers = #tpu.dot_dimension_numbers<[1], [0], [0], [1], [0, 0, 1, 1], [], []>} : vector<16x128xf32>, vector<128x32xf32>, vector<16x32xf32> -> vector<16x32xf32>
    %c0_61 = arith.constant 0 : index
    %c0_62 = arith.constant 0 : index
    %166 = vector.load %arg11[%c0_61, %c0_62] : memref<1x32xf32, #tpu.memory_space<vmem>>, vector<1x32xf32>
    %167 = vector.broadcast %166 : vector<1x32xf32> to vector<16x32xf32>
    %168 = arith.addf %165, %167 : vector<16x32xf32>
    %169 = arith.addf %145, %168 : vector<16x32xf32>
    %c0_63 = arith.constant 0 : index
    %c0_64 = arith.constant 0 : index
    %170 = vector.load %arg12[%c0_63, %c0_64] : memref<16x32xf32, #tpu.memory_space<vmem>>, vector<16x32xf32>
    tpu.vector_store %arg12[%c0_63, %c0_64], %169 {strides = array<i32>} : memref<16x32xf32, #tpu.memory_space<vmem>>, vector<16x32xf32>,
    return
  }
  func.func @transform_0(%arg0: i32) -> (i32, i32) {
    %c0_i32 = arith.constant 0 : i32
    %c0_i32_0 = arith.constant 0 : i32
    return %arg0, %c0_i32 : i32, i32
  }
  func.func @transform_1(%arg0: i32) -> (i32, i32) {
    %c0_i32 = arith.constant 0 : i32
    %c0_i32_0 = arith.constant 0 : i32
    %c0_i32_1 = arith.constant 0 : i32
    return %c0_i32, %c0_i32_0 : i32, i32
  }
  func.func @transform_2(%arg0: i32) -> (i32, i32) {
    %c0_i32 = arith.constant 0 : i32
    %c0_i32_0 = arith.constant 0 : i32
    %c0_i32_1 = arith.constant 0 : i32
    return %c0_i32, %c0_i32_0 : i32, i32
  }
  func.func @transform_3(%arg0: i32) -> (i32, i32) {
    %c0_i32 = arith.constant 0 : i32
    %c0_i32_0 = arith.constant 0 : i32
    %c0_i32_1 = arith.constant 0 : i32
    return %c0_i32, %c0_i32_0 : i32, i32
  }
  func.func @transform_4(%arg0: i32) -> (i32, i32) {
    %c0_i32 = arith.constant 0 : i32
    %c0_i32_0 = arith.constant 0 : i32
    %c0_i32_1 = arith.constant 0 : i32
    return %c0_i32, %c0_i32_0 : i32, i32
  }
  func.func @transform_5(%arg0: i32) -> (i32, i32) {
    %c0_i32 = arith.constant 0 : i32
    %c0_i32_0 = arith.constant 0 : i32
    %c0_i32_1 = arith.constant 0 : i32
    return %c0_i32, %c0_i32_0 : i32, i32
  }
  func.func @transform_6(%arg0: i32) -> (i32, i32) {
    %c0_i32 = arith.constant 0 : i32
    %c0_i32_0 = arith.constant 0 : i32
    %c0_i32_1 = arith.constant 0 : i32
    return %c0_i32, %c0_i32_0 : i32, i32
  }
  func.func @transform_7(%arg0: i32) -> (i32, i32) {
    %c0_i32 = arith.constant 0 : i32
    %c0_i32_0 = arith.constant 0 : i32
    %c0_i32_1 = arith.constant 0 : i32
    return %c0_i32, %c0_i32_0 : i32, i32
  }
  func.func @transform_8(%arg0: i32) -> (i32, i32) {
    %c0_i32 = arith.constant 0 : i32
    %c0_i32_0 = arith.constant 0 : i32
    %c0_i32_1 = arith.constant 0 : i32
    return %c0_i32, %c0_i32_0 : i32, i32
  }
  func.func @transform_9(%arg0: i32) -> (i32, i32) {
    %c0_i32 = arith.constant 0 : i32
    %c0_i32_0 = arith.constant 0 : i32
    %c0_i32_1 = arith.constant 0 : i32
    return %c0_i32, %c0_i32_0 : i32, i32
  }
  func.func @transform_10(%arg0: i32) -> (i32, i32) {
    %c0_i32 = arith.constant 0 : i32
    %c0_i32_0 = arith.constant 0 : i32
    %c0_i32_1 = arith.constant 0 : i32
    return %c0_i32, %c0_i32_0 : i32, i32
  }
  func.func @transform_11(%arg0: i32) -> (i32, i32) {
    %c0_i32 = arith.constant 0 : i32
    %c0_i32_0 = arith.constant 0 : i32
    return %arg0, %c0_i32 : i32, i32
  }
}

</mosaic_0001>

<llo_original>
// kernel: tpu_custom_call.1
$region0: #{tpu_custom_call.1}
  #allocation0 [shape = 'u32[]', space=smem, size = 0x4, offset = 0x4, fixed_abs, tag = 'smem constant byte address 0x4 - core index']
  #allocation1 [shape = 'u32[144,128]{1,0:T(1,128)}', space=vmem, size = 0x12000, scoped, tag = 'internal scratch']
  #allocation2 [shape = 'f32[16,32]{1,0:T(8,128)}', space=vmem, size = 0x2000, scoped, tag = 'scratch operand']
  %s0 = inlined_call_operand.hbm [shape: f32[32,32], index: 0, kind: input, shape index: {}]
  %s1 = inlined_call_operand.hbm [shape: f32[1,32], index: 1, kind: input, shape index: {}]
  %s2 = inlined_call_operand.hbm [shape: f32[1,32], index: 2, kind: input, shape index: {}]
  %s3 = inlined_call_operand.hbm [shape: f32[32,96], index: 3, kind: input, shape index: {}]
  %s4 = inlined_call_operand.hbm [shape: f32[32,32], index: 4, kind: input, shape index: {}]
  %s5 = inlined_call_operand.hbm [shape: f32[1,32], index: 5, kind: input, shape index: {}]
  %s6 = inlined_call_operand.hbm [shape: f32[1,32], index: 6, kind: input, shape index: {}]
  %s7 = inlined_call_operand.hbm [shape: f32[32,128], index: 7, kind: input, shape index: {}]
  %s8 = inlined_call_operand.hbm [shape: f32[1,128], index: 8, kind: input, shape index: {}]
  %s9 = inlined_call_operand.hbm [shape: f32[128,32], index: 9, kind: input, shape index: {}]
  %s10 = inlined_call_operand.hbm [shape: f32[1,32], index: 10, kind: input, shape index: {}]
  %s11 = inlined_call_operand.hbm [shape: f32[32,32], index: 11, kind: output, shape index: {}]
  %s12 = sld [smem:[#allocation0]]
  $region121: #{tpu_custom_call.1} parent=0
    _
  %s14 = ssub.s32 1, %s12
  %s15 = scalar_select 0, %s14, %s12
  $region1: #{tpu_custom_call.1} parent=0
    #allocation3 [shape = 'u8[16384]{0}', space=vmem, size = 0x4000, scoped, tag = 'input window, operand 0']
    #allocation4 [shape = 's32[2]{0}', space=sflag, size = 0x8, scoped, tag = 'scoped memory for tpu_custom_call.1']
    #allocation5 [shape = 's32[2]{0}', space=sflag, size = 0x8, scoped, tag = 'scoped memory for tpu_custom_call.1']
    #allocation6 [shape = 'u8[512]{0}', space=vmem, size = 0x400, scoped, tag = 'input window, operand 1, single buffered']
    #allocation7 [shape = 's32[1]{0}', space=sflag, size = 0x4, scoped, tag = 'scoped memory for tpu_custom_call.1']
    #allocation8 [shape = 'u8[512]{0}', space=vmem, size = 0x400, scoped, tag = 'input window, operand 2, single buffered']
    #allocation9 [shape = 'u8[16384]{0}', space=vmem, size = 0x4000, scoped, tag = 'input window, operand 3, single buffered']
    #allocation10 [shape = 's32[1]{0}', space=sflag, size = 0x4, scoped, tag = 'scoped memory for tpu_custom_call.1']
    #allocation11 [shape = 'u8[16384]{0}', space=vmem, size = 0x4000, scoped, tag = 'input window, operand 4, single buffered']
    #allocation12 [shape = 'u8[512]{0}', space=vmem, size = 0x400, scoped, tag = 'input window, operand 5, single buffered']
    #allocation13 [shape = 's32[1]{0}', space=sflag, size = 0x4, scoped, tag = 'scoped memory for tpu_custom_call.1']
    #allocation14 [shape = 'u8[512]{0}', space=vmem, size = 0x400, scoped, tag = 'input window, operand 6, single buffered']
    #allocation15 [shape = 'u8[16384]{0}', space=vmem, size = 0x4000, scoped, tag = 'input window, operand 7, single buffered']
    #allocation16 [shape = 's32[1]{0}', space=sflag, size = 0x4, scoped, tag = 'scoped memory for tpu_custom_call.1']
    #allocation17 [shape = 'u8[512]{0}', space=vmem, size = 0x400, scoped, tag = 'input window, operand 8, single buffered']
    #allocation18 [shape = 'u8[65536]{0}', space=vmem, size = 0x10000, scoped, tag = 'input window, operand 9, single buffered']
    #allocation19 [shape = 's32[1]{0}', space=sflag, size = 0x4, scoped, tag = 'scoped memory for tpu_custom_call.1']
    #allocation20 [shape = 'u8[512]{0}', space=vmem, size = 0x400, scoped, tag = 'input window, operand 10, single buffered']
    #allocation21 [shape = 'u8[16384]{0}', space=vmem, size = 0x4000, scoped, tag = 'output window, operand 0']
    %16 = vsyncpa [#allocation4], 0
    %s17 = scalar_lea.sflag [#allocation4], 1
    %18 = vsyncpa %s17, 0
    %19 = vsyncpa [#allocation7], 0
    %20 = vsyncpa [#allocation10], 0
    %21 = vsyncpa [#allocation13], 0
    %22 = vsyncpa [#allocation16], 0
    %23 = vsyncpa [#allocation19], 0
    %24 = vsyncpa [#allocation5], 0
    %s25 = scalar_lea.sflag [#allocation5], 1
    %26 = vsyncpa %s25, 0
    loop: start=0, step=1, limit=4
    $region2: #{tpu_custom_call.1} parent=1 // loop_pre_header
      _
    $region3: #{tpu_custom_call.1} parent=1 // loop_header
      %s28 = sphi 0, %s32
      %p29 = scmp.ge.s32.totalorder %s28, 4
      %s38 = sphi 0, %s40
      %s41 = sphi 0, %s38
      %s42 = sphi 0, %s41
      %s58 = sphi 0, %s42
      %s62 = sphi 0, %s62
      %s64 = sphi 0, %s62
      %s65 = sphi 0, %s64
      %s79 = sphi 0, %s65
      %s83 = sphi 0, %s83
      %s85 = sphi 0, %s83
      %s86 = sphi 0, %s85
      %s100 = sphi 0, %s86
      %s104 = sphi 0, %s104
      %s106 = sphi 0, %s104
      %s107 = sphi 0, %s106
      %s121 = sphi 0, %s107
      %s125 = sphi 0, %s125
      %s127 = sphi 0, %s125
      %s128 = sphi 0, %s127
      %s142 = sphi 0, %s128
      %s146 = sphi 0, %s146
      %s148 = sphi 0, %s146
      %s149 = sphi 0, %s148
      %s163 = sphi 0, %s149
      %s167 = sphi 0, %s167
      %s169 = sphi 0, %s167
      %s170 = sphi 0, %s169
      %s184 = sphi 0, %s170
      %s188 = sphi 0, %s188
      %s190 = sphi 0, %s188
      %s191 = sphi 0, %s190
      %s205 = sphi 0, %s191
      %s209 = sphi 0, %s209
      %s211 = sphi 0, %s209
      %s212 = sphi 0, %s211
      %s226 = sphi 0, %s212
      %s230 = sphi 0, %s230
      %s232 = sphi 0, %s230
      %s233 = sphi 0, %s232
      %s247 = sphi 0, %s233
      %s251 = sphi 0, %s251
      %s253 = sphi 0, %s251
      %s254 = sphi 0, %s253
      %s268 = sphi 0, %s254
      %s274 = sphi 0, %s276
      %s277 = sphi 0, %s274
      %s278 = sphi 0, %s277
      %s294 = sphi 0, %s278
    $region4: #{tpu_custom_call.1} parent=1 // loop_header_branch
      %31 = sbr.rel (%p29) target = $region8
    $region5: #{tpu_custom_call.1} parent=1 // loop_body
      %s33 = ssub.s32 %s28, 1
      %s34 = ssub.s32 %s28, 2
      %s35 = sadd.s32 %s28, 1
      %s36 = ssub.s32 %s28, %s35
      %p37 = scmp.eq.s32.totalorder %s36, 0
      %s39 = sadd.s32 %s38, 1
      %s40 = scalar_select %p37, %s38, %s39
      %p43 = pneg %p37
      %p44 = scmp.eq.s32.totalorder %s28, 1
      %p45 = por %p43, %p44
      %p46 = scmp.ne.s32.totalorder %s38, %s41
      %p47 = scmp.eq.s32.totalorder %s28, 0
      %p48 = por %p46, %p47
      %p49 = scmp.ne.s32.totalorder %s38, %s41
      %p50 = scmp.eq.s32.totalorder %s33, 1
      %p51 = por %p49, %p50
      %p52 = scmp.ne.s32.totalorder %s41, %s42
      %p53 = scmp.eq.s32.totalorder %s33, 0
      %p54 = por %p52, %p53
      %p55 = scmp.ne.s32.totalorder %s41, %s42
      %p56 = scmp.eq.s32.totalorder %s34, 1
      %p57 = por %p55, %p56
      %p59 = scmp.ne.s32.totalorder %s42, %s58
      %p60 = scmp.eq.s32.totalorder %s34, 0
      %p61 = por %p59, %p60
      %s63 = sadd.s32 %s62, 1
      %p66 = scmp.eq.s32.totalorder %s28, 1
      %p67 = scmp.ne.s32.totalorder %s62, %s64
      %p68 = scmp.eq.s32.totalorder %s28, 0
      %p69 = por %p67, %p68
      %p70 = scmp.ne.s32.totalorder %s62, %s64
      %p71 = scmp.eq.s32.totalorder %s33, 1
      %p72 = por %p70, %p71
      %p73 = scmp.ne.s32.totalorder %s64, %s65
      %p74 = scmp.eq.s32.totalorder %s33, 0
      %p75 = por %p73, %p74
      %p76 = scmp.ne.s32.totalorder %s64, %s65
      %p77 = scmp.eq.s32.totalorder %s34, 1
      %p78 = por %p76, %p77
      %p80 = scmp.ne.s32.totalorder %s65, %s79
      %p81 = scmp.eq.s32.totalorder %s34, 0
      %p82 = por %p80, %p81
      %s84 = sadd.s32 %s83, 1
      %p87 = scmp.eq.s32.totalorder %s28, 1
      %p88 = scmp.ne.s32.totalorder %s83, %s85
      %p89 = scmp.eq.s32.totalorder %s28, 0
      %p90 = por %p88, %p89
      %p91 = scmp.ne.s32.totalorder %s83, %s85
      %p92 = scmp.eq.s32.totalorder %s33, 1
      %p93 = por %p91, %p92
      %p94 = scmp.ne.s32.totalorder %s85, %s86
      %p95 = scmp.eq.s32.totalorder %s33, 0
      %p96 = por %p94, %p95
      %p97 = scmp.ne.s32.totalorder %s85, %s86
      %p98 = scmp.eq.s32.totalorder %s34, 1
      %p99 = por %p97, %p98
      %p101 = scmp.ne.s32.totalorder %s86, %s100
      %p102 = scmp.eq.s32.totalorder %s34, 0
      %p103 = por %p101, %p102
      %s105 = sadd.s32 %s104, 1
      %p108 = scmp.eq.s32.totalorder %s28, 1
      %p109 = scmp.ne.s32.totalorder %s104, %s106
      %p110 = scmp.eq.s32.totalorder %s28, 0
      %p111 = por %p109, %p110
      %p112 = scmp.ne.s32.totalorder %s104, %s106
      %p113 = scmp.eq.s32.totalorder %s33, 1
      %p114 = por %p112, %p113
      %p115 = scmp.ne.s32.totalorder %s106, %s107
      %p116 = scmp.eq.s32.totalorder %s33, 0
      %p117 = por %p115, %p116
      %p118 = scmp.ne.s32.totalorder %s106, %s107
      %p119 = scmp.eq.s32.totalorder %s34, 1
      %p120 = por %p118, %p119
      %p122 = scmp.ne.s32.totalorder %s107, %s121
      %p123 = scmp.eq.s32.totalorder %s34, 0
      %p124 = por %p122, %p123
      %s126 = sadd.s32 %s125, 1
      %p129 = scmp.eq.s32.totalorder %s28, 1
      %p130 = scmp.ne.s32.totalorder %s125, %s127
      %p131 = scmp.eq.s32.totalorder %s28, 0
      %p132 = por %p130, %p131
      %p133 = scmp.ne.s32.totalorder %s125, %s127
      %p134 = scmp.eq.s32.totalorder %s33, 1
      %p135 = por %p133, %p134
      %p136 = scmp.ne.s32.totalorder %s127, %s128
      %p137 = scmp.eq.s32.totalorder %s33, 0
      %p138 = por %p136, %p137
      %p139 = scmp.ne.s32.totalorder %s127, %s128
      %p140 = scmp.eq.s32.totalorder %s34, 1
      %p141 = por %p139, %p140
      %p143 = scmp.ne.s32.totalorder %s128, %s142
      %p144 = scmp.eq.s32.totalorder %s34, 0
      %p145 = por %p143, %p144
      %s147 = sadd.s32 %s146, 1
      %p150 = scmp.eq.s32.totalorder %s28, 1
      %p151 = scmp.ne.s32.totalorder %s146, %s148
      %p152 = scmp.eq.s32.totalorder %s28, 0
      %p153 = por %p151, %p152
      %p154 = scmp.ne.s32.totalorder %s146, %s148
      %p155 = scmp.eq.s32.totalorder %s33, 1
      %p156 = por %p154, %p155
      %p157 = scmp.ne.s32.totalorder %s148, %s149
      %p158 = scmp.eq.s32.totalorder %s33, 0
      %p159 = por %p157, %p158
      %p160 = scmp.ne.s32.totalorder %s148, %s149
      %p161 = scmp.eq.s32.totalorder %s34, 1
      %p162 = por %p160, %p161
      %p164 = scmp.ne.s32.totalorder %s149, %s163
      %p165 = scmp.eq.s32.totalorder %s34, 0
      %p166 = por %p164, %p165
      %s168 = sadd.s32 %s167, 1
      %p171 = scmp.eq.s32.totalorder %s28, 1
      %p172 = scmp.ne.s32.totalorder %s167, %s169
      %p173 = scmp.eq.s32.totalorder %s28, 0
      %p174 = por %p172, %p173
      %p175 = scmp.ne.s32.totalorder %s167, %s169
      %p176 = scmp.eq.s32.totalorder %s33, 1
      %p177 = por %p175, %p176
      %p178 = scmp.ne.s32.totalorder %s169, %s170
      %p179 = scmp.eq.s32.totalorder %s33, 0
      %p180 = por %p178, %p179
      %p181 = scmp.ne.s32.totalorder %s169, %s170
      %p182 = scmp.eq.s32.totalorder %s34, 1
      %p183 = por %p181, %p182
      %p185 = scmp.ne.s32.totalorder %s170, %s184
      %p186 = scmp.eq.s32.totalorder %s34, 0
      %p187 = por %p185, %p186
      %s189 = sadd.s32 %s188, 1
      %p192 = scmp.eq.s32.totalorder %s28, 1
      %p193 = scmp.ne.s32.totalorder %s188, %s190
      %p194 = scmp.eq.s32.totalorder %s28, 0
      %p195 = por %p193, %p194
      %p196 = scmp.ne.s32.totalorder %s188, %s190
      %p197 = scmp.eq.s32.totalorder %s33, 1
      %p198 = por %p196, %p197
      %p199 = scmp.ne.s32.totalorder %s190, %s191
      %p200 = scmp.eq.s32.totalorder %s33, 0
      %p201 = por %p199, %p200
      %p202 = scmp.ne.s32.totalorder %s190, %s191
      %p203 = scmp.eq.s32.totalorder %s34, 1
      %p204 = por %p202, %p203
      %p206 = scmp.ne.s32.totalorder %s191, %s205
      %p207 = scmp.eq.s32.totalorder %s34, 0
      %p208 = por %p206, %p207
      %s210 = sadd.s32 %s209, 1
      %p213 = scmp.eq.s32.totalorder %s28, 1
      %p214 = scmp.ne.s32.totalorder %s209, %s211
      %p215 = scmp.eq.s32.totalorder %s28, 0
      %p216 = por %p214, %p215
      %p217 = scmp.ne.s32.totalorder %s209, %s211
      %p218 = scmp.eq.s32.totalorder %s33, 1
      %p219 = por %p217, %p218
      %p220 = scmp.ne.s32.totalorder %s211, %s212
      %p221 = scmp.eq.s32.totalorder %s33, 0
      %p222 = por %p220, %p221
      %p223 = scmp.ne.s32.totalorder %s211, %s212
      %p224 = scmp.eq.s32.totalorder %s34, 1
      %p225 = por %p223, %p224
      %p227 = scmp.ne.s32.totalorder %s212, %s226
      %p228 = scmp.eq.s32.totalorder %s34, 0
      %p229 = por %p227, %p228
      %s231 = sadd.s32 %s230, 1
      %p234 = scmp.eq.s32.totalorder %s28, 1
      %p235 = scmp.ne.s32.totalorder %s230, %s232
      %p236 = scmp.eq.s32.totalorder %s28, 0
      %p237 = por %p235, %p236
      %p238 = scmp.ne.s32.totalorder %s230, %s232
      %p239 = scmp.eq.s32.totalorder %s33, 1
      %p240 = por %p238, %p239
      %p241 = scmp.ne.s32.totalorder %s232, %s233
      %p242 = scmp.eq.s32.totalorder %s33, 0
      %p243 = por %p241, %p242
      %p244 = scmp.ne.s32.totalorder %s232, %s233
      %p245 = scmp.eq.s32.totalorder %s34, 1
      %p246 = por %p244, %p245
      %p248 = scmp.ne.s32.totalorder %s233, %s247
      %p249 = scmp.eq.s32.totalorder %s34, 0
      %p250 = por %p248, %p249
      %s252 = sadd.s32 %s251, 1
      %p255 = scmp.eq.s32.totalorder %s28, 1
      %p256 = scmp.ne.s32.totalorder %s251, %s253
      %p257 = scmp.eq.s32.totalorder %s28, 0
      %p258 = por %p256, %p257
      %p259 = scmp.ne.s32.totalorder %s251, %s253
      %p260 = scmp.eq.s32.totalorder %s33, 1
      %p261 = por %p259, %p260
      %p262 = scmp.ne.s32.totalorder %s253, %s254
      %p263 = scmp.eq.s32.totalorder %s33, 0
      %p264 = por %p262, %p263
      %p265 = scmp.ne.s32.totalorder %s253, %s254
      %p266 = scmp.eq.s32.totalorder %s34, 1
      %p267 = por %p265, %p266
      %p269 = scmp.ne.s32.totalorder %s254, %s268
      %p270 = scmp.eq.s32.totalorder %s34, 0
      %p271 = por %p269, %p270
      %s272 = ssub.s32 %s28, %s35
      %p273 = scmp.eq.s32.totalorder %s272, 0
      %s275 = sadd.s32 %s274, 1
      %s276 = scalar_select %p273, %s274, %s275
      %p279 = pneg %p273
      %p280 = scmp.eq.s32.totalorder %s28, 1
      %p281 = por %p279, %p280
      %p282 = scmp.ne.s32.totalorder %s274, %s277
      %p283 = scmp.eq.s32.totalorder %s28, 0
      %p284 = por %p282, %p283
      %p285 = scmp.ne.s32.totalorder %s274, %s277
      %p286 = scmp.eq.s32.totalorder %s33, 1
      %p287 = por %p285, %p286
      %p288 = scmp.ne.s32.totalorder %s277, %s278
      %p289 = scmp.eq.s32.totalorder %s33, 0
      %p290 = por %p288, %p289
      %p291 = scmp.ne.s32.totalorder %s277, %s278
      %p292 = scmp.eq.s32.totalorder %s34, 1
      %p293 = por %p291, %p292
      %p295 = scmp.ne.s32.totalorder %s278, %s294
      %p296 = scmp.eq.s32.totalorder %s34, 0
      %p297 = por %p295, %p296
      %p298 = scmp.le.s32.totalorder 1, %s28
      %p299 = scmp.lt.s32.totalorder %s28, 3
      %p300 = pnand %p298, %p299
      %p301 = pneg %p300
      // Predicated region
      $region9: #{tpu_custom_call.1} parent=5 // pred_check
        _
      $region10: #{tpu_custom_call.1} parent=5 // pred_check_branch
        %303 = sbr.rel (%p300) target = $region12
      $region11: #{tpu_custom_call.1} parent=5 // pred_region
        %s304 = ssub.s32 %s28, 1
        // Predicated region
        $region13: #{tpu_custom_call.1} parent=11 // pred_check
          %p305 = pneg %p75
        $region14: #{tpu_custom_call.1} parent=11 // pred_check_branch
          %307 = sbr.rel (%p305) target = $region16
        $region15: #{tpu_custom_call.1} parent=11 // pred_region
          %s309 = ssub.s32 16, 16
          %310 = vsyncadd [#allocation7], %s309
          %s312 = sshll.u32 [#allocation6], 4
          %s313 = int_to_ptr.vmem [resolvable:$true] %s312
          %315 = dma.hbm_to_vmem [thread:$0]  %s1, 16, %s313, [#allocation7]
        $region16: #{tpu_custom_call.1} parent=11 // pred_fallthru
          _
        // Predicated region
        $region17: #{tpu_custom_call.1} parent=11 // pred_check
          %p316 = pneg %p96
        $region18: #{tpu_custom_call.1} parent=11 // pred_check_branch
          %318 = sbr.rel (%p316) target = $region20
        $region19: #{tpu_custom_call.1} parent=11 // pred_region
          %s320 = ssub.s32 16, 16
          %321 = vsyncadd [#allocation7], %s320
          %s323 = sshll.u32 [#allocation8], 4
          %s324 = int_to_ptr.vmem [resolvable:$true] %s323
          %326 = dma.hbm_to_vmem [thread:$0]  %s2, 16, %s324, [#allocation7]
        $region20: #{tpu_custom_call.1} parent=11 // pred_fallthru
          _
        // Predicated region
        $region21: #{tpu_custom_call.1} parent=11 // pred_check
          %p327 = pneg %p117
        $region22: #{tpu_custom_call.1} parent=11 // pred_check_branch
          %329 = sbr.rel (%p327) target = $region24
        $region23: #{tpu_custom_call.1} parent=11 // pred_region
          %s331 = ssub.s32 512, 512
          %332 = vsyncadd [#allocation10], %s331
          %s333 = sshll.u32 [#allocation9], 4
          %s334 = int_to_ptr.vmem [resolvable:$true] %s333
          %339 = dma.hbm_to_vmem [thread:$0]  %s3, 512, %s334, [#allocation10], 128, 128, 8
        $region24: #{tpu_custom_call.1} parent=11 // pred_fallthru
          _
        // Predicated region
        $region25: #{tpu_custom_call.1} parent=11 // pred_check
          %p340 = pneg %p138
        $region26: #{tpu_custom_call.1} parent=11 // pred_check_branch
          %342 = sbr.rel (%p340) target = $region28
        $region27: #{tpu_custom_call.1} parent=11 // pred_region
          %s344 = ssub.s32 512, 512
          %345 = vsyncadd [#allocation10], %s344
          %s346 = sshll.u32 [#allocation11], 4
          %s347 = int_to_ptr.vmem [resolvable:$true] %s346
          %352 = dma.hbm_to_vmem [thread:$0]  %s4, 512, %s347, [#allocation10], 128, 128, 8
        $region28: #{tpu_custom_call.1} parent=11 // pred_fallthru
          _
        // Predicated region
        $region29: #{tpu_custom_call.1} parent=11 // pred_check
          %p353 = pneg %p159
        $region30: #{tpu_custom_call.1} parent=11 // pred_check_branch
          %355 = sbr.rel (%p353) target = $region32
        $region31: #{tpu_custom_call.1} parent=11 // pred_region
          %s357 = ssub.s32 16, 16
          %358 = vsyncadd [#allocation13], %s357
          %s360 = sshll.u32 [#allocation12], 4
          %s361 = int_to_ptr.vmem [resolvable:$true] %s360
          %363 = dma.hbm_to_vmem [thread:$0]  %s5, 16, %s361, [#allocation13]
        $region32: #{tpu_custom_call.1} parent=11 // pred_fallthru
          _
        // Predicated region
        $region33: #{tpu_custom_call.1} parent=11 // pred_check
          %p364 = pneg %p180
        $region34: #{tpu_custom_call.1} parent=11 // pred_check_branch
          %366 = sbr.rel (%p364) target = $region36
        $region35: #{tpu_custom_call.1} parent=11 // pred_region
          %s368 = ssub.s32 16, 16
          %369 = vsyncadd [#allocation13], %s368
          %s371 = sshll.u32 [#allocation14], 4
          %s372 = int_to_ptr.vmem [resolvable:$true] %s371
          %374 = dma.hbm_to_vmem [thread:$0]  %s6, 16, %s372, [#allocation13]
        $region36: #{tpu_custom_call.1} parent=11 // pred_fallthru
          _
        // Predicated region
        $region37: #{tpu_custom_call.1} parent=11 // pred_check
          %p375 = pneg %p201
        $region38: #{tpu_custom_call.1} parent=11 // pred_check_branch
          %377 = sbr.rel (%p375) target = $region40
        $region39: #{tpu_custom_call.1} parent=11 // pred_region
          %s379 = ssub.s32 512, 512
          %380 = vsyncadd [#allocation16], %s379
          %s381 = sshll.u32 [#allocation15], 4
          %s382 = int_to_ptr.vmem [resolvable:$true] %s381
          %387 = dma.hbm_to_vmem [thread:$0]  %s7, 512, %s382, [#allocation16], 128, 128, 8
        $region40: #{tpu_custom_call.1} parent=11 // pred_fallthru
          _
        // Predicated region
        $region41: #{tpu_custom_call.1} parent=11 // pred_check
          %p388 = pneg %p222
        $region42: #{tpu_custom_call.1} parent=11 // pred_check_branch
          %390 = sbr.rel (%p388) target = $region44
        $region43: #{tpu_custom_call.1} parent=11 // pred_region
          %s392 = ssub.s32 16, 16
          %393 = vsyncadd [#allocation16], %s392
          %s395 = sshll.u32 [#allocation17], 4
          %s396 = int_to_ptr.vmem [resolvable:$true] %s395
          %398 = dma.hbm_to_vmem [thread:$0]  %s8, 16, %s396, [#allocation16]
        $region44: #{tpu_custom_call.1} parent=11 // pred_fallthru
          _
        // Predicated region
        $region45: #{tpu_custom_call.1} parent=11 // pred_check
          %p399 = pneg %p243
        $region46: #{tpu_custom_call.1} parent=11 // pred_check_branch
          %401 = sbr.rel (%p399) target = $region48
        $region47: #{tpu_custom_call.1} parent=11 // pred_region
          %s403 = ssub.s32 2048, 2048
          %404 = vsyncadd [#allocation19], %s403
          %s405 = sshll.u32 [#allocation18], 4
          %s406 = int_to_ptr.vmem [resolvable:$true] %s405
          %411 = dma.hbm_to_vmem [thread:$0]  %s9, 2048, %s406, [#allocation19], 128, 128, 8
        $region48: #{tpu_custom_call.1} parent=11 // pred_fallthru
          _
        // Predicated region
        $region49: #{tpu_custom_call.1} parent=11 // pred_check
          %p412 = pneg %p264
        $region50: #{tpu_custom_call.1} parent=11 // pred_check_branch
          %414 = sbr.rel (%p412) target = $region52
        $region51: #{tpu_custom_call.1} parent=11 // pred_region
          %s416 = ssub.s32 16, 16
          %417 = vsyncadd [#allocation19], %s416
          %s419 = sshll.u32 [#allocation20], 4
          %s420 = int_to_ptr.vmem [resolvable:$true] %s419
          %422 = dma.hbm_to_vmem [thread:$0]  %s10, 16, %s420, [#allocation19]
        $region52: #{tpu_custom_call.1} parent=11 // pred_fallthru
          _
      $region12: #{tpu_custom_call.1} parent=5 // pred_fallthru
        _
      %p423 = scmp.lt.s32.totalorder %s28, 2
      // Predicated region
      $region53: #{tpu_custom_call.1} parent=5 // pred_check
        %p424 = pneg %p423
      $region54: #{tpu_custom_call.1} parent=5 // pred_check_branch
        %426 = sbr.rel (%p424) target = $region56
      $region55: #{tpu_custom_call.1} parent=5 // pred_region
        // Predicated region
        $region57: #{tpu_custom_call.1} parent=55 // pred_check
          %p427 = pneg %p48
        $region58: #{tpu_custom_call.1} parent=55 // pred_check_branch
          %429 = sbr.rel (%p427) target = $region60
        $region59: #{tpu_custom_call.1} parent=55 // pred_region
          %s430 = sand.u32 %s38, 1
          %s431 = scalar_lea.sflag [#allocation4], %s430
          %s432 = sand.u32 %s38, 1
          %s433 = smul.addr %s432, 16
          %s434 = scalar_lea.vmem [#allocation3], %s433
          %s435 = smul.u32 2, %s28
          %s437 = ssub.s32 256, 256
          %438 = vsyncadd %s431, %s437
          %s439 = smul.addr %s435, 128
          %s440 = scalar_lea.hbm %s0, %s439
          %s441 = sshll.u32 %s434, 4
          %s442 = int_to_ptr.vmem [resolvable:$true] %s441
          %447 = dma.hbm_to_vmem [thread:$0]  %s440, 256, %s442, %s431, 128, 128, 8
        $region60: #{tpu_custom_call.1} parent=55 // pred_fallthru
          _
      $region56: #{tpu_custom_call.1} parent=5 // pred_fallthru
        _
      %p448 = scmp.le.s32.totalorder 1, %s28
      %p449 = scmp.lt.s32.totalorder %s28, 3
      %p450 = pnand %p448, %p449
      %p451 = pneg %p450
      // Predicated region
      $region61: #{tpu_custom_call.1} parent=5 // pred_check
        _
      $region62: #{tpu_custom_call.1} parent=5 // pred_check_branch
        %453 = sbr.rel (%p450) target = $region64
      $region63: #{tpu_custom_call.1} parent=5 // pred_region
        %s454 = ssub.s32 %s28, 1
        %s455 = sand.u32 %s41, 1
        %s456 = scalar_lea.sflag [#allocation4], %s455
        %s457 = sand.u32 %s41, 1
        %s458 = smul.addr %s457, 16
        %s459 = scalar_lea.vmem [#allocation3], %s458
        // Predicated region
        $region65: #{tpu_custom_call.1} parent=63 // pred_check
          %p460 = pneg %p54
        $region66: #{tpu_custom_call.1} parent=63 // pred_check_branch
          %462 = sbr.rel (%p460) target = $region68
        $region67: #{tpu_custom_call.1} parent=63 // pred_region
          %463 = dma.done %s456, 256
        $region68: #{tpu_custom_call.1} parent=63 // pred_fallthru
          _
        // Predicated region
        $region69: #{tpu_custom_call.1} parent=63 // pred_check
          %p464 = pneg %p75
        $region70: #{tpu_custom_call.1} parent=63 // pred_check_branch
          %466 = sbr.rel (%p464) target = $region72
        $region71: #{tpu_custom_call.1} parent=63 // pred_region
          %467 = dma.done [#allocation7], 16
        $region72: #{tpu_custom_call.1} parent=63 // pred_fallthru
          _
        // Predicated region
        $region73: #{tpu_custom_call.1} parent=63 // pred_check
          %p468 = pneg %p96
        $region74: #{tpu_custom_call.1} parent=63 // pred_check_branch
          %470 = sbr.rel (%p468) target = $region76
        $region75: #{tpu_custom_call.1} parent=63 // pred_region
          %471 = dma.done [#allocation7], 16
        $region76: #{tpu_custom_call.1} parent=63 // pred_fallthru
          _
        // Predicated region
        $region77: #{tpu_custom_call.1} parent=63 // pred_check
          %p472 = pneg %p117
        $region78: #{tpu_custom_call.1} parent=63 // pred_check_branch
          %474 = sbr.rel (%p472) target = $region80
        $region79: #{tpu_custom_call.1} parent=63 // pred_region
          %475 = dma.done [#allocation10], 512
        $region80: #{tpu_custom_call.1} parent=63 // pred_fallthru
          _
        // Predicated region
        $region81: #{tpu_custom_call.1} parent=63 // pred_check
          %p476 = pneg %p138
        $region82: #{tpu_custom_call.1} parent=63 // pred_check_branch
          %478 = sbr.rel (%p476) target = $region84
        $region83: #{tpu_custom_call.1} parent=63 // pred_region
          %479 = dma.done [#allocation10], 512
        $region84: #{tpu_custom_call.1} parent=63 // pred_fallthru
          _
        // Predicated region
        $region85: #{tpu_custom_call.1} parent=63 // pred_check
          %p480 = pneg %p159
        $region86: #{tpu_custom_call.1} parent=63 // pred_check_branch
          %482 = sbr.rel (%p480) target = $region88
        $region87: #{tpu_custom_call.1} parent=63 // pred_region
          %483 = dma.done [#allocation13], 16
        $region88: #{tpu_custom_call.1} parent=63 // pred_fallthru
          _
        // Predicated region
        $region89: #{tpu_custom_call.1} parent=63 // pred_check
          %p484 = pneg %p180
        $region90: #{tpu_custom_call.1} parent=63 // pred_check_branch
          %486 = sbr.rel (%p484) target = $region92
        $region91: #{tpu_custom_call.1} parent=63 // pred_region
          %487 = dma.done [#allocation13], 16
        $region92: #{tpu_custom_call.1} parent=63 // pred_fallthru
          _
        // Predicated region
        $region93: #{tpu_custom_call.1} parent=63 // pred_check
          %p488 = pneg %p201
        $region94: #{tpu_custom_call.1} parent=63 // pred_check_branch
          %490 = sbr.rel (%p488) target = $region96
        $region95: #{tpu_custom_call.1} parent=63 // pred_region
          %491 = dma.done [#allocation16], 512
        $region96: #{tpu_custom_call.1} parent=63 // pred_fallthru
          _
        // Predicated region
        $region97: #{tpu_custom_call.1} parent=63 // pred_check
          %p492 = pneg %p222
        $region98: #{tpu_custom_call.1} parent=63 // pred_check_branch
          %494 = sbr.rel (%p492) target = $region100
        $region99: #{tpu_custom_call.1} parent=63 // pred_region
          %495 = dma.done [#allocation16], 16
        $region100: #{tpu_custom_call.1} parent=63 // pred_fallthru
          _
        // Predicated region
        $region101: #{tpu_custom_call.1} parent=63 // pred_check
          %p496 = pneg %p243
        $region102: #{tpu_custom_call.1} parent=63 // pred_check_branch
          %498 = sbr.rel (%p496) target = $region104
        $region103: #{tpu_custom_call.1} parent=63 // pred_region
          %499 = dma.done [#allocation19], 2048
        $region104: #{tpu_custom_call.1} parent=63 // pred_fallthru
          _
        // Predicated region
        $region105: #{tpu_custom_call.1} parent=63 // pred_check
          %p500 = pneg %p264
        $region106: #{tpu_custom_call.1} parent=63 // pred_check_branch
          %502 = sbr.rel (%p500) target = $region108
        $region107: #{tpu_custom_call.1} parent=63 // pred_region
          %503 = dma.done [#allocation19], 16
        $region108: #{tpu_custom_call.1} parent=63 // pred_fallthru
          _
        %s504 = sand.u32 %s41, 1
        %s505 = scalar_lea.sflag [#allocation4], %s504
        %s506 = sand.u32 %s41, 1
        %s507 = smul.addr %s506, 16
        %s508 = scalar_lea.vmem [#allocation3], %s507
        %p509 = pneg %p54
        %p510 = pneg %p51
        %p511 = pneg %p75
        %p512 = pneg %p72
        %p513 = pneg %p96
        %p514 = pneg %p93
        %p515 = pneg %p117
        %p516 = pneg %p114
        %p517 = pneg %p138
        %p518 = pneg %p135
        %p519 = pneg %p159
        %p520 = pneg %p156
        %p521 = pneg %p180
        %p522 = pneg %p177
        %p523 = pneg %p201
        %p524 = pneg %p198
        %p525 = pneg %p222
        %p526 = pneg %p219
        %p527 = pneg %p243
        %p528 = pneg %p240
        %p529 = pneg %p264
        %p530 = pneg %p261
        %p531 = pneg %p290
        %p532 = pneg %p287
        %s533 = sand.u32 %s277, 1
        %s534 = scalar_lea.sflag [#allocation5], %s533
        %s535 = sand.u32 %s277, 1
        %s536 = smul.addr %s535, 16
        %s537 = scalar_lea.vmem [#allocation21], %s536
        %s538 = smul.u32 2, %s33
        %s539 = smul.u32 2, %s33
        %v540 = vld [vmem:[%s459] sm:$0xff]
        %v541 = vld [vmem:[%s459 + $0x8] sm:$0xff]
        %v542 = vld [vmem:[#allocation6] sm:$0x1]
        %v543 = vld [vmem:[#allocation8] sm:$0x1]
        %vm544 = vcmask 261120
        %v545 = vsel %vm544, %v540, 0.0
        %546 = vadd.xlane.f32.xlu0 %v545
        %v547 = vpop.xlane.xlu0 %546
        %v548 = vsel %vm544, %v541, 0.0
        %549 = vadd.xlane.f32.xlu0 %v548
        %v550 = vpop.xlane.xlu0 %549
        %v551 = vrcp.pop 32.0
        %v552 = vmul.f32 %v547, %v551
        %v553 = vmul.f32 %v550, %v551
        %v554 = vsub.f32 %v540, %v552
        %v555 = vsub.f32 %v541, %v553
        %v556 = vmul.f32 %v554, %v554
        %v557 = vmul.f32 %v555, %v555
        %v558 = vsel %vm544, %v556, 0.0
        %559 = vadd.xlane.f32.xlu0 %v558
        %v560 = vpop.xlane.xlu0 %559
        %v561 = vsel %vm544, %v557, 0.0
        %562 = vadd.xlane.f32.xlu0 %v561
        %v563 = vpop.xlane.xlu0 %562
        %v564 = vmul.f32 %v560, %v551
        %v565 = vmul.f32 %v563, %v551
        %v566 = vadd.f32 %v564, 1e-05
        %v567 = vadd.f32 %v565, 1e-05
        %v568 = vrsqrt.pop %v566
        %v569 = vrsqrt.pop %v567
        %v570 = vmul.f32 %v554, %v568
        %v571 = vmul.f32 %v555, %v569
        %v573 = vlaneseq
        %v574 = vshrl.u32 %v573, 7
        %v575 = vsub.s32 0, %v574
        %v576 = vrot.slane %v542, %v575
        %v578 = vmul.f32 %v570, %v576
        %v579 = vmul.f32 %v571, %v576
        %v581 = vlaneseq
        %v582 = vshrl.u32 %v581, 7
        %v583 = vsub.s32 0, %v582
        %v584 = vrot.slane %v543, %v583
        %v586 = vadd.f32 %v578, %v584
        %v587 = vadd.f32 %v579, %v584
        %v588 = vld [vmem:[#allocation9] sm:$0xff]
        %v589 = vld [vmem:[#allocation9 + $0x8] sm:$0xff]
        %v590 = vld [vmem:[#allocation9 + $0x10] sm:$0xff]
        %v591 = vld [vmem:[#allocation9 + $0x18] sm:$0xff]
        %v593 = vsel %vm544, %v586, 0
        %v596 = vsel %vm544, %v587, 0
        %598 = vmatprep.subr.mxu0 0.0
        %599 = vmatpush1.msra.mxu0 %v588
        %600 = vmatprep.subr.mxu0 0.0
        %601 = vmatpush1.msra.mxu0 %v589
        %602 = vmatprep.subr.mxu0 0.0
        %603 = vmatpush1.msra.mxu0 %v590
        %604 = vmatprep.subr.mxu0 0.0
        %605 = vmatpush1.msra.mxu0 %v591
        %606 = vmatprep.subr.mxu0 0.0
        %607 = vmatpush1.msra.mxu0 0.0
        %608 = vmatprep.subr.mxu0 0.0
        %609 = vmatpush1.msra.mxu0 0.0
        %610 = vmatprep.subr.mxu0 0.0
        %611 = vmatpush1.msra.mxu0 0.0
        %612 = vmatprep.subr.mxu0 0.0
        %613 = vmatpush1.msra.mxu0 0.0
        %614 = vmatprep.subr.mxu0 0.0
        %615 = vmatpush1.msra.mxu0 0.0
        %616 = vmatprep.subr.mxu0 0.0
        %617 = vmatpush1.msra.mxu0 0.0
        %618 = vmatprep.subr.mxu0 0.0
        %619 = vmatpush1.msra.mxu0 0.0
        %620 = vmatprep.subr.mxu0 0.0
        %621 = vmatpush1.msra.mxu0 0.0
        %622 = vmatprep.subr.mxu0 0.0
        %623 = vmatpush1.msra.mxu0 0.0
        %624 = vmatprep.subr.mxu0 0.0
        %625 = vmatpush1.msra.mxu0 0.0
        %626 = vmatprep.subr.mxu0 0.0
        %627 = vmatpush1.msra.mxu0 0.0
        %628 = vmatprep.subr.mxu0 0.0
        %629 = vmatpush1.msra.mxu0 0.0
        %630 = vmatprep.subr.mxu0 0.0
        %631 = vmatpush1.msra.mxu0 0.0
        %632 = vmatprep.subr.mxu0 0.0
        %633 = vmatpush1.msra.mxu0 0.0
        %634 = vmatprep.subr.mxu0 0.0
        %635 = vmatpush1.msra.mxu0 0.0
        %636 = vmatprep.subr.mxu0 0.0
        %637 = vmatpush1.msra.mxu0 0.0
        %638 = vmatprep.subr.mxu0 0.0
        %639 = vmatpush1.msra.mxu0 0.0
        %640 = vmatprep.subr.mxu0 0.0
        %641 = vmatpush1.msra.mxu0 0.0
        %642 = vmatprep.subr.mxu0 0.0
        %643 = vmatpush1.msra.mxu0 0.0
        %644 = vmatprep.subr.mxu0 0.0
        %645 = vmatpush1.msra.mxu0 0.0
        %646 = vmatprep.subr.mxu0 0.0
        %647 = vmatpush1.msra.mxu0 0.0
        %648 = vmatprep.subr.mxu0 0.0
        %649 = vmatpush1.msra.mxu0 0.0
        %650 = vmatprep.subr.mxu0 0.0
        %651 = vmatpush1.msra.mxu0 0.0
        %652 = vmatprep.subr.mxu0 0.0
        %653 = vmatpush1.msra.mxu0 0.0
        %654 = vmatprep.subr.mxu0 0.0
        %655 = vmatpush1.msra.mxu0 0.0
        %656 = vmatprep.subr.mxu0 0.0
        %657 = vmatpush1.msra.mxu0 0.0
        %658 = vmatprep.subr.mxu0 0.0
        %659 = vmatpush1.msra.mxu0 0.0
        %660 = vmatprep.subr.mxu0 0.0
        %661 = vmatpush1.msra.mxu0 0.0
        %662 = vmatprep.mubr.f32.mxu0 0.0
        %663 = vmatmul.mubr.f32.gmra.mrb[0].mxu0 %v593
        %v664 = vpop.f32.mrb[0].mxu0
        %v665 = vadd.f32 0.0, %v664
        %v666 = vpop.f32.mrb[0].mxu0
        %667 = vmatprep.mubr.f32.mxu0 0.0
        %668 = vmatmul.mubr.f32.gmra.mrb[0].mxu0 %v596
        %v669 = vpop.f32.mrb[0].mxu0
        %v670 = vadd.f32 0.0, %v669
        %v671 = vpop.f32.mrb[0].mxu0
        %672 = vdwg.mxu0
        %v673 = vlaneseq
        %v674 = vshrl.u32 %v673, 7
        %v675 = vlaneseq
        %v676 = vand.u32 %v675, 127
        %vm677 = vcmp.eq.s32.totalorder %v674, %v676
        %v678 = vsel %vm677, -1e+30, 0.0
        %680 = vrot.lane.b32.xlu0 %v665, 96
        %v681 = vpop.permute.xlu0 %680
        %vm682 = vcmask 64512
        %v683 = vsel %vm682, %v665, 0
        %v685 = vsel %vm682, %v681, 0
        %687 = vmatprep.subr.mxu0 0.0
        %688 = vmatpush1.xpose.msra.mxu0 %v685
        %689 = vmatprep.subr.mxu0 0.0
        %690 = vmatpush1.xpose.msra.mxu0 0.0
        %691 = vmatprep.subr.mxu0 0.0
        %692 = vmatpush1.xpose.msra.mxu0 0.0
        %693 = vmatprep.subr.mxu0 0.0
        %694 = vmatpush1.xpose.msra.mxu0 0.0
        %695 = vmatprep.subr.mxu0 0.0
        %696 = vmatpush1.xpose.msra.mxu0 0.0
        %697 = vmatprep.subr.mxu0 0.0
        %698 = vmatpush1.xpose.msra.mxu0 0.0
        %699 = vmatprep.subr.mxu0 0.0
        %700 = vmatpush1.xpose.msra.mxu0 0.0
        %701 = vmatprep.subr.mxu0 0.0
        %702 = vmatpush1.xpose.msra.mxu0 0.0
        %703 = vmatprep.subr.mxu0 0.0
        %704 = vmatpush1.xpose.msra.mxu0 0.0
        %705 = vmatprep.subr.mxu0 0.0
        %706 = vmatpush1.xpose.msra.mxu0 0.0
        %707 = vmatprep.subr.mxu0 0.0
        %708 = vmatpush1.xpose.msra.mxu0 0.0
        %709 = vmatprep.subr.mxu0 0.0
        %710 = vmatpush1.xpose.msra.mxu0 0.0
        %711 = vmatprep.subr.mxu0 0.0
        %712 = vmatpush1.xpose.msra.mxu0 0.0
        %713 = vmatprep.subr.mxu0 0.0
        %714 = vmatpush1.xpose.msra.mxu0 0.0
        %715 = vmatprep.subr.mxu0 0.0
        %716 = vmatpush1.xpose.msra.mxu0 0.0
        %717 = vmatprep.subr.mxu0 0.0
        %718 = vmatpush1.xpose.msra.mxu0 0.0
        %719 = vmatprep.subr.mxu0 0.0
        %720 = vmatpush1.xpose.msra.mxu0 0.0
        %721 = vmatprep.subr.mxu0 0.0
        %722 = vmatpush1.xpose.msra.mxu0 0.0
        %723 = vmatprep.subr.mxu0 0.0
        %724 = vmatpush1.xpose.msra.mxu0 0.0
        %725 = vmatprep.subr.mxu0 0.0
        %726 = vmatpush1.xpose.msra.mxu0 0.0
        %727 = vmatprep.subr.mxu0 0.0
        %728 = vmatpush1.xpose.msra.mxu0 0.0
        %729 = vmatprep.subr.mxu0 0.0
        %730 = vmatpush1.xpose.msra.mxu0 0.0
        %731 = vmatprep.subr.mxu0 0.0
        %732 = vmatpush1.xpose.msra.mxu0 0.0
        %733 = vmatprep.subr.mxu0 0.0
        %734 = vmatpush1.xpose.msra.mxu0 0.0
        %735 = vmatprep.subr.mxu0 0.0
        %736 = vmatpush1.xpose.msra.mxu0 0.0
        %737 = vmatprep.subr.mxu0 0.0
        %738 = vmatpush1.xpose.msra.mxu0 0.0
        %739 = vmatprep.subr.mxu0 0.0
        %740 = vmatpush1.xpose.msra.mxu0 0.0
        %741 = vmatprep.subr.mxu0 0.0
        %742 = vmatpush1.xpose.msra.mxu0 0.0
        %743 = vmatprep.subr.mxu0 0.0
        %744 = vmatpush1.xpose.msra.mxu0 0.0
        %745 = vmatprep.subr.mxu0 0.0
        %746 = vmatpush1.xpose.msra.mxu0 0.0
        %747 = vmatprep.subr.mxu0 0.0
        %748 = vmatpush1.xpose.msra.mxu0 0.0
        %749 = vmatprep.subr.mxu0 0.0
        %750 = vmatpush1.xpose.msra.mxu0 0.0
        %751 = vmatprep.mubr.f32.mxu0 0.0
        %752 = vmatmul.mubr.f32.gmra.mrb[0].mxu0 %v683
        %v753 = vpop.f32.mrb[0].mxu0
        %v754 = vadd.f32 %v678, %v753
        %v755 = vpop.f32.mrb[0].mxu0
        %756 = vdwg.mxu0
        %758 = vrot.lane.b32.xlu0 %v670, 96
        %v759 = vpop.permute.xlu0 %758
        %v760 = vsel %vm682, %v670, 0
        %v762 = vsel %vm682, %v759, 0
        %764 = vmatprep.subr.mxu0 0.0
        %765 = vmatpush1.xpose.msra.mxu0 %v762
        %766 = vmatprep.subr.mxu0 0.0
        %767 = vmatpush1.xpose.msra.mxu0 0.0
        %768 = vmatprep.subr.mxu0 0.0
        %769 = vmatpush1.xpose.msra.mxu0 0.0
        %770 = vmatprep.subr.mxu0 0.0
        %771 = vmatpush1.xpose.msra.mxu0 0.0
        %772 = vmatprep.subr.mxu0 0.0
        %773 = vmatpush1.xpose.msra.mxu0 0.0
        %774 = vmatprep.subr.mxu0 0.0
        %775 = vmatpush1.xpose.msra.mxu0 0.0
        %776 = vmatprep.subr.mxu0 0.0
        %777 = vmatpush1.xpose.msra.mxu0 0.0
        %778 = vmatprep.subr.mxu0 0.0
        %779 = vmatpush1.xpose.msra.mxu0 0.0
        %780 = vmatprep.subr.mxu0 0.0
        %781 = vmatpush1.xpose.msra.mxu0 0.0
        %782 = vmatprep.subr.mxu0 0.0
        %783 = vmatpush1.xpose.msra.mxu0 0.0
        %784 = vmatprep.subr.mxu0 0.0
        %785 = vmatpush1.xpose.msra.mxu0 0.0
        %786 = vmatprep.subr.mxu0 0.0
        %787 = vmatpush1.xpose.msra.mxu0 0.0
        %788 = vmatprep.subr.mxu0 0.0
        %789 = vmatpush1.xpose.msra.mxu0 0.0
        %790 = vmatprep.subr.mxu0 0.0
        %791 = vmatpush1.xpose.msra.mxu0 0.0
        %792 = vmatprep.subr.mxu0 0.0
        %793 = vmatpush1.xpose.msra.mxu0 0.0
        %794 = vmatprep.subr.mxu0 0.0
        %795 = vmatpush1.xpose.msra.mxu0 0.0
        %796 = vmatprep.subr.mxu0 0.0
        %797 = vmatpush1.xpose.msra.mxu0 0.0
        %798 = vmatprep.subr.mxu0 0.0
        %799 = vmatpush1.xpose.msra.mxu0 0.0
        %800 = vmatprep.subr.mxu0 0.0
        %801 = vmatpush1.xpose.msra.mxu0 0.0
        %802 = vmatprep.subr.mxu0 0.0
        %803 = vmatpush1.xpose.msra.mxu0 0.0
        %804 = vmatprep.subr.mxu0 0.0
        %805 = vmatpush1.xpose.msra.mxu0 0.0
        %806 = vmatprep.subr.mxu0 0.0
        %807 = vmatpush1.xpose.msra.mxu0 0.0
        %808 = vmatprep.subr.mxu0 0.0
        %809 = vmatpush1.xpose.msra.mxu0 0.0
        %810 = vmatprep.subr.mxu0 0.0
        %811 = vmatpush1.xpose.msra.mxu0 0.0
        %812 = vmatprep.subr.mxu0 0.0
        %813 = vmatpush1.xpose.msra.mxu0 0.0
        %814 = vmatprep.subr.mxu0 0.0
        %815 = vmatpush1.xpose.msra.mxu0 0.0
        %816 = vmatprep.subr.mxu0 0.0
        %817 = vmatpush1.xpose.msra.mxu0 0.0
        %818 = vmatprep.subr.mxu0 0.0
        %819 = vmatpush1.xpose.msra.mxu0 0.0
        %820 = vmatprep.subr.mxu0 0.0
        %821 = vmatpush1.xpose.msra.mxu0 0.0
        %822 = vmatprep.subr.mxu0 0.0
        %823 = vmatpush1.xpose.msra.mxu0 0.0
        %824 = vmatprep.subr.mxu0 0.0
        %825 = vmatpush1.xpose.msra.mxu0 0.0
        %826 = vmatprep.subr.mxu0 0.0
        %827 = vmatpush1.xpose.msra.mxu0 0.0
        %828 = vmatprep.mubr.f32.mxu0 0.0
        %829 = vmatmul.mubr.f32.gmra.mrb[0].mxu0 %v760
        %v830 = vpop.f32.mrb[0].mxu0
        %v831 = vadd.f32 %v678, %v830
        %v832 = vpop.f32.mrb[0].mxu0
        %833 = vdwg.mxu0
        %v834 = vsel %vm682, %v754, -inf
        %835 = vmax.xlane.f32.xlu0 %v834
        %v836 = vpop.xlane.xlu0 %835
        %v837 = vsel %vm682, %v831, -inf
        %838 = vmax.xlane.f32.xlu0 %v837
        %v839 = vpop.xlane.xlu0 %838
        %v840 = vsub.f32 %v754, %v836
        %v841 = vsub.f32 %v831, %v839
        %v842 = vmul.f32 %v840, 1.442695
        %v843 = vpow.pop %v842
        %v844 = vmul.f32 %v841, 1.442695
        %v845 = vpow.pop %v844
        %v846 = vsel %vm682, %v843, 0.0
        %847 = vadd.xlane.f32.xlu0 %v846
        %v848 = vpop.xlane.xlu0 %847
        %v849 = vsel %vm682, %v845, 0.0
        %850 = vadd.xlane.f32.xlu0 %v849
        %v851 = vpop.xlane.xlu0 %850
        %v852 = vrcp.pop %v848
        %v853 = vrcp.pop %v851
        %v854 = vmul.f32 %v843, %v852
        %v855 = vmul.f32 %v845, %v853
        %856 = vrot.lane.b32.xlu0 %v665, 64
        %v857 = vpop.permute.xlu0 %856
        %v860 = vsel %vm682, %v854, 0
        %862 = vmatprep.subr.mxu0 0.0
        %863 = vmatpush1.msra.mxu0 %v857
        %864 = vmatprep.subr.mxu0 0.0
        %865 = vmatpush1.msra.mxu0 0.0
        %866 = vmatprep.subr.mxu0 0.0
        %867 = vmatpush1.msra.mxu0 0.0
        %868 = vmatprep.subr.mxu0 0.0
        %869 = vmatpush1.msra.mxu0 0.0
        %870 = vmatprep.subr.mxu0 0.0
        %871 = vmatpush1.msra.mxu0 0.0
        %872 = vmatprep.subr.mxu0 0.0
        %873 = vmatpush1.msra.mxu0 0.0
        %874 = vmatprep.subr.mxu0 0.0
        %875 = vmatpush1.msra.mxu0 0.0
        %876 = vmatprep.subr.mxu0 0.0
        %877 = vmatpush1.msra.mxu0 0.0
        %878 = vmatprep.subr.mxu0 0.0
        %879 = vmatpush1.msra.mxu0 0.0
        %880 = vmatprep.subr.mxu0 0.0
        %881 = vmatpush1.msra.mxu0 0.0
        %882 = vmatprep.subr.mxu0 0.0
        %883 = vmatpush1.msra.mxu0 0.0
        %884 = vmatprep.subr.mxu0 0.0
        %885 = vmatpush1.msra.mxu0 0.0
        %886 = vmatprep.subr.mxu0 0.0
        %887 = vmatpush1.msra.mxu0 0.0
        %888 = vmatprep.subr.mxu0 0.0
        %889 = vmatpush1.msra.mxu0 0.0
        %890 = vmatprep.subr.mxu0 0.0
        %891 = vmatpush1.msra.mxu0 0.0
        %892 = vmatprep.subr.mxu0 0.0
        %893 = vmatpush1.msra.mxu0 0.0
        %894 = vmatprep.subr.mxu0 0.0
        %895 = vmatpush1.msra.mxu0 0.0
        %896 = vmatprep.subr.mxu0 0.0
        %897 = vmatpush1.msra.mxu0 0.0
        %898 = vmatprep.subr.mxu0 0.0
        %899 = vmatpush1.msra.mxu0 0.0
        %900 = vmatprep.subr.mxu0 0.0
        %901 = vmatpush1.msra.mxu0 0.0
        %902 = vmatprep.subr.mxu0 0.0
        %903 = vmatpush1.msra.mxu0 0.0
        %904 = vmatprep.subr.mxu0 0.0
        %905 = vmatpush1.msra.mxu0 0.0
        %906 = vmatprep.subr.mxu0 0.0
        %907 = vmatpush1.msra.mxu0 0.0
        %908 = vmatprep.subr.mxu0 0.0
        %909 = vmatpush1.msra.mxu0 0.0
        %910 = vmatprep.subr.mxu0 0.0
        %911 = vmatpush1.msra.mxu0 0.0
        %912 = vmatprep.subr.mxu0 0.0
        %913 = vmatpush1.msra.mxu0 0.0
        %914 = vmatprep.subr.mxu0 0.0
        %915 = vmatpush1.msra.mxu0 0.0
        %916 = vmatprep.subr.mxu0 0.0
        %917 = vmatpush1.msra.mxu0 0.0
        %918 = vmatprep.subr.mxu0 0.0
        %919 = vmatpush1.msra.mxu0 0.0
        %920 = vmatprep.subr.mxu0 0.0
        %921 = vmatpush1.msra.mxu0 0.0
        %922 = vmatprep.subr.mxu0 0.0
        %923 = vmatpush1.msra.mxu0 0.0
        %924 = vmatprep.subr.mxu0 0.0
        %925 = vmatpush1.msra.mxu0 0.0
        %926 = vmatprep.mubr.f32.mxu0 0.0
        %927 = vmatmul.mubr.f32.gmra.mrb[0].mxu0 %v860
        %v928 = vpop.f32.mrb[0].mxu0
        %v929 = vadd.f32 0.0, %v928
        %v930 = vpop.f32.mrb[0].mxu0
        %931 = vdwg.mxu0
        %932 = vrot.lane.b32.xlu0 %v670, 64
        %v933 = vpop.permute.xlu0 %932
        %v936 = vsel %vm682, %v855, 0
        %938 = vmatprep.subr.mxu0 0.0
        %939 = vmatpush1.msra.mxu0 %v933
        %940 = vmatprep.subr.mxu0 0.0
        %941 = vmatpush1.msra.mxu0 0.0
        %942 = vmatprep.subr.mxu0 0.0
        %943 = vmatpush1.msra.mxu0 0.0
        %944 = vmatprep.subr.mxu0 0.0
        %945 = vmatpush1.msra.mxu0 0.0
        %946 = vmatprep.subr.mxu0 0.0
        %947 = vmatpush1.msra.mxu0 0.0
        %948 = vmatprep.subr.mxu0 0.0
        %949 = vmatpush1.msra.mxu0 0.0
        %950 = vmatprep.subr.mxu0 0.0
        %951 = vmatpush1.msra.mxu0 0.0
        %952 = vmatprep.subr.mxu0 0.0
        %953 = vmatpush1.msra.mxu0 0.0
        %954 = vmatprep.subr.mxu0 0.0
        %955 = vmatpush1.msra.mxu0 0.0
        %956 = vmatprep.subr.mxu0 0.0
        %957 = vmatpush1.msra.mxu0 0.0
        %958 = vmatprep.subr.mxu0 0.0
        %959 = vmatpush1.msra.mxu0 0.0
        %960 = vmatprep.subr.mxu0 0.0
        %961 = vmatpush1.msra.mxu0 0.0
        %962 = vmatprep.subr.mxu0 0.0
        %963 = vmatpush1.msra.mxu0 0.0
        %964 = vmatprep.subr.mxu0 0.0
        %965 = vmatpush1.msra.mxu0 0.0
        %966 = vmatprep.subr.mxu0 0.0
        %967 = vmatpush1.msra.mxu0 0.0
        %968 = vmatprep.subr.mxu0 0.0
        %969 = vmatpush1.msra.mxu0 0.0
        %970 = vmatprep.subr.mxu0 0.0
        %971 = vmatpush1.msra.mxu0 0.0
        %972 = vmatprep.subr.mxu0 0.0
        %973 = vmatpush1.msra.mxu0 0.0
        %974 = vmatprep.subr.mxu0 0.0
        %975 = vmatpush1.msra.mxu0 0.0
        %976 = vmatprep.subr.mxu0 0.0
        %977 = vmatpush1.msra.mxu0 0.0
        %978 = vmatprep.subr.mxu0 0.0
        %979 = vmatpush1.msra.mxu0 0.0
        %980 = vmatprep.subr.mxu0 0.0
        %981 = vmatpush1.msra.mxu0 0.0
        %982 = vmatprep.subr.mxu0 0.0
        %983 = vmatpush1.msra.mxu0 0.0
        %984 = vmatprep.subr.mxu0 0.0
        %985 = vmatpush1.msra.mxu0 0.0
        %986 = vmatprep.subr.mxu0 0.0
        %987 = vmatpush1.msra.mxu0 0.0
        %988 = vmatprep.subr.mxu0 0.0
        %989 = vmatpush1.msra.mxu0 0.0
        %990 = vmatprep.subr.mxu0 0.0
        %991 = vmatpush1.msra.mxu0 0.0
        %992 = vmatprep.subr.mxu0 0.0
        %993 = vmatpush1.msra.mxu0 0.0
        %994 = vmatprep.subr.mxu0 0.0
        %995 = vmatpush1.msra.mxu0 0.0
        %996 = vmatprep.subr.mxu0 0.0
        %997 = vmatpush1.msra.mxu0 0.0
        %998 = vmatprep.subr.mxu0 0.0
        %999 = vmatpush1.msra.mxu0 0.0
        %1000 = vmatprep.subr.mxu0 0.0
        %1001 = vmatpush1.msra.mxu0 0.0
        %1002 = vmatprep.mubr.f32.mxu0 0.0
        %1003 = vmatmul.mubr.f32.gmra.mrb[0].mxu0 %v936
        %v1004 = vpop.f32.mrb[0].mxu0
        %v1005 = vadd.f32 0.0, %v1004
        %v1006 = vpop.f32.mrb[0].mxu0
        %1007 = vdwg.mxu0
        %1008 = vst.msk [vmem:[#allocation2] sm:$0xff] %vm682, %v929
        %1009 = vst.msk [vmem:[#allocation2 + $0x8] sm:$0xff] %vm682, %v1005
        %1010 = vrot.lane.b32.xlu0 %v665, 120
        %v1011 = vpop.permute.xlu0 %1010
        %1012 = vrot.lane.b32.xlu0 %v665, 88
        %v1013 = vpop.permute.xlu0 %1012
        %v1014 = vsel %vm682, %v1011, 0
        %v1016 = vsel %vm682, %v1013, 0
        %1018 = vmatprep.subr.mxu0 0.0
        %1019 = vmatpush1.xpose.msra.mxu0 %v1016
        %1020 = vmatprep.subr.mxu0 0.0
        %1021 = vmatpush1.xpose.msra.mxu0 0.0
        %1022 = vmatprep.subr.mxu0 0.0
        %1023 = vmatpush1.xpose.msra.mxu0 0.0
        %1024 = vmatprep.subr.mxu0 0.0
        %1025 = vmatpush1.xpose.msra.mxu0 0.0
        %1026 = vmatprep.subr.mxu0 0.0
        %1027 = vmatpush1.xpose.msra.mxu0 0.0
        %1028 = vmatprep.subr.mxu0 0.0
        %1029 = vmatpush1.xpose.msra.mxu0 0.0
        %1030 = vmatprep.subr.mxu0 0.0
        %1031 = vmatpush1.xpose.msra.mxu0 0.0
        %1032 = vmatprep.subr.mxu0 0.0
        %1033 = vmatpush1.xpose.msra.mxu0 0.0
        %1034 = vmatprep.subr.mxu0 0.0
        %1035 = vmatpush1.xpose.msra.mxu0 0.0
        %1036 = vmatprep.subr.mxu0 0.0
        %1037 = vmatpush1.xpose.msra.mxu0 0.0
        %1038 = vmatprep.subr.mxu0 0.0
        %1039 = vmatpush1.xpose.msra.mxu0 0.0
        %1040 = vmatprep.subr.mxu0 0.0
        %1041 = vmatpush1.xpose.msra.mxu0 0.0
        %1042 = vmatprep.subr.mxu0 0.0
        %1043 = vmatpush1.xpose.msra.mxu0 0.0
        %1044 = vmatprep.subr.mxu0 0.0
        %1045 = vmatpush1.xpose.msra.mxu0 0.0
        %1046 = vmatprep.subr.mxu0 0.0
        %1047 = vmatpush1.xpose.msra.mxu0 0.0
        %1048 = vmatprep.subr.mxu0 0.0
        %1049 = vmatpush1.xpose.msra.mxu0 0.0
        %1050 = vmatprep.subr.mxu0 0.0
        %1051 = vmatpush1.xpose.msra.mxu0 0.0
        %1052 = vmatprep.subr.mxu0 0.0
        %1053 = vmatpush1.xpose.msra.mxu0 0.0
        %1054 = vmatprep.subr.mxu0 0.0
        %1055 = vmatpush1.xpose.msra.mxu0 0.0
        %1056 = vmatprep.subr.mxu0 0.0
        %1057 = vmatpush1.xpose.msra.mxu0 0.0
        %1058 = vmatprep.subr.mxu0 0.0
        %1059 = vmatpush1.xpose.msra.mxu0 0.0
        %1060 = vmatprep.subr.mxu0 0.0
        %1061 = vmatpush1.xpose.msra.mxu0 0.0
        %1062 = vmatprep.subr.mxu0 0.0
        %1063 = vmatpush1.xpose.msra.mxu0 0.0
        %1064 = vmatprep.subr.mxu0 0.0
        %1065 = vmatpush1.xpose.msra.mxu0 0.0
        %1066 = vmatprep.subr.mxu0 0.0
        %1067 = vmatpush1.xpose.msra.mxu0 0.0
        %1068 = vmatprep.subr.mxu0 0.0
        %1069 = vmatpush1.xpose.msra.mxu0 0.0
        %1070 = vmatprep.subr.mxu0 0.0
        %1071 = vmatpush1.xpose.msra.mxu0 0.0
        %1072 = vmatprep.subr.mxu0 0.0
        %1073 = vmatpush1.xpose.msra.mxu0 0.0
        %1074 = vmatprep.subr.mxu0 0.0
        %1075 = vmatpush1.xpose.msra.mxu0 0.0
        %1076 = vmatprep.subr.mxu0 0.0
        %1077 = vmatpush1.xpose.msra.mxu0 0.0
        %1078 = vmatprep.subr.mxu0 0.0
        %1079 = vmatpush1.xpose.msra.mxu0 0.0
        %1080 = vmatprep.subr.mxu0 0.0
        %1081 = vmatpush1.xpose.msra.mxu0 0.0
        %1082 = vmatprep.mubr.f32.mxu0 0.0
        %1083 = vmatmul.mubr.f32.gmra.mrb[0].mxu0 %v1014
        %v1084 = vpop.f32.mrb[0].mxu0
        %v1085 = vadd.f32 %v678, %v1084
        %v1086 = vpop.f32.mrb[0].mxu0
        %1087 = vdwg.mxu0
        %1088 = vrot.lane.b32.xlu0 %v670, 120
        %v1089 = vpop.permute.xlu0 %1088
        %1090 = vrot.lane.b32.xlu0 %v670, 88
        %v1091 = vpop.permute.xlu0 %1090
        %v1092 = vsel %vm682, %v1089, 0
        %v1094 = vsel %vm682, %v1091, 0
        %1096 = vmatprep.subr.mxu0 0.0
        %1097 = vmatpush1.xpose.msra.mxu0 %v1094
        %1098 = vmatprep.subr.mxu0 0.0
        %1099 = vmatpush1.xpose.msra.mxu0 0.0
        %1100 = vmatprep.subr.mxu0 0.0
        %1101 = vmatpush1.xpose.msra.mxu0 0.0
        %1102 = vmatprep.subr.mxu0 0.0
        %1103 = vmatpush1.xpose.msra.mxu0 0.0
        %1104 = vmatprep.subr.mxu0 0.0
        %1105 = vmatpush1.xpose.msra.mxu0 0.0
        %1106 = vmatprep.subr.mxu0 0.0
        %1107 = vmatpush1.xpose.msra.mxu0 0.0
        %1108 = vmatprep.subr.mxu0 0.0
        %1109 = vmatpush1.xpose.msra.mxu0 0.0
        %1110 = vmatprep.subr.mxu0 0.0
        %1111 = vmatpush1.xpose.msra.mxu0 0.0
        %1112 = vmatprep.subr.mxu0 0.0
        %1113 = vmatpush1.xpose.msra.mxu0 0.0
        %1114 = vmatprep.subr.mxu0 0.0
        %1115 = vmatpush1.xpose.msra.mxu0 0.0
        %1116 = vmatprep.subr.mxu0 0.0
        %1117 = vmatpush1.xpose.msra.mxu0 0.0
        %1118 = vmatprep.subr.mxu0 0.0
        %1119 = vmatpush1.xpose.msra.mxu0 0.0
        %1120 = vmatprep.subr.mxu0 0.0
        %1121 = vmatpush1.xpose.msra.mxu0 0.0
        %1122 = vmatprep.subr.mxu0 0.0
        %1123 = vmatpush1.xpose.msra.mxu0 0.0
        %1124 = vmatprep.subr.mxu0 0.0
        %1125 = vmatpush1.xpose.msra.mxu0 0.0
        %1126 = vmatprep.subr.mxu0 0.0
        %1127 = vmatpush1.xpose.msra.mxu0 0.0
        %1128 = vmatprep.subr.mxu0 0.0
        %1129 = vmatpush1.xpose.msra.mxu0 0.0
        %1130 = vmatprep.subr.mxu0 0.0
        %1131 = vmatpush1.xpose.msra.mxu0 0.0
        %1132 = vmatprep.subr.mxu0 0.0
        %1133 = vmatpush1.xpose.msra.mxu0 0.0
        %1134 = vmatprep.subr.mxu0 0.0
        %1135 = vmatpush1.xpose.msra.mxu0 0.0
        %1136 = vmatprep.subr.mxu0 0.0
        %1137 = vmatpush1.xpose.msra.mxu0 0.0
        %1138 = vmatprep.subr.mxu0 0.0
        %1139 = vmatpush1.xpose.msra.mxu0 0.0
        %1140 = vmatprep.subr.mxu0 0.0
        %1141 = vmatpush1.xpose.msra.mxu0 0.0
        %1142 = vmatprep.subr.mxu0 0.0
        %1143 = vmatpush1.xpose.msra.mxu0 0.0
        %1144 = vmatprep.subr.mxu0 0.0
        %1145 = vmatpush1.xpose.msra.mxu0 0.0
        %1146 = vmatprep.subr.mxu0 0.0
        %1147 = vmatpush1.xpose.msra.mxu0 0.0
        %1148 = vmatprep.subr.mxu0 0.0
        %1149 = vmatpush1.xpose.msra.mxu0 0.0
        %1150 = vmatprep.subr.mxu0 0.0
        %1151 = vmatpush1.xpose.msra.mxu0 0.0
        %1152 = vmatprep.subr.mxu0 0.0
        %1153 = vmatpush1.xpose.msra.mxu0 0.0
        %1154 = vmatprep.subr.mxu0 0.0
        %1155 = vmatpush1.xpose.msra.mxu0 0.0
        %1156 = vmatprep.subr.mxu0 0.0
        %1157 = vmatpush1.xpose.msra.mxu0 0.0
        %1158 = vmatprep.subr.mxu0 0.0
        %1159 = vmatpush1.xpose.msra.mxu0 0.0
        %1160 = vmatprep.mubr.f32.mxu0 0.0
        %1161 = vmatmul.mubr.f32.gmra.mrb[0].mxu0 %v1092
        %v1162 = vpop.f32.mrb[0].mxu0
        %v1163 = vadd.f32 %v678, %v1162
        %v1164 = vpop.f32.mrb[0].mxu0
        %1165 = vdwg.mxu0
        %v1166 = vsel %vm682, %v1085, -inf
        %1167 = vmax.xlane.f32.xlu0 %v1166
        %v1168 = vpop.xlane.xlu0 %1167
        %v1169 = vsel %vm682, %v1163, -inf
        %1170 = vmax.xlane.f32.xlu0 %v1169
        %v1171 = vpop.xlane.xlu0 %1170
        %v1172 = vsub.f32 %v1085, %v1168
        %v1173 = vsub.f32 %v1163, %v1171
        %v1174 = vmul.f32 %v1172, 1.442695
        %v1175 = vpow.pop %v1174
        %v1176 = vmul.f32 %v1173, 1.442695
        %v1177 = vpow.pop %v1176
        %v1178 = vsel %vm682, %v1175, 0.0
        %1179 = vadd.xlane.f32.xlu0 %v1178
        %v1180 = vpop.xlane.xlu0 %1179
        %v1181 = vsel %vm682, %v1177, 0.0
        %1182 = vadd.xlane.f32.xlu0 %v1181
        %v1183 = vpop.xlane.xlu0 %1182
        %v1184 = vrcp.pop %v1180
        %v1185 = vrcp.pop %v1183
        %v1186 = vmul.f32 %v1175, %v1184
        %v1187 = vmul.f32 %v1177, %v1185
        %1188 = vrot.lane.b32.xlu0 %v665, 56
        %v1189 = vpop.permute.xlu0 %1188
        %v1192 = vsel %vm682, %v1186, 0
        %1194 = vmatprep.subr.mxu0 0.0
        %1195 = vmatpush1.msra.mxu0 %v1189
        %1196 = vmatprep.subr.mxu0 0.0
        %1197 = vmatpush1.msra.mxu0 0.0
        %1198 = vmatprep.subr.mxu0 0.0
        %1199 = vmatpush1.msra.mxu0 0.0
        %1200 = vmatprep.subr.mxu0 0.0
        %1201 = vmatpush1.msra.mxu0 0.0
        %1202 = vmatprep.subr.mxu0 0.0
        %1203 = vmatpush1.msra.mxu0 0.0
        %1204 = vmatprep.subr.mxu0 0.0
        %1205 = vmatpush1.msra.mxu0 0.0
        %1206 = vmatprep.subr.mxu0 0.0
        %1207 = vmatpush1.msra.mxu0 0.0
        %1208 = vmatprep.subr.mxu0 0.0
        %1209 = vmatpush1.msra.mxu0 0.0
        %1210 = vmatprep.subr.mxu0 0.0
        %1211 = vmatpush1.msra.mxu0 0.0
        %1212 = vmatprep.subr.mxu0 0.0
        %1213 = vmatpush1.msra.mxu0 0.0
        %1214 = vmatprep.subr.mxu0 0.0
        %1215 = vmatpush1.msra.mxu0 0.0
        %1216 = vmatprep.subr.mxu0 0.0
        %1217 = vmatpush1.msra.mxu0 0.0
        %1218 = vmatprep.subr.mxu0 0.0
        %1219 = vmatpush1.msra.mxu0 0.0
        %1220 = vmatprep.subr.mxu0 0.0
        %1221 = vmatpush1.msra.mxu0 0.0
        %1222 = vmatprep.subr.mxu0 0.0
        %1223 = vmatpush1.msra.mxu0 0.0
        %1224 = vmatprep.subr.mxu0 0.0
        %1225 = vmatpush1.msra.mxu0 0.0
        %1226 = vmatprep.subr.mxu0 0.0
        %1227 = vmatpush1.msra.mxu0 0.0
        %1228 = vmatprep.subr.mxu0 0.0
        %1229 = vmatpush1.msra.mxu0 0.0
        %1230 = vmatprep.subr.mxu0 0.0
        %1231 = vmatpush1.msra.mxu0 0.0
        %1232 = vmatprep.subr.mxu0 0.0
        %1233 = vmatpush1.msra.mxu0 0.0
        %1234 = vmatprep.subr.mxu0 0.0
        %1235 = vmatpush1.msra.mxu0 0.0
        %1236 = vmatprep.subr.mxu0 0.0
        %1237 = vmatpush1.msra.mxu0 0.0
        %1238 = vmatprep.subr.mxu0 0.0
        %1239 = vmatpush1.msra.mxu0 0.0
        %1240 = vmatprep.subr.mxu0 0.0
        %1241 = vmatpush1.msra.mxu0 0.0
        %1242 = vmatprep.subr.mxu0 0.0
        %1243 = vmatpush1.msra.mxu0 0.0
        %1244 = vmatprep.subr.mxu0 0.0
        %1245 = vmatpush1.msra.mxu0 0.0
        %1246 = vmatprep.subr.mxu0 0.0
        %1247 = vmatpush1.msra.mxu0 0.0
        %1248 = vmatprep.subr.mxu0 0.0
        %1249 = vmatpush1.msra.mxu0 0.0
        %1250 = vmatprep.subr.mxu0 0.0
        %1251 = vmatpush1.msra.mxu0 0.0
        %1252 = vmatprep.subr.mxu0 0.0
        %1253 = vmatpush1.msra.mxu0 0.0
        %1254 = vmatprep.subr.mxu0 0.0
        %1255 = vmatpush1.msra.mxu0 0.0
        %1256 = vmatprep.subr.mxu0 0.0
        %1257 = vmatpush1.msra.mxu0 0.0
        %1258 = vmatprep.mubr.f32.mxu0 0.0
        %1259 = vmatmul.mubr.f32.gmra.mrb[0].mxu0 %v1192
        %v1260 = vpop.f32.mrb[0].mxu0
        %v1261 = vadd.f32 0.0, %v1260
        %v1262 = vpop.f32.mrb[0].mxu0
        %1263 = vdwg.mxu0
        %1264 = vrot.lane.b32.xlu0 %v670, 56
        %v1265 = vpop.permute.xlu0 %1264
        %v1268 = vsel %vm682, %v1187, 0
        %1270 = vmatprep.subr.mxu0 0.0
        %1271 = vmatpush1.msra.mxu0 %v1265
        %1272 = vmatprep.subr.mxu0 0.0
        %1273 = vmatpush1.msra.mxu0 0.0
        %1274 = vmatprep.subr.mxu0 0.0
        %1275 = vmatpush1.msra.mxu0 0.0
        %1276 = vmatprep.subr.mxu0 0.0
        %1277 = vmatpush1.msra.mxu0 0.0
        %1278 = vmatprep.subr.mxu0 0.0
        %1279 = vmatpush1.msra.mxu0 0.0
        %1280 = vmatprep.subr.mxu0 0.0
        %1281 = vmatpush1.msra.mxu0 0.0
        %1282 = vmatprep.subr.mxu0 0.0
        %1283 = vmatpush1.msra.mxu0 0.0
        %1284 = vmatprep.subr.mxu0 0.0
        %1285 = vmatpush1.msra.mxu0 0.0
        %1286 = vmatprep.subr.mxu0 0.0
        %1287 = vmatpush1.msra.mxu0 0.0
        %1288 = vmatprep.subr.mxu0 0.0
        %1289 = vmatpush1.msra.mxu0 0.0
        %1290 = vmatprep.subr.mxu0 0.0
        %1291 = vmatpush1.msra.mxu0 0.0
        %1292 = vmatprep.subr.mxu0 0.0
        %1293 = vmatpush1.msra.mxu0 0.0
        %1294 = vmatprep.subr.mxu0 0.0
        %1295 = vmatpush1.msra.mxu0 0.0
        %1296 = vmatprep.subr.mxu0 0.0
        %1297 = vmatpush1.msra.mxu0 0.0
        %1298 = vmatprep.subr.mxu0 0.0
        %1299 = vmatpush1.msra.mxu0 0.0
        %1300 = vmatprep.subr.mxu0 0.0
        %1301 = vmatpush1.msra.mxu0 0.0
        %1302 = vmatprep.subr.mxu0 0.0
        %1303 = vmatpush1.msra.mxu0 0.0
        %1304 = vmatprep.subr.mxu0 0.0
        %1305 = vmatpush1.msra.mxu0 0.0
        %1306 = vmatprep.subr.mxu0 0.0
        %1307 = vmatpush1.msra.mxu0 0.0
        %1308 = vmatprep.subr.mxu0 0.0
        %1309 = vmatpush1.msra.mxu0 0.0
        %1310 = vmatprep.subr.mxu0 0.0
        %1311 = vmatpush1.msra.mxu0 0.0
        %1312 = vmatprep.subr.mxu0 0.0
        %1313 = vmatpush1.msra.mxu0 0.0
        %1314 = vmatprep.subr.mxu0 0.0
        %1315 = vmatpush1.msra.mxu0 0.0
        %1316 = vmatprep.subr.mxu0 0.0
        %1317 = vmatpush1.msra.mxu0 0.0
        %1318 = vmatprep.subr.mxu0 0.0
        %1319 = vmatpush1.msra.mxu0 0.0
        %1320 = vmatprep.subr.mxu0 0.0
        %1321 = vmatpush1.msra.mxu0 0.0
        %1322 = vmatprep.subr.mxu0 0.0
        %1323 = vmatpush1.msra.mxu0 0.0
        %1324 = vmatprep.subr.mxu0 0.0
        %1325 = vmatpush1.msra.mxu0 0.0
        %1326 = vmatprep.subr.mxu0 0.0
        %1327 = vmatpush1.msra.mxu0 0.0
        %1328 = vmatprep.subr.mxu0 0.0
        %1329 = vmatpush1.msra.mxu0 0.0
        %1330 = vmatprep.subr.mxu0 0.0
        %1331 = vmatpush1.msra.mxu0 0.0
        %1332 = vmatprep.subr.mxu0 0.0
        %1333 = vmatpush1.msra.mxu0 0.0
        %1334 = vmatprep.mubr.f32.mxu0 0.0
        %1335 = vmatmul.mubr.f32.gmra.mrb[0].mxu0 %v1268
        %v1336 = vpop.f32.mrb[0].mxu0
        %v1337 = vadd.f32 0.0, %v1336
        %v1338 = vpop.f32.mrb[0].mxu0
        %1339 = vdwg.mxu0
        %1342 = vrot.lane.b32.xlu0 %v1261, 8
        %v1343 = vpop.permute.xlu0 %1342
        %1344 = vrot.lane.b32.xlu0 %v1337, 8
        %v1345 = vpop.permute.xlu0 %1344
        %vm1348 = vcmask 130112
        %1349 = vst.msk [vmem:[#allocation2] sm:$0xff] %vm1348, %v1343
        %1350 = vst.msk [vmem:[#allocation2 + $0x8] sm:$0xff] %vm1348, %v1345
        %1351 = vrot.lane.b32.xlu0 %v665, 112
        %v1352 = vpop.permute.xlu0 %1351
        %1353 = vrot.lane.b32.xlu0 %v665, 80
        %v1354 = vpop.permute.xlu0 %1353
        %v1355 = vsel %vm682, %v1352, 0
        %v1357 = vsel %vm682, %v1354, 0
        %1359 = vmatprep.subr.mxu0 0.0
        %1360 = vmatpush1.xpose.msra.mxu0 %v1357
        %1361 = vmatprep.subr.mxu0 0.0
        %1362 = vmatpush1.xpose.msra.mxu0 0.0
        %1363 = vmatprep.subr.mxu0 0.0
        %1364 = vmatpush1.xpose.msra.mxu0 0.0
        %1365 = vmatprep.subr.mxu0 0.0
        %1366 = vmatpush1.xpose.msra.mxu0 0.0
        %1367 = vmatprep.subr.mxu0 0.0
        %1368 = vmatpush1.xpose.msra.mxu0 0.0
        %1369 = vmatprep.subr.mxu0 0.0
        %1370 = vmatpush1.xpose.msra.mxu0 0.0
        %1371 = vmatprep.subr.mxu0 0.0
        %1372 = vmatpush1.xpose.msra.mxu0 0.0
        %1373 = vmatprep.subr.mxu0 0.0
        %1374 = vmatpush1.xpose.msra.mxu0 0.0
        %1375 = vmatprep.subr.mxu0 0.0
        %1376 = vmatpush1.xpose.msra.mxu0 0.0
        %1377 = vmatprep.subr.mxu0 0.0
        %1378 = vmatpush1.xpose.msra.mxu0 0.0
        %1379 = vmatprep.subr.mxu0 0.0
        %1380 = vmatpush1.xpose.msra.mxu0 0.0
        %1381 = vmatprep.subr.mxu0 0.0
        %1382 = vmatpush1.xpose.msra.mxu0 0.0
        %1383 = vmatprep.subr.mxu0 0.0
        %1384 = vmatpush1.xpose.msra.mxu0 0.0
        %1385 = vmatprep.subr.mxu0 0.0
        %1386 = vmatpush1.xpose.msra.mxu0 0.0
        %1387 = vmatprep.subr.mxu0 0.0
        %1388 = vmatpush1.xpose.msra.mxu0 0.0
        %1389 = vmatprep.subr.mxu0 0.0
        %1390 = vmatpush1.xpose.msra.mxu0 0.0
        %1391 = vmatprep.subr.mxu0 0.0
        %1392 = vmatpush1.xpose.msra.mxu0 0.0
        %1393 = vmatprep.subr.mxu0 0.0
        %1394 = vmatpush1.xpose.msra.mxu0 0.0
        %1395 = vmatprep.subr.mxu0 0.0
        %1396 = vmatpush1.xpose.msra.mxu0 0.0
        %1397 = vmatprep.subr.mxu0 0.0
        %1398 = vmatpush1.xpose.msra.mxu0 0.0
        %1399 = vmatprep.subr.mxu0 0.0
        %1400 = vmatpush1.xpose.msra.mxu0 0.0
        %1401 = vmatprep.subr.mxu0 0.0
        %1402 = vmatpush1.xpose.msra.mxu0 0.0
        %1403 = vmatprep.subr.mxu0 0.0
        %1404 = vmatpush1.xpose.msra.mxu0 0.0
        %1405 = vmatprep.subr.mxu0 0.0
        %1406 = vmatpush1.xpose.msra.mxu0 0.0
        %1407 = vmatprep.subr.mxu0 0.0
        %1408 = vmatpush1.xpose.msra.mxu0 0.0
        %1409 = vmatprep.subr.mxu0 0.0
        %1410 = vmatpush1.xpose.msra.mxu0 0.0
        %1411 = vmatprep.subr.mxu0 0.0
        %1412 = vmatpush1.xpose.msra.mxu0 0.0
        %1413 = vmatprep.subr.mxu0 0.0
        %1414 = vmatpush1.xpose.msra.mxu0 0.0
        %1415 = vmatprep.subr.mxu0 0.0
        %1416 = vmatpush1.xpose.msra.mxu0 0.0
        %1417 = vmatprep.subr.mxu0 0.0
        %1418 = vmatpush1.xpose.msra.mxu0 0.0
        %1419 = vmatprep.subr.mxu0 0.0
        %1420 = vmatpush1.xpose.msra.mxu0 0.0
        %1421 = vmatprep.subr.mxu0 0.0
        %1422 = vmatpush1.xpose.msra.mxu0 0.0
        %1423 = vmatprep.mubr.f32.mxu0 0.0
        %1424 = vmatmul.mubr.f32.gmra.mrb[0].mxu0 %v1355
        %v1425 = vpop.f32.mrb[0].mxu0
        %v1426 = vadd.f32 %v678, %v1425
        %v1427 = vpop.f32.mrb[0].mxu0
        %1428 = vdwg.mxu0
        %1429 = vrot.lane.b32.xlu0 %v670, 112
        %v1430 = vpop.permute.xlu0 %1429
        %1431 = vrot.lane.b32.xlu0 %v670, 80
        %v1432 = vpop.permute.xlu0 %1431
        %v1433 = vsel %vm682, %v1430, 0
        %v1435 = vsel %vm682, %v1432, 0
        %1437 = vmatprep.subr.mxu0 0.0
        %1438 = vmatpush1.xpose.msra.mxu0 %v1435
        %1439 = vmatprep.subr.mxu0 0.0
        %1440 = vmatpush1.xpose.msra.mxu0 0.0
        %1441 = vmatprep.subr.mxu0 0.0
        %1442 = vmatpush1.xpose.msra.mxu0 0.0
        %1443 = vmatprep.subr.mxu0 0.0
        %1444 = vmatpush1.xpose.msra.mxu0 0.0
        %1445 = vmatprep.subr.mxu0 0.0
        %1446 = vmatpush1.xpose.msra.mxu0 0.0
        %1447 = vmatprep.subr.mxu0 0.0
        %1448 = vmatpush1.xpose.msra.mxu0 0.0
        %1449 = vmatprep.subr.mxu0 0.0
        %1450 = vmatpush1.xpose.msra.mxu0 0.0
        %1451 = vmatprep.subr.mxu0 0.0
        %1452 = vmatpush1.xpose.msra.mxu0 0.0
        %1453 = vmatprep.subr.mxu0 0.0
        %1454 = vmatpush1.xpose.msra.mxu0 0.0
        %1455 = vmatprep.subr.mxu0 0.0
        %1456 = vmatpush1.xpose.msra.mxu0 0.0
        %1457 = vmatprep.subr.mxu0 0.0
        %1458 = vmatpush1.xpose.msra.mxu0 0.0
        %1459 = vmatprep.subr.mxu0 0.0
        %1460 = vmatpush1.xpose.msra.mxu0 0.0
        %1461 = vmatprep.subr.mxu0 0.0
        %1462 = vmatpush1.xpose.msra.mxu0 0.0
        %1463 = vmatprep.subr.mxu0 0.0
        %1464 = vmatpush1.xpose.msra.mxu0 0.0
        %1465 = vmatprep.subr.mxu0 0.0
        %1466 = vmatpush1.xpose.msra.mxu0 0.0
        %1467 = vmatprep.subr.mxu0 0.0
        %1468 = vmatpush1.xpose.msra.mxu0 0.0
        %1469 = vmatprep.subr.mxu0 0.0
        %1470 = vmatpush1.xpose.msra.mxu0 0.0
        %1471 = vmatprep.subr.mxu0 0.0
        %1472 = vmatpush1.xpose.msra.mxu0 0.0
        %1473 = vmatprep.subr.mxu0 0.0
        %1474 = vmatpush1.xpose.msra.mxu0 0.0
        %1475 = vmatprep.subr.mxu0 0.0
        %1476 = vmatpush1.xpose.msra.mxu0 0.0
        %1477 = vmatprep.subr.mxu0 0.0
        %1478 = vmatpush1.xpose.msra.mxu0 0.0
        %1479 = vmatprep.subr.mxu0 0.0
        %1480 = vmatpush1.xpose.msra.mxu0 0.0
        %1481 = vmatprep.subr.mxu0 0.0
        %1482 = vmatpush1.xpose.msra.mxu0 0.0
        %1483 = vmatprep.subr.mxu0 0.0
        %1484 = vmatpush1.xpose.msra.mxu0 0.0
        %1485 = vmatprep.subr.mxu0 0.0
        %1486 = vmatpush1.xpose.msra.mxu0 0.0
        %1487 = vmatprep.subr.mxu0 0.0
        %1488 = vmatpush1.xpose.msra.mxu0 0.0
        %1489 = vmatprep.subr.mxu0 0.0
        %1490 = vmatpush1.xpose.msra.mxu0 0.0
        %1491 = vmatprep.subr.mxu0 0.0
        %1492 = vmatpush1.xpose.msra.mxu0 0.0
        %1493 = vmatprep.subr.mxu0 0.0
        %1494 = vmatpush1.xpose.msra.mxu0 0.0
        %1495 = vmatprep.subr.mxu0 0.0
        %1496 = vmatpush1.xpose.msra.mxu0 0.0
        %1497 = vmatprep.subr.mxu0 0.0
        %1498 = vmatpush1.xpose.msra.mxu0 0.0
        %1499 = vmatprep.subr.mxu0 0.0
        %1500 = vmatpush1.xpose.msra.mxu0 0.0
        %1501 = vmatprep.mubr.f32.mxu0 0.0
        %1502 = vmatmul.mubr.f32.gmra.mrb[0].mxu0 %v1433
        %v1503 = vpop.f32.mrb[0].mxu0
        %v1504 = vadd.f32 %v678, %v1503
        %v1505 = vpop.f32.mrb[0].mxu0
        %1506 = vdwg.mxu0
        %v1507 = vsel %vm682, %v1426, -inf
        %1508 = vmax.xlane.f32.xlu0 %v1507
        %v1509 = vpop.xlane.xlu0 %1508
        %v1510 = vsel %vm682, %v1504, -inf
        %1511 = vmax.xlane.f32.xlu0 %v1510
        %v1512 = vpop.xlane.xlu0 %1511
        %v1513 = vsub.f32 %v1426, %v1509
        %v1514 = vsub.f32 %v1504, %v1512
        %v1515 = vmul.f32 %v1513, 1.442695
        %v1516 = vpow.pop %v1515
        %v1517 = vmul.f32 %v1514, 1.442695
        %v1518 = vpow.pop %v1517
        %v1519 = vsel %vm682, %v1516, 0.0
        %1520 = vadd.xlane.f32.xlu0 %v1519
        %v1521 = vpop.xlane.xlu0 %1520
        %v1522 = vsel %vm682, %v1518, 0.0
        %1523 = vadd.xlane.f32.xlu0 %v1522
        %v1524 = vpop.xlane.xlu0 %1523
        %v1525 = vrcp.pop %v1521
        %v1526 = vrcp.pop %v1524
        %v1527 = vmul.f32 %v1516, %v1525
        %v1528 = vmul.f32 %v1518, %v1526
        %1529 = vrot.lane.b32.xlu0 %v665, 48
        %v1530 = vpop.permute.xlu0 %1529
        %v1533 = vsel %vm682, %v1527, 0
        %1535 = vmatprep.subr.mxu0 0.0
        %1536 = vmatpush1.msra.mxu0 %v1530
        %1537 = vmatprep.subr.mxu0 0.0
        %1538 = vmatpush1.msra.mxu0 0.0
        %1539 = vmatprep.subr.mxu0 0.0
        %1540 = vmatpush1.msra.mxu0 0.0
        %1541 = vmatprep.subr.mxu0 0.0
        %1542 = vmatpush1.msra.mxu0 0.0
        %1543 = vmatprep.subr.mxu0 0.0
        %1544 = vmatpush1.msra.mxu0 0.0
        %1545 = vmatprep.subr.mxu0 0.0
        %1546 = vmatpush1.msra.mxu0 0.0
        %1547 = vmatprep.subr.mxu0 0.0
        %1548 = vmatpush1.msra.mxu0 0.0
        %1549 = vmatprep.subr.mxu0 0.0
        %1550 = vmatpush1.msra.mxu0 0.0
        %1551 = vmatprep.subr.mxu0 0.0
        %1552 = vmatpush1.msra.mxu0 0.0
        %1553 = vmatprep.subr.mxu0 0.0
        %1554 = vmatpush1.msra.mxu0 0.0
        %1555 = vmatprep.subr.mxu0 0.0
        %1556 = vmatpush1.msra.mxu0 0.0
        %1557 = vmatprep.subr.mxu0 0.0
        %1558 = vmatpush1.msra.mxu0 0.0
        %1559 = vmatprep.subr.mxu0 0.0
        %1560 = vmatpush1.msra.mxu0 0.0
        %1561 = vmatprep.subr.mxu0 0.0
        %1562 = vmatpush1.msra.mxu0 0.0
        %1563 = vmatprep.subr.mxu0 0.0
        %1564 = vmatpush1.msra.mxu0 0.0
        %1565 = vmatprep.subr.mxu0 0.0
        %1566 = vmatpush1.msra.mxu0 0.0
        %1567 = vmatprep.subr.mxu0 0.0
        %1568 = vmatpush1.msra.mxu0 0.0
        %1569 = vmatprep.subr.mxu0 0.0
        %1570 = vmatpush1.msra.mxu0 0.0
        %1571 = vmatprep.subr.mxu0 0.0
        %1572 = vmatpush1.msra.mxu0 0.0
        %1573 = vmatprep.subr.mxu0 0.0
        %1574 = vmatpush1.msra.mxu0 0.0
        %1575 = vmatprep.subr.mxu0 0.0
        %1576 = vmatpush1.msra.mxu0 0.0
        %1577 = vmatprep.subr.mxu0 0.0
        %1578 = vmatpush1.msra.mxu0 0.0
        %1579 = vmatprep.subr.mxu0 0.0
        %1580 = vmatpush1.msra.mxu0 0.0
        %1581 = vmatprep.subr.mxu0 0.0
        %1582 = vmatpush1.msra.mxu0 0.0
        %1583 = vmatprep.subr.mxu0 0.0
        %1584 = vmatpush1.msra.mxu0 0.0
        %1585 = vmatprep.subr.mxu0 0.0
        %1586 = vmatpush1.msra.mxu0 0.0
        %1587 = vmatprep.subr.mxu0 0.0
        %1588 = vmatpush1.msra.mxu0 0.0
        %1589 = vmatprep.subr.mxu0 0.0
        %1590 = vmatpush1.msra.mxu0 0.0
        %1591 = vmatprep.subr.mxu0 0.0
        %1592 = vmatpush1.msra.mxu0 0.0
        %1593 = vmatprep.subr.mxu0 0.0
        %1594 = vmatpush1.msra.mxu0 0.0
        %1595 = vmatprep.subr.mxu0 0.0
        %1596 = vmatpush1.msra.mxu0 0.0
        %1597 = vmatprep.subr.mxu0 0.0
        %1598 = vmatpush1.msra.mxu0 0.0
        %1599 = vmatprep.mubr.f32.mxu0 0.0
        %1600 = vmatmul.mubr.f32.gmra.mrb[0].mxu0 %v1533
        %v1601 = vpop.f32.mrb[0].mxu0
        %v1602 = vadd.f32 0.0, %v1601
        %v1603 = vpop.f32.mrb[0].mxu0
        %1604 = vdwg.mxu0
        %1605 = vrot.lane.b32.xlu0 %v670, 48
        %v1606 = vpop.permute.xlu0 %1605
        %v1609 = vsel %vm682, %v1528, 0
        %1611 = vmatprep.subr.mxu0 0.0
        %1612 = vmatpush1.msra.mxu0 %v1606
        %1613 = vmatprep.subr.mxu0 0.0
        %1614 = vmatpush1.msra.mxu0 0.0
        %1615 = vmatprep.subr.mxu0 0.0
        %1616 = vmatpush1.msra.mxu0 0.0
        %1617 = vmatprep.subr.mxu0 0.0
        %1618 = vmatpush1.msra.mxu0 0.0
        %1619 = vmatprep.subr.mxu0 0.0
        %1620 = vmatpush1.msra.mxu0 0.0
        %1621 = vmatprep.subr.mxu0 0.0
        %1622 = vmatpush1.msra.mxu0 0.0
        %1623 = vmatprep.subr.mxu0 0.0
        %1624 = vmatpush1.msra.mxu0 0.0
        %1625 = vmatprep.subr.mxu0 0.0
        %1626 = vmatpush1.msra.mxu0 0.0
        %1627 = vmatprep.subr.mxu0 0.0
        %1628 = vmatpush1.msra.mxu0 0.0
        %1629 = vmatprep.subr.mxu0 0.0
        %1630 = vmatpush1.msra.mxu0 0.0
        %1631 = vmatprep.subr.mxu0 0.0
        %1632 = vmatpush1.msra.mxu0 0.0
        %1633 = vmatprep.subr.mxu0 0.0
        %1634 = vmatpush1.msra.mxu0 0.0
        %1635 = vmatprep.subr.mxu0 0.0
        %1636 = vmatpush1.msra.mxu0 0.0
        %1637 = vmatprep.subr.mxu0 0.0
        %1638 = vmatpush1.msra.mxu0 0.0
        %1639 = vmatprep.subr.mxu0 0.0
        %1640 = vmatpush1.msra.mxu0 0.0
        %1641 = vmatprep.subr.mxu0 0.0
        %1642 = vmatpush1.msra.mxu0 0.0
        %1643 = vmatprep.subr.mxu0 0.0
        %1644 = vmatpush1.msra.mxu0 0.0
        %1645 = vmatprep.subr.mxu0 0.0
        %1646 = vmatpush1.msra.mxu0 0.0
        %1647 = vmatprep.subr.mxu0 0.0
        %1648 = vmatpush1.msra.mxu0 0.0
        %1649 = vmatprep.subr.mxu0 0.0
        %1650 = vmatpush1.msra.mxu0 0.0
        %1651 = vmatprep.subr.mxu0 0.0
        %1652 = vmatpush1.msra.mxu0 0.0
        %1653 = vmatprep.subr.mxu0 0.0
        %1654 = vmatpush1.msra.mxu0 0.0
        %1655 = vmatprep.subr.mxu0 0.0
        %1656 = vmatpush1.msra.mxu0 0.0
        %1657 = vmatprep.subr.mxu0 0.0
        %1658 = vmatpush1.msra.mxu0 0.0
        %1659 = vmatprep.subr.mxu0 0.0
        %1660 = vmatpush1.msra.mxu0 0.0
        %1661 = vmatprep.subr.mxu0 0.0
        %1662 = vmatpush1.msra.mxu0 0.0
        %1663 = vmatprep.subr.mxu0 0.0
        %1664 = vmatpush1.msra.mxu0 0.0
        %1665 = vmatprep.subr.mxu0 0.0
        %1666 = vmatpush1.msra.mxu0 0.0
        %1667 = vmatprep.subr.mxu0 0.0
        %1668 = vmatpush1.msra.mxu0 0.0
        %1669 = vmatprep.subr.mxu0 0.0
        %1670 = vmatpush1.msra.mxu0 0.0
        %1671 = vmatprep.subr.mxu0 0.0
        %1672 = vmatpush1.msra.mxu0 0.0
        %1673 = vmatprep.subr.mxu0 0.0
        %1674 = vmatpush1.msra.mxu0 0.0
        %1675 = vmatprep.mubr.f32.mxu0 0.0
        %1676 = vmatmul.mubr.f32.gmra.mrb[0].mxu0 %v1609
        %v1677 = vpop.f32.mrb[0].mxu0
        %v1678 = vadd.f32 0.0, %v1677
        %v1679 = vpop.f32.mrb[0].mxu0
        %1680 = vdwg.mxu0
        %1683 = vrot.lane.b32.xlu0 %v1602, 16
        %v1684 = vpop.permute.xlu0 %1683
        %1685 = vrot.lane.b32.xlu0 %v1678, 16
        %v1686 = vpop.permute.xlu0 %1685
        %vm1689 = vcmask 195712
        %1690 = vst.msk [vmem:[#allocation2] sm:$0xff] %vm1689, %v1684
        %1691 = vst.msk [vmem:[#allocation2 + $0x8] sm:$0xff] %vm1689, %v1686
        %1692 = vrot.lane.b32.xlu0 %v665, 104
        %v1693 = vpop.permute.xlu0 %1692
        %1694 = vrot.lane.b32.xlu0 %v665, 72
        %v1695 = vpop.permute.xlu0 %1694
        %v1696 = vsel %vm682, %v1693, 0
        %v1698 = vsel %vm682, %v1695, 0
        %1700 = vmatprep.subr.mxu0 0.0
        %1701 = vmatpush1.xpose.msra.mxu0 %v1698
        %1702 = vmatprep.subr.mxu0 0.0
        %1703 = vmatpush1.xpose.msra.mxu0 0.0
        %1704 = vmatprep.subr.mxu0 0.0
        %1705 = vmatpush1.xpose.msra.mxu0 0.0
        %1706 = vmatprep.subr.mxu0 0.0
        %1707 = vmatpush1.xpose.msra.mxu0 0.0
        %1708 = vmatprep.subr.mxu0 0.0
        %1709 = vmatpush1.xpose.msra.mxu0 0.0
        %1710 = vmatprep.subr.mxu0 0.0
        %1711 = vmatpush1.xpose.msra.mxu0 0.0
        %1712 = vmatprep.subr.mxu0 0.0
        %1713 = vmatpush1.xpose.msra.mxu0 0.0
        %1714 = vmatprep.subr.mxu0 0.0
        %1715 = vmatpush1.xpose.msra.mxu0 0.0
        %1716 = vmatprep.subr.mxu0 0.0
        %1717 = vmatpush1.xpose.msra.mxu0 0.0
        %1718 = vmatprep.subr.mxu0 0.0
        %1719 = vmatpush1.xpose.msra.mxu0 0.0
        %1720 = vmatprep.subr.mxu0 0.0
        %1721 = vmatpush1.xpose.msra.mxu0 0.0
        %1722 = vmatprep.subr.mxu0 0.0
        %1723 = vmatpush1.xpose.msra.mxu0 0.0
        %1724 = vmatprep.subr.mxu0 0.0
        %1725 = vmatpush1.xpose.msra.mxu0 0.0
        %1726 = vmatprep.subr.mxu0 0.0
        %1727 = vmatpush1.xpose.msra.mxu0 0.0
        %1728 = vmatprep.subr.mxu0 0.0
        %1729 = vmatpush1.xpose.msra.mxu0 0.0
        %1730 = vmatprep.subr.mxu0 0.0
        %1731 = vmatpush1.xpose.msra.mxu0 0.0
        %1732 = vmatprep.subr.mxu0 0.0
        %1733 = vmatpush1.xpose.msra.mxu0 0.0
        %1734 = vmatprep.subr.mxu0 0.0
        %1735 = vmatpush1.xpose.msra.mxu0 0.0
        %1736 = vmatprep.subr.mxu0 0.0
        %1737 = vmatpush1.xpose.msra.mxu0 0.0
        %1738 = vmatprep.subr.mxu0 0.0
        %1739 = vmatpush1.xpose.msra.mxu0 0.0
        %1740 = vmatprep.subr.mxu0 0.0
        %1741 = vmatpush1.xpose.msra.mxu0 0.0
        %1742 = vmatprep.subr.mxu0 0.0
        %1743 = vmatpush1.xpose.msra.mxu0 0.0
        %1744 = vmatprep.subr.mxu0 0.0
        %1745 = vmatpush1.xpose.msra.mxu0 0.0
        %1746 = vmatprep.subr.mxu0 0.0
        %1747 = vmatpush1.xpose.msra.mxu0 0.0
        %1748 = vmatprep.subr.mxu0 0.0
        %1749 = vmatpush1.xpose.msra.mxu0 0.0
        %1750 = vmatprep.subr.mxu0 0.0
        %1751 = vmatpush1.xpose.msra.mxu0 0.0
        %1752 = vmatprep.subr.mxu0 0.0
        %1753 = vmatpush1.xpose.msra.mxu0 0.0
        %1754 = vmatprep.subr.mxu0 0.0
        %1755 = vmatpush1.xpose.msra.mxu0 0.0
        %1756 = vmatprep.subr.mxu0 0.0
        %1757 = vmatpush1.xpose.msra.mxu0 0.0
        %1758 = vmatprep.subr.mxu0 0.0
        %1759 = vmatpush1.xpose.msra.mxu0 0.0
        %1760 = vmatprep.subr.mxu0 0.0
        %1761 = vmatpush1.xpose.msra.mxu0 0.0
        %1762 = vmatprep.subr.mxu0 0.0
        %1763 = vmatpush1.xpose.msra.mxu0 0.0
        %1764 = vmatprep.mubr.f32.mxu0 0.0
        %1765 = vmatmul.mubr.f32.gmra.mrb[0].mxu0 %v1696
        %v1766 = vpop.f32.mrb[0].mxu0
        %v1767 = vadd.f32 %v678, %v1766
        %v1768 = vpop.f32.mrb[0].mxu0
        %1769 = vdwg.mxu0
        %1770 = vrot.lane.b32.xlu0 %v670, 104
        %v1771 = vpop.permute.xlu0 %1770
        %1772 = vrot.lane.b32.xlu0 %v670, 72
        %v1773 = vpop.permute.xlu0 %1772
        %v1774 = vsel %vm682, %v1771, 0
        %v1776 = vsel %vm682, %v1773, 0
        %1778 = vmatprep.subr.mxu0 0.0
        %1779 = vmatpush1.xpose.msra.mxu0 %v1776
        %1780 = vmatprep.subr.mxu0 0.0
        %1781 = vmatpush1.xpose.msra.mxu0 0.0
        %1782 = vmatprep.subr.mxu0 0.0
        %1783 = vmatpush1.xpose.msra.mxu0 0.0
        %1784 = vmatprep.subr.mxu0 0.0
        %1785 = vmatpush1.xpose.msra.mxu0 0.0
        %1786 = vmatprep.subr.mxu0 0.0
        %1787 = vmatpush1.xpose.msra.mxu0 0.0
        %1788 = vmatprep.subr.mxu0 0.0
        %1789 = vmatpush1.xpose.msra.mxu0 0.0
        %1790 = vmatprep.subr.mxu0 0.0
        %1791 = vmatpush1.xpose.msra.mxu0 0.0
        %1792 = vmatprep.subr.mxu0 0.0
        %1793 = vmatpush1.xpose.msra.mxu0 0.0
        %1794 = vmatprep.subr.mxu0 0.0
        %1795 = vmatpush1.xpose.msra.mxu0 0.0
        %1796 = vmatprep.subr.mxu0 0.0
        %1797 = vmatpush1.xpose.msra.mxu0 0.0
        %1798 = vmatprep.subr.mxu0 0.0
        %1799 = vmatpush1.xpose.msra.mxu0 0.0
        %1800 = vmatprep.subr.mxu0 0.0
        %1801 = vmatpush1.xpose.msra.mxu0 0.0
        %1802 = vmatprep.subr.mxu0 0.0
        %1803 = vmatpush1.xpose.msra.mxu0 0.0
        %1804 = vmatprep.subr.mxu0 0.0
        %1805 = vmatpush1.xpose.msra.mxu0 0.0
        %1806 = vmatprep.subr.mxu0 0.0
        %1807 = vmatpush1.xpose.msra.mxu0 0.0
        %1808 = vmatprep.subr.mxu0 0.0
        %1809 = vmatpush1.xpose.msra.mxu0 0.0
        %1810 = vmatprep.subr.mxu0 0.0
        %1811 = vmatpush1.xpose.msra.mxu0 0.0
        %1812 = vmatprep.subr.mxu0 0.0
        %1813 = vmatpush1.xpose.msra.mxu0 0.0
        %1814 = vmatprep.subr.mxu0 0.0
        %1815 = vmatpush1.xpose.msra.mxu0 0.0
        %1816 = vmatprep.subr.mxu0 0.0
        %1817 = vmatpush1.xpose.msra.mxu0 0.0
        %1818 = vmatprep.subr.mxu0 0.0
        %1819 = vmatpush1.xpose.msra.mxu0 0.0
        %1820 = vmatprep.subr.mxu0 0.0
        %1821 = vmatpush1.xpose.msra.mxu0 0.0
        %1822 = vmatprep.subr.mxu0 0.0
        %1823 = vmatpush1.xpose.msra.mxu0 0.0
        %1824 = vmatprep.subr.mxu0 0.0
        %1825 = vmatpush1.xpose.msra.mxu0 0.0
        %1826 = vmatprep.subr.mxu0 0.0
        %1827 = vmatpush1.xpose.msra.mxu0 0.0
        %1828 = vmatprep.subr.mxu0 0.0
        %1829 = vmatpush1.xpose.msra.mxu0 0.0
        %1830 = vmatprep.subr.mxu0 0.0
        %1831 = vmatpush1.xpose.msra.mxu0 0.0
        %1832 = vmatprep.subr.mxu0 0.0
        %1833 = vmatpush1.xpose.msra.mxu0 0.0
        %1834 = vmatprep.subr.mxu0 0.0
        %1835 = vmatpush1.xpose.msra.mxu0 0.0
        %1836 = vmatprep.subr.mxu0 0.0
        %1837 = vmatpush1.xpose.msra.mxu0 0.0
        %1838 = vmatprep.subr.mxu0 0.0
        %1839 = vmatpush1.xpose.msra.mxu0 0.0
        %1840 = vmatprep.subr.mxu0 0.0
        %1841 = vmatpush1.xpose.msra.mxu0 0.0
        %1842 = vmatprep.mubr.f32.mxu0 0.0
        %1843 = vmatmul.mubr.f32.gmra.mrb[0].mxu0 %v1774
        %v1844 = vpop.f32.mrb[0].mxu0
        %v1845 = vadd.f32 %v678, %v1844
        %v1846 = vpop.f32.mrb[0].mxu0
        %1847 = vdwg.mxu0
        %v1848 = vsel %vm682, %v1767, -inf
        %1849 = vmax.xlane.f32.xlu0 %v1848
        %v1850 = vpop.xlane.xlu0 %1849
        %v1851 = vsel %vm682, %v1845, -inf
        %1852 = vmax.xlane.f32.xlu0 %v1851
        %v1853 = vpop.xlane.xlu0 %1852
        %v1854 = vsub.f32 %v1767, %v1850
        %v1855 = vsub.f32 %v1845, %v1853
        %v1856 = vmul.f32 %v1854, 1.442695
        %v1857 = vpow.pop %v1856
        %v1858 = vmul.f32 %v1855, 1.442695
        %v1859 = vpow.pop %v1858
        %v1860 = vsel %vm682, %v1857, 0.0
        %1861 = vadd.xlane.f32.xlu0 %v1860
        %v1862 = vpop.xlane.xlu0 %1861
        %v1863 = vsel %vm682, %v1859, 0.0
        %1864 = vadd.xlane.f32.xlu0 %v1863
        %v1865 = vpop.xlane.xlu0 %1864
        %v1866 = vrcp.pop %v1862
        %v1867 = vrcp.pop %v1865
        %v1868 = vmul.f32 %v1857, %v1866
        %v1869 = vmul.f32 %v1859, %v1867
        %1870 = vrot.lane.b32.xlu0 %v665, 40
        %v1871 = vpop.permute.xlu0 %1870
        %v1874 = vsel %vm682, %v1868, 0
        %1876 = vmatprep.subr.mxu0 0.0
        %1877 = vmatpush1.msra.mxu0 %v1871
        %1878 = vmatprep.subr.mxu0 0.0
        %1879 = vmatpush1.msra.mxu0 0.0
        %1880 = vmatprep.subr.mxu0 0.0
        %1881 = vmatpush1.msra.mxu0 0.0
        %1882 = vmatprep.subr.mxu0 0.0
        %1883 = vmatpush1.msra.mxu0 0.0
        %1884 = vmatprep.subr.mxu0 0.0
        %1885 = vmatpush1.msra.mxu0 0.0
        %1886 = vmatprep.subr.mxu0 0.0
        %1887 = vmatpush1.msra.mxu0 0.0
        %1888 = vmatprep.subr.mxu0 0.0
        %1889 = vmatpush1.msra.mxu0 0.0
        %1890 = vmatprep.subr.mxu0 0.0
        %1891 = vmatpush1.msra.mxu0 0.0
        %1892 = vmatprep.subr.mxu0 0.0
        %1893 = vmatpush1.msra.mxu0 0.0
        %1894 = vmatprep.subr.mxu0 0.0
        %1895 = vmatpush1.msra.mxu0 0.0
        %1896 = vmatprep.subr.mxu0 0.0
        %1897 = vmatpush1.msra.mxu0 0.0
        %1898 = vmatprep.subr.mxu0 0.0
        %1899 = vmatpush1.msra.mxu0 0.0
        %1900 = vmatprep.subr.mxu0 0.0
        %1901 = vmatpush1.msra.mxu0 0.0
        %1902 = vmatprep.subr.mxu0 0.0
        %1903 = vmatpush1.msra.mxu0 0.0
        %1904 = vmatprep.subr.mxu0 0.0
        %1905 = vmatpush1.msra.mxu0 0.0
        %1906 = vmatprep.subr.mxu0 0.0
        %1907 = vmatpush1.msra.mxu0 0.0
        %1908 = vmatprep.subr.mxu0 0.0
        %1909 = vmatpush1.msra.mxu0 0.0
        %1910 = vmatprep.subr.mxu0 0.0
        %1911 = vmatpush1.msra.mxu0 0.0
        %1912 = vmatprep.subr.mxu0 0.0
        %1913 = vmatpush1.msra.mxu0 0.0
        %1914 = vmatprep.subr.mxu0 0.0
        %1915 = vmatpush1.msra.mxu0 0.0
        %1916 = vmatprep.subr.mxu0 0.0
        %1917 = vmatpush1.msra.mxu0 0.0
        %1918 = vmatprep.subr.mxu0 0.0
        %1919 = vmatpush1.msra.mxu0 0.0
        %1920 = vmatprep.subr.mxu0 0.0
        %1921 = vmatpush1.msra.mxu0 0.0
        %1922 = vmatprep.subr.mxu0 0.0
        %1923 = vmatpush1.msra.mxu0 0.0
        %1924 = vmatprep.subr.mxu0 0.0
        %1925 = vmatpush1.msra.mxu0 0.0
        %1926 = vmatprep.subr.mxu0 0.0
        %1927 = vmatpush1.msra.mxu0 0.0
        %1928 = vmatprep.subr.mxu0 0.0
        %1929 = vmatpush1.msra.mxu0 0.0
        %1930 = vmatprep.subr.mxu0 0.0
        %1931 = vmatpush1.msra.mxu0 0.0
        %1932 = vmatprep.subr.mxu0 0.0
        %1933 = vmatpush1.msra.mxu0 0.0
        %1934 = vmatprep.subr.mxu0 0.0
        %1935 = vmatpush1.msra.mxu0 0.0
        %1936 = vmatprep.subr.mxu0 0.0
        %1937 = vmatpush1.msra.mxu0 0.0
        %1938 = vmatprep.subr.mxu0 0.0
        %1939 = vmatpush1.msra.mxu0 0.0
        %1940 = vmatprep.mubr.f32.mxu0 0.0
        %1941 = vmatmul.mubr.f32.gmra.mrb[0].mxu0 %v1874
        %v1942 = vpop.f32.mrb[0].mxu0
        %v1943 = vadd.f32 0.0, %v1942
        %v1944 = vpop.f32.mrb[0].mxu0
        %1945 = vdwg.mxu0
        %1946 = vrot.lane.b32.xlu0 %v670, 40
        %v1947 = vpop.permute.xlu0 %1946
        %v1950 = vsel %vm682, %v1869, 0
        %1952 = vmatprep.subr.mxu0 0.0
        %1953 = vmatpush1.msra.mxu0 %v1947
        %1954 = vmatprep.subr.mxu0 0.0
        %1955 = vmatpush1.msra.mxu0 0.0
        %1956 = vmatprep.subr.mxu0 0.0
        %1957 = vmatpush1.msra.mxu0 0.0
        %1958 = vmatprep.subr.mxu0 0.0
        %1959 = vmatpush1.msra.mxu0 0.0
        %1960 = vmatprep.subr.mxu0 0.0
        %1961 = vmatpush1.msra.mxu0 0.0
        %1962 = vmatprep.subr.mxu0 0.0
        %1963 = vmatpush1.msra.mxu0 0.0
        %1964 = vmatprep.subr.mxu0 0.0
        %1965 = vmatpush1.msra.mxu0 0.0
        %1966 = vmatprep.subr.mxu0 0.0
        %1967 = vmatpush1.msra.mxu0 0.0
        %1968 = vmatprep.subr.mxu0 0.0
        %1969 = vmatpush1.msra.mxu0 0.0
        %1970 = vmatprep.subr.mxu0 0.0
        %1971 = vmatpush1.msra.mxu0 0.0
        %1972 = vmatprep.subr.mxu0 0.0
        %1973 = vmatpush1.msra.mxu0 0.0
        %1974 = vmatprep.subr.mxu0 0.0
        %1975 = vmatpush1.msra.mxu0 0.0
        %1976 = vmatprep.subr.mxu0 0.0
        %1977 = vmatpush1.msra.mxu0 0.0
        %1978 = vmatprep.subr.mxu0 0.0
        %1979 = vmatpush1.msra.mxu0 0.0
        %1980 = vmatprep.subr.mxu0 0.0
        %1981 = vmatpush1.msra.mxu0 0.0
        %1982 = vmatprep.subr.mxu0 0.0
        %1983 = vmatpush1.msra.mxu0 0.0
        %1984 = vmatprep.subr.mxu0 0.0
        %1985 = vmatpush1.msra.mxu0 0.0
        %1986 = vmatprep.subr.mxu0 0.0
        %1987 = vmatpush1.msra.mxu0 0.0
        %1988 = vmatprep.subr.mxu0 0.0
        %1989 = vmatpush1.msra.mxu0 0.0
        %1990 = vmatprep.subr.mxu0 0.0
        %1991 = vmatpush1.msra.mxu0 0.0
        %1992 = vmatprep.subr.mxu0 0.0
        %1993 = vmatpush1.msra.mxu0 0.0
        %1994 = vmatprep.subr.mxu0 0.0
        %1995 = vmatpush1.msra.mxu0 0.0
        %1996 = vmatprep.subr.mxu0 0.0
        %1997 = vmatpush1.msra.mxu0 0.0
        %1998 = vmatprep.subr.mxu0 0.0
        %1999 = vmatpush1.msra.mxu0 0.0
        %2000 = vmatprep.subr.mxu0 0.0
        %2001 = vmatpush1.msra.mxu0 0.0
        %2002 = vmatprep.subr.mxu0 0.0
        %2003 = vmatpush1.msra.mxu0 0.0
        %2004 = vmatprep.subr.mxu0 0.0
        %2005 = vmatpush1.msra.mxu0 0.0
        %2006 = vmatprep.subr.mxu0 0.0
        %2007 = vmatpush1.msra.mxu0 0.0
        %2008 = vmatprep.subr.mxu0 0.0
        %2009 = vmatpush1.msra.mxu0 0.0
        %2010 = vmatprep.subr.mxu0 0.0
        %2011 = vmatpush1.msra.mxu0 0.0
        %2012 = vmatprep.subr.mxu0 0.0
        %2013 = vmatpush1.msra.mxu0 0.0
        %2014 = vmatprep.subr.mxu0 0.0
        %2015 = vmatpush1.msra.mxu0 0.0
        %2016 = vmatprep.mubr.f32.mxu0 0.0
        %2017 = vmatmul.mubr.f32.gmra.mrb[0].mxu0 %v1950
        %v2018 = vpop.f32.mrb[0].mxu0
        %v2019 = vadd.f32 0.0, %v2018
        %v2020 = vpop.f32.mrb[0].mxu0
        %2021 = vdwg.mxu0
        %2024 = vrot.lane.b32.xlu0 %v1943, 24
        %v2025 = vpop.permute.xlu0 %2024
        %2026 = vrot.lane.b32.xlu0 %v2019, 24
        %v2027 = vpop.permute.xlu0 %2026
        %vm2030 = vcmask 261312
        %2031 = vst.msk [vmem:[#allocation2] sm:$0xff] %vm2030, %v2025
        %2032 = vst.msk [vmem:[#allocation2 + $0x8] sm:$0xff] %vm2030, %v2027
        %v2033 = vld [vmem:[#allocation2] sm:$0xff]
        %v2034 = vld [vmem:[#allocation2 + $0x8] sm:$0xff]
        %v2035 = vld [vmem:[#allocation11] sm:$0xff]
        %v2036 = vld [vmem:[#allocation11 + $0x8] sm:$0xff]
        %v2037 = vld [vmem:[#allocation11 + $0x10] sm:$0xff]
        %v2038 = vld [vmem:[#allocation11 + $0x18] sm:$0xff]
        %v2040 = vsel %vm544, %v2033, 0
        %v2043 = vsel %vm544, %v2034, 0
        %2045 = vmatprep.subr.mxu0 0.0
        %2046 = vmatpush1.msra.mxu0 %v2035
        %2047 = vmatprep.subr.mxu0 0.0
        %2048 = vmatpush1.msra.mxu0 %v2036
        %2049 = vmatprep.subr.mxu0 0.0
        %2050 = vmatpush1.msra.mxu0 %v2037
        %2051 = vmatprep.subr.mxu0 0.0
        %2052 = vmatpush1.msra.mxu0 %v2038
        %2053 = vmatprep.subr.mxu0 0.0
        %2054 = vmatpush1.msra.mxu0 0.0
        %2055 = vmatprep.subr.mxu0 0.0
        %2056 = vmatpush1.msra.mxu0 0.0
        %2057 = vmatprep.subr.mxu0 0.0
        %2058 = vmatpush1.msra.mxu0 0.0
        %2059 = vmatprep.subr.mxu0 0.0
        %2060 = vmatpush1.msra.mxu0 0.0
        %2061 = vmatprep.subr.mxu0 0.0
        %2062 = vmatpush1.msra.mxu0 0.0
        %2063 = vmatprep.subr.mxu0 0.0
        %2064 = vmatpush1.msra.mxu0 0.0
        %2065 = vmatprep.subr.mxu0 0.0
        %2066 = vmatpush1.msra.mxu0 0.0
        %2067 = vmatprep.subr.mxu0 0.0
        %2068 = vmatpush1.msra.mxu0 0.0
        %2069 = vmatprep.subr.mxu0 0.0
        %2070 = vmatpush1.msra.mxu0 0.0
        %2071 = vmatprep.subr.mxu0 0.0
        %2072 = vmatpush1.msra.mxu0 0.0
        %2073 = vmatprep.subr.mxu0 0.0
        %2074 = vmatpush1.msra.mxu0 0.0
        %2075 = vmatprep.subr.mxu0 0.0
        %2076 = vmatpush1.msra.mxu0 0.0
        %2077 = vmatprep.subr.mxu0 0.0
        %2078 = vmatpush1.msra.mxu0 0.0
        %2079 = vmatprep.subr.mxu0 0.0
        %2080 = vmatpush1.msra.mxu0 0.0
        %2081 = vmatprep.subr.mxu0 0.0
        %2082 = vmatpush1.msra.mxu0 0.0
        %2083 = vmatprep.subr.mxu0 0.0
        %2084 = vmatpush1.msra.mxu0 0.0
        %2085 = vmatprep.subr.mxu0 0.0
        %2086 = vmatpush1.msra.mxu0 0.0
        %2087 = vmatprep.subr.mxu0 0.0
        %2088 = vmatpush1.msra.mxu0 0.0
        %2089 = vmatprep.subr.mxu0 0.0
        %2090 = vmatpush1.msra.mxu0 0.0
        %2091 = vmatprep.subr.mxu0 0.0
        %2092 = vmatpush1.msra.mxu0 0.0
        %2093 = vmatprep.subr.mxu0 0.0
        %2094 = vmatpush1.msra.mxu0 0.0
        %2095 = vmatprep.subr.mxu0 0.0
        %2096 = vmatpush1.msra.mxu0 0.0
        %2097 = vmatprep.subr.mxu0 0.0
        %2098 = vmatpush1.msra.mxu0 0.0
        %2099 = vmatprep.subr.mxu0 0.0
        %2100 = vmatpush1.msra.mxu0 0.0
        %2101 = vmatprep.subr.mxu0 0.0
        %2102 = vmatpush1.msra.mxu0 0.0
        %2103 = vmatprep.subr.mxu0 0.0
        %2104 = vmatpush1.msra.mxu0 0.0
        %2105 = vmatprep.subr.mxu0 0.0
        %2106 = vmatpush1.msra.mxu0 0.0
        %2107 = vmatprep.subr.mxu0 0.0
        %2108 = vmatpush1.msra.mxu0 0.0
        %2109 = vmatprep.mubr.f32.mxu0 0.0
        %2110 = vmatmul.mubr.f32.gmra.mrb[0].mxu0 %v2040
        %v2111 = vpop.f32.mrb[0].mxu0
        %v2112 = vadd.f32 0.0, %v2111
        %v2113 = vpop.f32.mrb[0].mxu0
        %2114 = vmatprep.mubr.f32.mxu0 0.0
        %2115 = vmatmul.mubr.f32.gmra.mrb[0].mxu0 %v2043
        %v2116 = vpop.f32.mrb[0].mxu0
        %v2117 = vadd.f32 0.0, %v2116
        %v2118 = vpop.f32.mrb[0].mxu0
        %2119 = vdwg.mxu0
        %v2120 = vadd.f32 %v586, %v2112
        %v2121 = vadd.f32 %v587, %v2117
        %v2122 = vld [vmem:[#allocation12] sm:$0x1]
        %v2123 = vld [vmem:[#allocation14] sm:$0x1]
        %v2124 = vsel %vm544, %v2120, 0.0
        %2125 = vadd.xlane.f32.xlu0 %v2124
        %v2126 = vpop.xlane.xlu0 %2125
        %v2127 = vsel %vm544, %v2121, 0.0
        %2128 = vadd.xlane.f32.xlu0 %v2127
        %v2129 = vpop.xlane.xlu0 %2128
        %v2130 = vmul.f32 %v2126, %v551
        %v2131 = vmul.f32 %v2129, %v551
        %v2132 = vsub.f32 %v2120, %v2130
        %v2133 = vsub.f32 %v2121, %v2131
        %v2134 = vmul.f32 %v2132, %v2132
        %v2135 = vmul.f32 %v2133, %v2133
        %v2136 = vsel %vm544, %v2134, 0.0
        %2137 = vadd.xlane.f32.xlu0 %v2136
        %v2138 = vpop.xlane.xlu0 %2137
        %v2139 = vsel %vm544, %v2135, 0.0
        %2140 = vadd.xlane.f32.xlu0 %v2139
        %v2141 = vpop.xlane.xlu0 %2140
        %v2142 = vmul.f32 %v2138, %v551
        %v2143 = vmul.f32 %v2141, %v551
        %v2144 = vadd.f32 %v2142, 1e-05
        %v2145 = vadd.f32 %v2143, 1e-05
        %v2146 = vrsqrt.pop %v2144
        %v2147 = vrsqrt.pop %v2145
        %v2148 = vmul.f32 %v2132, %v2146
        %v2149 = vmul.f32 %v2133, %v2147
        %v2151 = vlaneseq
        %v2152 = vshrl.u32 %v2151, 7
        %v2153 = vsub.s32 0, %v2152
        %v2154 = vrot.slane %v2122, %v2153
        %v2156 = vmul.f32 %v2148, %v2154
        %v2157 = vmul.f32 %v2149, %v2154
        %v2159 = vlaneseq
        %v2160 = vshrl.u32 %v2159, 7
        %v2161 = vsub.s32 0, %v2160
        %v2162 = vrot.slane %v2123, %v2161
        %v2164 = vadd.f32 %v2156, %v2162
        %v2165 = vadd.f32 %v2157, %v2162
        %v2166 = vld [vmem:[#allocation15] sm:$0xff]
        %v2167 = vld [vmem:[#allocation15 + $0x8] sm:$0xff]
        %v2168 = vld [vmem:[#allocation15 + $0x10] sm:$0xff]
        %v2169 = vld [vmem:[#allocation15 + $0x18] sm:$0xff]
        %v2170 = vld [vmem:[#allocation17] sm:$0x1]
        %v2172 = vlaneseq
        %v2173 = vshrl.u32 %v2172, 7
        %v2174 = vsub.s32 0, %v2173
        %v2175 = vrot.slane %v2170, %v2174
        %v2178 = vsel %vm544, %v2164, 0
        %v2181 = vsel %vm544, %v2165, 0
        %2183 = vmatprep.subr.mxu0 0.0
        %2184 = vmatpush1.msra.mxu0 %v2166
        %2185 = vmatprep.subr.mxu0 0.0
        %2186 = vmatpush1.msra.mxu0 %v2167
        %2187 = vmatprep.subr.mxu0 0.0
        %2188 = vmatpush1.msra.mxu0 %v2168
        %2189 = vmatprep.subr.mxu0 0.0
        %2190 = vmatpush1.msra.mxu0 %v2169
        %2191 = vmatprep.subr.mxu0 0.0
        %2192 = vmatpush1.msra.mxu0 0.0
        %2193 = vmatprep.subr.mxu0 0.0
        %2194 = vmatpush1.msra.mxu0 0.0
        %2195 = vmatprep.subr.mxu0 0.0
        %2196 = vmatpush1.msra.mxu0 0.0
        %2197 = vmatprep.subr.mxu0 0.0
        %2198 = vmatpush1.msra.mxu0 0.0
        %2199 = vmatprep.subr.mxu0 0.0
        %2200 = vmatpush1.msra.mxu0 0.0
        %2201 = vmatprep.subr.mxu0 0.0
        %2202 = vmatpush1.msra.mxu0 0.0
        %2203 = vmatprep.subr.mxu0 0.0
        %2204 = vmatpush1.msra.mxu0 0.0
        %2205 = vmatprep.subr.mxu0 0.0
        %2206 = vmatpush1.msra.mxu0 0.0
        %2207 = vmatprep.subr.mxu0 0.0
        %2208 = vmatpush1.msra.mxu0 0.0
        %2209 = vmatprep.subr.mxu0 0.0
        %2210 = vmatpush1.msra.mxu0 0.0
        %2211 = vmatprep.subr.mxu0 0.0
        %2212 = vmatpush1.msra.mxu0 0.0
        %2213 = vmatprep.subr.mxu0 0.0
        %2214 = vmatpush1.msra.mxu0 0.0
        %2215 = vmatprep.subr.mxu0 0.0
        %2216 = vmatpush1.msra.mxu0 0.0
        %2217 = vmatprep.subr.mxu0 0.0
        %2218 = vmatpush1.msra.mxu0 0.0
        %2219 = vmatprep.subr.mxu0 0.0
        %2220 = vmatpush1.msra.mxu0 0.0
        %2221 = vmatprep.subr.mxu0 0.0
        %2222 = vmatpush1.msra.mxu0 0.0
        %2223 = vmatprep.subr.mxu0 0.0
        %2224 = vmatpush1.msra.mxu0 0.0
        %2225 = vmatprep.subr.mxu0 0.0
        %2226 = vmatpush1.msra.mxu0 0.0
        %2227 = vmatprep.subr.mxu0 0.0
        %2228 = vmatpush1.msra.mxu0 0.0
        %2229 = vmatprep.subr.mxu0 0.0
        %2230 = vmatpush1.msra.mxu0 0.0
        %2231 = vmatprep.subr.mxu0 0.0
        %2232 = vmatpush1.msra.mxu0 0.0
        %2233 = vmatprep.subr.mxu0 0.0
        %2234 = vmatpush1.msra.mxu0 0.0
        %2235 = vmatprep.subr.mxu0 0.0
        %2236 = vmatpush1.msra.mxu0 0.0
        %2237 = vmatprep.subr.mxu0 0.0
        %2238 = vmatpush1.msra.mxu0 0.0
        %2239 = vmatprep.subr.mxu0 0.0
        %2240 = vmatpush1.msra.mxu0 0.0
        %2241 = vmatprep.subr.mxu0 0.0
        %2242 = vmatpush1.msra.mxu0 0.0
        %2243 = vmatprep.subr.mxu0 0.0
        %2244 = vmatpush1.msra.mxu0 0.0
        %2245 = vmatprep.subr.mxu0 0.0
        %2246 = vmatpush1.msra.mxu0 0.0
        %2247 = vmatprep.mubr.f32.mxu0 0.0
        %2248 = vmatmul.mubr.f32.gmra.mrb[0].mxu0 %v2178
        %v2249 = vpop.f32.mrb[0].mxu0
        %v2250 = vadd.f32 %v2175, %v2249
        %v2251 = vpop.f32.mrb[0].mxu0
        %2252 = vmatprep.mubr.f32.mxu0 0.0
        %2253 = vmatmul.mubr.f32.gmra.mrb[0].mxu0 %v2181
        %v2254 = vpop.f32.mrb[0].mxu0
        %v2255 = vadd.f32 %v2175, %v2254
        %v2256 = vpop.f32.mrb[0].mxu0
        %2257 = vdwg.mxu0
        %v2258 = vmul.f32 %v2250, 0.5
        %v2259 = vmul.f32 %v2255, 0.5
        %v2260 = vmul.f32 %v2250, 0.044715
        %v2261 = vmul.f32 %v2255, 0.044715
        %v2262 = vmul.f32 %v2260, %v2250
        %v2263 = vmul.f32 %v2261, %v2255
        %v2264 = vmul.f32 %v2262, %v2250
        %v2265 = vmul.f32 %v2263, %v2255
        %v2266 = vadd.f32 %v2250, %v2264
        %v2267 = vadd.f32 %v2255, %v2265
        %v2268 = vmul.f32 %v2266, 0.7978846
        %v2269 = vmul.f32 %v2267, 0.7978846
        %v2270 = vtanh.pop %v2268
        %v2271 = vtanh.pop %v2269
        %v2272 = vadd.f32 %v2270, 1.0
        %v2273 = vadd.f32 %v2271, 1.0
        %v2274 = vmul.f32 %v2258, %v2272
        %v2275 = vmul.f32 %v2259, %v2273
        %v2276 = vld [vmem:[#allocation18] sm:$0xff]
        %v2277 = vld [vmem:[#allocation18 + $0x8] sm:$0xff]
        %v2278 = vld [vmem:[#allocation18 + $0x10] sm:$0xff]
        %v2279 = vld [vmem:[#allocation18 + $0x18] sm:$0xff]
        %v2280 = vld [vmem:[#allocation18 + $0x20] sm:$0xff]
        %v2281 = vld [vmem:[#allocation18 + $0x28] sm:$0xff]
        %v2282 = vld [vmem:[#allocation18 + $0x30] sm:$0xff]
        %v2283 = vld [vmem:[#allocation18 + $0x38] sm:$0xff]
        %v2284 = vld [vmem:[#allocation18 + $0x40] sm:$0xff]
        %v2285 = vld [vmem:[#allocation18 + $0x48] sm:$0xff]
        %v2286 = vld [vmem:[#allocation18 + $0x50] sm:$0xff]
        %v2287 = vld [vmem:[#allocation18 + $0x58] sm:$0xff]
        %v2288 = vld [vmem:[#allocation18 + $0x60] sm:$0xff]
        %v2289 = vld [vmem:[#allocation18 + $0x68] sm:$0xff]
        %v2290 = vld [vmem:[#allocation18 + $0x70] sm:$0xff]
        %v2291 = vld [vmem:[#allocation18 + $0x78] sm:$0xff]
        %v2292 = vld [vmem:[#allocation20] sm:$0x1]
        %v2294 = vlaneseq
        %v2295 = vshrl.u32 %v2294, 7
        %v2296 = vsub.s32 0, %v2295
        %v2297 = vrot.slane %v2292, %v2296
        %2299 = vmatprep.subr.mxu0 0.0
        %2300 = vmatpush1.msra.mxu0 %v2276
        %2301 = vmatprep.subr.mxu0 0.0
        %2302 = vmatpush1.msra.mxu0 %v2277
        %2303 = vmatprep.subr.mxu0 0.0
        %2304 = vmatpush1.msra.mxu0 %v2278
        %2305 = vmatprep.subr.mxu0 0.0
        %2306 = vmatpush1.msra.mxu0 %v2279
        %2307 = vmatprep.subr.mxu0 0.0
        %2308 = vmatpush1.msra.mxu0 %v2280
        %2309 = vmatprep.subr.mxu0 0.0
        %2310 = vmatpush1.msra.mxu0 %v2281
        %2311 = vmatprep.subr.mxu0 0.0
        %2312 = vmatpush1.msra.mxu0 %v2282
        %2313 = vmatprep.subr.mxu0 0.0
        %2314 = vmatpush1.msra.mxu0 %v2283
        %2315 = vmatprep.subr.mxu0 0.0
        %2316 = vmatpush1.msra.mxu0 %v2284
        %2317 = vmatprep.subr.mxu0 0.0
        %2318 = vmatpush1.msra.mxu0 %v2285
        %2319 = vmatprep.subr.mxu0 0.0
        %2320 = vmatpush1.msra.mxu0 %v2286
        %2321 = vmatprep.subr.mxu0 0.0
        %2322 = vmatpush1.msra.mxu0 %v2287
        %2323 = vmatprep.subr.mxu0 0.0
        %2324 = vmatpush1.msra.mxu0 %v2288
        %2325 = vmatprep.subr.mxu0 0.0
        %2326 = vmatpush1.msra.mxu0 %v2289
        %2327 = vmatprep.subr.mxu0 0.0
        %2328 = vmatpush1.msra.mxu0 %v2290
        %2329 = vmatprep.subr.mxu0 0.0
        %2330 = vmatpush1.msra.mxu0 %v2291
        %2331 = vmatprep.subr.mxu0 0.0
        %2332 = vmatpush1.msra.mxu0 0.0
        %2333 = vmatprep.subr.mxu0 0.0
        %2334 = vmatpush1.msra.mxu0 0.0
        %2335 = vmatprep.subr.mxu0 0.0
        %2336 = vmatpush1.msra.mxu0 0.0
        %2337 = vmatprep.subr.mxu0 0.0
        %2338 = vmatpush1.msra.mxu0 0.0
        %2339 = vmatprep.subr.mxu0 0.0
        %2340 = vmatpush1.msra.mxu0 0.0
        %2341 = vmatprep.subr.mxu0 0.0
        %2342 = vmatpush1.msra.mxu0 0.0
        %2343 = vmatprep.subr.mxu0 0.0
        %2344 = vmatpush1.msra.mxu0 0.0
        %2345 = vmatprep.subr.mxu0 0.0
        %2346 = vmatpush1.msra.mxu0 0.0
        %2347 = vmatprep.subr.mxu0 0.0
        %2348 = vmatpush1.msra.mxu0 0.0
        %2349 = vmatprep.subr.mxu0 0.0
        %2350 = vmatpush1.msra.mxu0 0.0
        %2351 = vmatprep.subr.mxu0 0.0
        %2352 = vmatpush1.msra.mxu0 0.0
        %2353 = vmatprep.subr.mxu0 0.0
        %2354 = vmatpush1.msra.mxu0 0.0
        %2355 = vmatprep.subr.mxu0 0.0
        %2356 = vmatpush1.msra.mxu0 0.0
        %2357 = vmatprep.subr.mxu0 0.0
        %2358 = vmatpush1.msra.mxu0 0.0
        %2359 = vmatprep.subr.mxu0 0.0
        %2360 = vmatpush1.msra.mxu0 0.0
        %2361 = vmatprep.subr.mxu0 0.0
        %2362 = vmatpush1.msra.mxu0 0.0
        %2363 = vmatprep.mubr.f32.mxu0 0.0
        %2364 = vmatmul.mubr.f32.gmra.mrb[0].mxu0 %v2274
        %v2365 = vpop.f32.mrb[0].mxu0
        %v2366 = vadd.f32 %v2297, %v2365
        %v2367 = vpop.f32.mrb[0].mxu0
        %2368 = vmatprep.mubr.f32.mxu0 0.0
        %2369 = vmatmul.mubr.f32.gmra.mrb[0].mxu0 %v2275
        %v2370 = vpop.f32.mrb[0].mxu0
        %v2371 = vadd.f32 %v2297, %v2370
        %v2372 = vpop.f32.mrb[0].mxu0
        %2373 = vdwg.mxu0
        %v2374 = vadd.f32 %v2164, %v2366
        %v2375 = vadd.f32 %v2165, %v2371
        %2376 = vst.msk [vmem:[%s537] sm:$0xff] %vm544, %v2374
        %2377 = vst.msk [vmem:[%s537 + $0x8] sm:$0xff] %vm544, %v2375
        %s2378 = sand.u32 %s277, 1
        %s2379 = scalar_lea.sflag [#allocation5], %s2378
        %s2380 = sand.u32 %s277, 1
        %s2381 = smul.addr %s2380, 16
        %s2382 = scalar_lea.vmem [#allocation21], %s2381
        // Predicated region
        $region109: #{tpu_custom_call.1} parent=63 // pred_check
          %p2383 = pneg %p287
        $region110: #{tpu_custom_call.1} parent=63 // pred_check_branch
          %2385 = sbr.rel (%p2383) target = $region112
        $region111: #{tpu_custom_call.1} parent=63 // pred_region
          %s2386 = smul.u32 2, %s33
          %s2388 = ssub.s32 256, 256
          %2389 = vsyncadd %s2379, %s2388
          %s2390 = smul.addr %s2386, 128
          %s2391 = scalar_lea.hbm %s11, %s2390
          %s2392 = sshll.u32 %s2382, 4
          %s2393 = int_to_ptr.vmem [resolvable:$true] %s2392
          %2398 = dma.vmem_to_hbm [thread:$0]  %s2393, 256, %s2391, %s2379, 128, 128, 8
        $region112: #{tpu_custom_call.1} parent=63 // pred_fallthru
          _
      $region64: #{tpu_custom_call.1} parent=5 // pred_fallthru
        _
      %p2399 = scmp.le.s32.totalorder 2, %s28
      // Predicated region
      $region113: #{tpu_custom_call.1} parent=5 // pred_check
        %p2400 = pneg %p2399
      $region114: #{tpu_custom_call.1} parent=5 // pred_check_branch
        %2402 = sbr.rel (%p2400) target = $region116
      $region115: #{tpu_custom_call.1} parent=5 // pred_region
        %s2403 = ssub.s32 %s28, 2
        // Predicated region
        $region117: #{tpu_custom_call.1} parent=115 // pred_check
          %p2404 = pneg %p293
        $region118: #{tpu_custom_call.1} parent=115 // pred_check_branch
          %2406 = sbr.rel (%p2404) target = $region120
        $region119: #{tpu_custom_call.1} parent=115 // pred_region
          %s2407 = sand.u32 %s278, 1
          %s2408 = scalar_lea.sflag [#allocation5], %s2407
          %s2409 = sand.u32 %s278, 1
          %s2410 = smul.addr %s2409, 16
          %s2411 = scalar_lea.vmem [#allocation21], %s2410
          %2412 = dma.done %s2408, 256
        $region120: #{tpu_custom_call.1} parent=115 // pred_fallthru
          _
      $region116: #{tpu_custom_call.1} parent=5 // pred_fallthru
        _
    $region6: #{tpu_custom_call.1} parent=1 // loop_footer
      %s32 = sadd.s32 1, %s28
    $region7: #{tpu_custom_call.1} parent=1 // loop_footer_branch
      %27 = sbr.rel target = $region3
    $region8: #{tpu_custom_call.1} parent=1 // loop_exit
      _
    %2413 = vsyncpa [#allocation4], 1
    %s2414 = scalar_lea.sflag [#allocation4], 1
    %2415 = vsyncpa %s2414, 1
    %2416 = vsyncpa [#allocation7], 1
    %2417 = vsyncpa [#allocation10], 1
    %2418 = vsyncpa [#allocation13], 1
    %2419 = vsyncpa [#allocation16], 1
    %2420 = vsyncpa [#allocation19], 1
    %2421 = vsyncpa [#allocation5], 1
    %s2422 = scalar_lea.sflag [#allocation5], 1
    %2423 = vsyncpa %s2422, 1

// kernel: tpu_custom_call.1
$region0: #{tpu_custom_call.1}
  #allocation0 [shape = 'u32[]', space=smem, size = 0x4, offset = 0x4, fixed_abs, tag = 'smem constant byte address 0x4 - core index']
  #allocation1 [shape = 'u32[144,128]{1,0:T(1,128)}', space=vmem, size = 0x12000, scoped, tag = 'internal scratch']
  #allocation2 [shape = 'f32[16,32]{1,0:T(8,128)}', space=vmem, size = 0x2000, scoped, tag = 'scratch operand']
  %s0 = inlined_call_operand.hbm [shape: f32[32,32], index: 0, kind: input, shape index: {}]
  %s1 = inlined_call_operand.hbm [shape: f32[1,32], index: 1, kind: input, shape index: {}]
  %s2 = inlined_call_operand.hbm [shape: f32[1,32], index: 2, kind: input, shape index: {}]
  %s3 = inlined_call_operand.hbm [shape: f32[32,96], index: 3, kind: input, shape index: {}]
  %s4 = inlined_call_operand.hbm [shape: f32[32,32], index: 4, kind: input, shape index: {}]
  %s5 = inlined_call_operand.hbm [shape: f32[1,32], index: 5, kind: input, shape index: {}]
  %s6 = inlined_call_operand.hbm [shape: f32[1,32], index: 6, kind: input, shape index: {}]
  %s7 = inlined_call_operand.hbm [shape: f32[32,128], index: 7, kind: input, shape index: {}]
  %s8 = inlined_call_operand.hbm [shape: f32[1,128], index: 8, kind: input, shape index: {}]
  %s9 = inlined_call_operand.hbm [shape: f32[128,32], index: 9, kind: input, shape index: {}]
  %s10 = inlined_call_operand.hbm [shape: f32[1,32], index: 10, kind: input, shape index: {}]
  %s11 = inlined_call_operand.hbm [shape: f32[32,32], index: 11, kind: output, shape index: {}]
  %s12 = sld [smem:[#allocation0]]
  $region121: #{tpu_custom_call.1} parent=0
    _
  %s14 = ssub.s32 1, %s12
  %s15 = scalar_select 0, %s14, %s12
  $region1: #{tpu_custom_call.1} parent=0
    #allocation3 [shape = 'u8[16384]{0}', space=vmem, size = 0x4000, scoped, tag = 'input window, operand 0']
    #allocation4 [shape = 's32[2]{0}', space=sflag, size = 0x8, scoped, tag = 'scoped memory for tpu_custom_call.1']
    #allocation5 [shape = 's32[2]{0}', space=sflag, size = 0x8, scoped, tag = 'scoped memory for tpu_custom_call.1']
    #allocation6 [shape = 'u8[512]{0}', space=vmem, size = 0x400, scoped, tag = 'input window, operand 1, single buffered']
    #allocation7 [shape = 's32[1]{0}', space=sflag, size = 0x4, scoped, tag = 'scoped memory for tpu_custom_call.1']
    #allocation8 [shape = 'u8[512]{0}', space=vmem, size = 0x400, scoped, tag = 'input window, operand 2, single buffered']
    #allocation9 [shape = 'u8[16384]{0}', space=vmem, size = 0x4000, scoped, tag = 'input window, operand 3, single buffered']
    #allocation10 [shape = 's32[1]{0}', space=sflag, size = 0x4, scoped, tag = 'scoped memory for tpu_custom_call.1']
    #allocation11 [shape = 'u8[16384]{0}', space=vmem, size = 0x4000, scoped, tag = 'input window, operand 4, single buffered']
    #allocation12 [shape = 'u8[512]{0}', space=vmem, size = 0x400, scoped, tag = 'input window, operand 5, single buffered']
    #allocation13 [shape = 's32[1]{0}', space=sflag, size = 0x4, scoped, tag = 'scoped memory for tpu_custom_call.1']
    #allocation14 [shape = 'u8[512]{0}', space=vmem, size = 0x400, scoped, tag = 'input window, operand 6, single buffered']
    #allocation15 [shape = 'u8[16384]{0}', space=vmem, size = 0x4000, scoped, tag = 'input window, operand 7, single buffered']
    #allocation16 [shape = 's32[1]{0}', space=sflag, size = 0x4, scoped, tag = 'scoped memory for tpu_custom_call.1']
    #allocation17 [shape = 'u8[512]{0}', space=vmem, size = 0x400, scoped, tag = 'input window, operand 8, single buffered']
    #allocation18 [shape = 'u8[65536]{0}', space=vmem, size = 0x10000, scoped, tag = 'input window, operand 9, single buffered']
    #allocation19 [shape = 's32[1]{0}', space=sflag, size = 0x4, scoped, tag = 'scoped memory for tpu_custom_call.1']
    #allocation20 [shape = 'u8[512]{0}', space=vmem, size = 0x400, scoped, tag = 'input window, operand 10, single buffered']
    #allocation21 [shape = 'u8[16384]{0}', space=vmem, size = 0x4000, scoped, tag = 'output window, operand 0']
    %16 = vsyncpa [#allocation4], 0
    %s17 = scalar_lea.sflag [#allocation4], 1
    %18 = vsyncpa %s17, 0
    %19 = vsyncpa [#allocation7], 0
    %20 = vsyncpa [#allocation10], 0
    %21 = vsyncpa [#allocation13], 0
    %22 = vsyncpa [#allocation16], 0
    %23 = vsyncpa [#allocation19], 0
    %24 = vsyncpa [#allocation5], 0
    %s25 = scalar_lea.sflag [#allocation5], 1
    %26 = vsyncpa %s25, 0
    loop: start=0, step=1, limit=4
    $region2: #{tpu_custom_call.1} parent=1 // loop_pre_header
      _
    $region3: #{tpu_custom_call.1} parent=1 // loop_header
      %s28 = sphi 0, %s32
      %p29 = scmp.ge.s32.totalorder %s28, 4
      %s38 = sphi 0, %s40
      %s41 = sphi 0, %s38
      %s42 = sphi 0, %s41
      %s58 = sphi 0, %s42
      %s62 = sphi 0, %s62
      %s64 = sphi 0, %s62
      %s65 = sphi 0, %s64
      %s79 = sphi 0, %s65
      %s83 = sphi 0, %s83
      %s85 = sphi 0, %s83
      %s86 = sphi 0, %s85
      %s100 = sphi 0, %s86
      %s104 = sphi 0, %s104
      %s106 = sphi 0, %s104
      %s107 = sphi 0, %s106
      %s121 = sphi 0, %s107
      %s125 = sphi 0, %s125
      %s127 = sphi 0, %s125
      %s128 = sphi 0, %s127
      %s142 = sphi 0, %s128
      %s146 = sphi 0, %s146
      %s148 = sphi 0, %s146
      %s149 = sphi 0, %s148
      %s163 = sphi 0, %s149
      %s167 = sphi 0, %s167
      %s169 = sphi 0, %s167
      %s170 = sphi 0, %s169
      %s184 = sphi 0, %s170
      %s188 = sphi 0, %s188
      %s190 = sphi 0, %s188
      %s191 = sphi 0, %s190
      %s205 = sphi 0, %s191
      %s209 = sphi 0, %s209
      %s211 = sphi 0, %s209
      %s212 = sphi 0, %s211
      %s226 = sphi 0, %s212
      %s230 = sphi 0, %s230
      %s232 = sphi 0, %s230
      %s233 = sphi 0, %s232
      %s247 = sphi 0, %s233
      %s251 = sphi 0, %s251
      %s253 = sphi 0, %s251
      %s254 = sphi 0, %s253
      %s268 = sphi 0, %s254
      %s274 = sphi 0, %s276
      %s277 = sphi 0, %s274
      %s278 = sphi 0, %s277
      %s294 = sphi 0, %s278
    $region4: #{tpu_custom_call.1} parent=1 // loop_header_branch
      %31 = sbr.rel (%p29) target = $region8
    $region5: #{tpu_custom_call.1} parent=1 // loop_body
      %s33 = ssub.s32 %s28, 1
      %s34 = ssub.s32 %s28, 2
      %s35 = sadd.s32 %s28, 1
      %s36 = ssub.s32 %s28, %s35
      %p37 = scmp.eq.s32.totalorder %s36, 0
      %s39 = sadd.s32 %s38, 1
      %s40 = scalar_select %p37, %s38, %s39
      %p43 = pneg %p37
      %p44 = scmp.eq.s32.totalorder %s28, 1
      %p45 = por %p43, %p44
      %p46 = scmp.ne.s32.totalorder %s38, %s41
      %p47 = scmp.eq.s32.totalorder %s28, 0
      %p48 = por %p46, %p47
      %p49 = scmp.ne.s32.totalorder %s38, %s41
      %p50 = scmp.eq.s32.totalorder %s33, 1
      %p51 = por %p49, %p50
      %p52 = scmp.ne.s32.totalorder %s41, %s42
      %p53 = scmp.eq.s32.totalorder %s33, 0
      %p54 = por %p52, %p53
      %p55 = scmp.ne.s32.totalorder %s41, %s42
      %p56 = scmp.eq.s32.totalorder %s34, 1
      %p57 = por %p55, %p56
      %p59 = scmp.ne.s32.totalorder %s42, %s58
      %p60 = scmp.eq.s32.totalorder %s34, 0
      %p61 = por %p59, %p60
      %s63 = sadd.s32 %s62, 1
      %p66 = scmp.eq.s32.totalorder %s28, 1
      %p67 = scmp.ne.s32.totalorder %s62, %s64
      %p68 = scmp.eq.s32.totalorder %s28, 0
      %p69 = por %p67, %p68
      %p70 = scmp.ne.s32.totalorder %s62, %s64
      %p71 = scmp.eq.s32.totalorder %s33, 1
      %p72 = por %p70, %p71
      %p73 = scmp.ne.s32.totalorder %s64, %s65
      %p74 = scmp.eq.s32.totalorder %s33, 0
      %p75 = por %p73, %p74
      %p76 = scmp.ne.s32.totalorder %s64, %s65
      %p77 = scmp.eq.s32.totalorder %s34, 1
      %p78 = por %p76, %p77
      %p80 = scmp.ne.s32.totalorder %s65, %s79
      %p81 = scmp.eq.s32.totalorder %s34, 0
      %p82 = por %p80, %p81
      %s84 = sadd.s32 %s83, 1
      %p87 = scmp.eq.s32.totalorder %s28, 1
      %p88 = scmp.ne.s32.totalorder %s83, %s85
      %p89 = scmp.eq.s32.totalorder %s28, 0
      %p90 = por %p88, %p89
      %p91 = scmp.ne.s32.totalorder %s83, %s85
      %p92 = scmp.eq.s32.totalorder %s33, 1
      %p93 = por %p91, %p92
      %p94 = scmp.ne.s32.totalorder %s85, %s86
      %p95 = scmp.eq.s32.totalorder %s33, 0
      %p96 = por %p94, %p95
      %p97 = scmp.ne.s32.totalorder %s85, %s86
      %p98 = scmp.eq.s32.totalorder %s34, 1
      %p99 = por %p97, %p98
      %p101 = scmp.ne.s32.totalorder %s86, %s100
      %p102 = scmp.eq.s32.totalorder %s34, 0
      %p103 = por %p101, %p102
      %s105 = sadd.s32 %s104, 1
      %p108 = scmp.eq.s32.totalorder %s28, 1
      %p109 = scmp.ne.s32.totalorder %s104, %s106
      %p110 = scmp.eq.s32.totalorder %s28, 0
      %p111 = por %p109, %p110
      %p112 = scmp.ne.s32.totalorder %s104, %s106
      %p113 = scmp.eq.s32.totalorder %s33, 1
      %p114 = por %p112, %p113
      %p115 = scmp.ne.s32.totalorder %s106, %s107
      %p116 = scmp.eq.s32.totalorder %s33, 0
      %p117 = por %p115, %p116
      %p118 = scmp.ne.s32.totalorder %s106, %s107
      %p119 = scmp.eq.s32.totalorder %s34, 1
      %p120 = por %p118, %p119
      %p122 = scmp.ne.s32.totalorder %s107, %s121
      %p123 = scmp.eq.s32.totalorder %s34, 0
      %p124 = por %p122, %p123
      %s126 = sadd.s32 %s125, 1
      %p129 = scmp.eq.s32.totalorder %s28, 1
      %p130 = scmp.ne.s32.totalorder %s125, %s127
      %p131 = scmp.eq.s32.totalorder %s28, 0
      %p132 = por %p130, %p131
      %p133 = scmp.ne.s32.totalorder %s125, %s127
      %p134 = scmp.eq.s32.totalorder %s33, 1
      %p135 = por %p133, %p134
      %p136 = scmp.ne.s32.totalorder %s127, %s128
      %p137 = scmp.eq.s32.totalorder %s33, 0
      %p138 = por %p136, %p137
      %p139 = scmp.ne.s32.totalorder %s127, %s128
      %p140 = scmp.eq.s32.totalorder %s34, 1
      %p141 = por %p139, %p140
      %p143 = scmp.ne.s32.totalorder %s128, %s142
      %p144 = scmp.eq.s32.totalorder %s34, 0
      %p145 = por %p143, %p144
      %s147 = sadd.s32 %s146, 1
      %p150 = scmp.eq.s32.totalorder %s28, 1
      %p151 = scmp.ne.s32.totalorder %s146, %s148
      %p152 = scmp.eq.s32.totalorder %s28, 0
      %p153 = por %p151, %p152
      %p154 = scmp.ne.s32.totalorder %s146, %s148
      %p155 = scmp.eq.s32.totalorder %s33, 1
      %p156 = por %p154, %p155
      %p157 = scmp.ne.s32.totalorder %s148, %s149
      %p158 = scmp.eq.s32.totalorder %s33, 0
      %p159 = por %p157, %p158
      %p160 = scmp.ne.s32.totalorder %s148, %s149
      %p161 = scmp.eq.s32.totalorder %s34, 1
      %p162 = por %p160, %p161
      %p164 = scmp.ne.s32.totalorder %s149, %s163
      %p165 = scmp.eq.s32.totalorder %s34, 0
      %p166 = por %p164, %p165
      %s168 = sadd.s32 %s167, 1
      %p171 = scmp.eq.s32.totalorder %s28, 1
      %p172 = scmp.ne.s32.totalorder %s167, %s169
      %p173 = scmp.eq.s32.totalorder %s28, 0
      %p174 = por %p172, %p173
      %p175 = scmp.ne.s32.totalorder %s167, %s169
      %p176 = scmp.eq.s32.totalorder %s33, 1
      %p177 = por %p175, %p176
      %p178 = scmp.ne.s32.totalorder %s169, %s170
      %p179 = scmp.eq.s32.totalorder %s33, 0
      %p180 = por %p178, %p179
      %p181 = scmp.ne.s32.totalorder %s169, %s170
      %p182 = scmp.eq.s32.totalorder %s34, 1
      %p183 = por %p181, %p182
      %p185 = scmp.ne.s32.totalorder %s170, %s184
      %p186 = scmp.eq.s32.totalorder %s34, 0
      %p187 = por %p185, %p186
      %s189 = sadd.s32 %s188, 1
      %p192 = scmp.eq.s32.totalorder %s28, 1
      %p193 = scmp.ne.s32.totalorder %s188, %s190
      %p194 = scmp.eq.s32.totalorder %s28, 0
      %p195 = por %p193, %p194
      %p196 = scmp.ne.s32.totalorder %s188, %s190
      %p197 = scmp.eq.s32.totalorder %s33, 1
      %p198 = por %p196, %p197
      %p199 = scmp.ne.s32.totalorder %s190, %s191
      %p200 = scmp.eq.s32.totalorder %s33, 0
      %p201 = por %p199, %p200
      %p202 = scmp.ne.s32.totalorder %s190, %s191
      %p203 = scmp.eq.s32.totalorder %s34, 1
      %p204 = por %p202, %p203
      %p206 = scmp.ne.s32.totalorder %s191, %s205
      %p207 = scmp.eq.s32.totalorder %s34, 0
      %p208 = por %p206, %p207
      %s210 = sadd.s32 %s209, 1
      %p213 = scmp.eq.s32.totalorder %s28, 1
      %p214 = scmp.ne.s32.totalorder %s209, %s211
      %p215 = scmp.eq.s32.totalorder %s28, 0
      %p216 = por %p214, %p215
      %p217 = scmp.ne.s32.totalorder %s209, %s211
      %p218 = scmp.eq.s32.totalorder %s33, 1
      %p219 = por %p217, %p218
      %p220 = scmp.ne.s32.totalorder %s211, %s212
      %p221 = scmp.eq.s32.totalorder %s33, 0
      %p222 = por %p220, %p221
      %p223 = scmp.ne.s32.totalorder %s211, %s212
      %p224 = scmp.eq.s32.totalorder %s34, 1
      %p225 = por %p223, %p224
      %p227 = scmp.ne.s32.totalorder %s212, %s226
      %p228 = scmp.eq.s32.totalorder %s34, 0
      %p229 = por %p227, %p228
      %s231 = sadd.s32 %s230, 1
      %p234 = scmp.eq.s32.totalorder %s28, 1
      %p235 = scmp.ne.s32.totalorder %s230, %s232
      %p236 = scmp.eq.s32.totalorder %s28, 0
      %p237 = por %p235, %p236
      %p238 = scmp.ne.s32.totalorder %s230, %s232
      %p239 = scmp.eq.s32.totalorder %s33, 1
      %p240 = por %p238, %p239
      %p241 = scmp.ne.s32.totalorder %s232, %s233
      %p242 = scmp.eq.s32.totalorder %s33, 0
      %p243 = por %p241, %p242
      %p244 = scmp.ne.s32.totalorder %s232, %s233
      %p245 = scmp.eq.s32.totalorder %s34, 1
      %p246 = por %p244, %p245
      %p248 = scmp.ne.s32.totalorder %s233, %s247
      %p249 = scmp.eq.s32.totalorder %s34, 0
      %p250 = por %p248, %p249
      %s252 = sadd.s32 %s251, 1
      %p255 = scmp.eq.s32.totalorder %s28, 1
      %p256 = scmp.ne.s32.totalorder %s251, %s253
      %p257 = scmp.eq.s32.totalorder %s28, 0
      %p258 = por %p256, %p257
      %p259 = scmp.ne.s32.totalorder %s251, %s253
      %p260 = scmp.eq.s32.totalorder %s33, 1
      %p261 = por %p259, %p260
      %p262 = scmp.ne.s32.totalorder %s253, %s254
      %p263 = scmp.eq.s32.totalorder %s33, 0
      %p264 = por %p262, %p263
      %p265 = scmp.ne.s32.totalorder %s253, %s254
      %p266 = scmp.eq.s32.totalorder %s34, 1
      %p267 = por %p265, %p266
      %p269 = scmp.ne.s32.totalorder %s254, %s268
      %p270 = scmp.eq.s32.totalorder %s34, 0
      %p271 = por %p269, %p270
      %s272 = ssub.s32 %s28, %s35
      %p273 = scmp.eq.s32.totalorder %s272, 0
      %s275 = sadd.s32 %s274, 1
      %s276 = scalar_select %p273, %s274, %s275
      %p279 = pneg %p273
      %p280 = scmp.eq.s32.totalorder %s28, 1
      %p281 = por %p279, %p280
      %p282 = scmp.ne.s32.totalorder %s274, %s277
      %p283 = scmp.eq.s32.totalorder %s28, 0
      %p284 = por %p282, %p283
      %p285 = scmp.ne.s32.totalorder %s274, %s277
      %p286 = scmp.eq.s32.totalorder %s33, 1
      %p287 = por %p285, %p286
      %p288 = scmp.ne.s32.totalorder %s277, %s278
      %p289 = scmp.eq.s32.totalorder %s33, 0
      %p290 = por %p288, %p289
      %p291 = scmp.ne.s32.totalorder %s277, %s278
      %p292 = scmp.eq.s32.totalorder %s34, 1
      %p293 = por %p291, %p292
      %p295 = scmp.ne.s32.totalorder %s278, %s294
      %p296 = scmp.eq.s32.totalorder %s34, 0
      %p297 = por %p295, %p296
      %p298 = scmp.le.s32.totalorder 1, %s28
      %p299 = scmp.lt.s32.totalorder %s28, 3
      %p300 = pnand %p298, %p299
      %p301 = pneg %p300
      // Predicated region
      $region9: #{tpu_custom_call.1} parent=5 // pred_check
        _
      $region10: #{tpu_custom_call.1} parent=5 // pred_check_branch
        %303 = sbr.rel (%p300) target = $region12
      $region11: #{tpu_custom_call.1} parent=5 // pred_region
        %s304 = ssub.s32 %s28, 1
        // Predicated region
        $region13: #{tpu_custom_call.1} parent=11 // pred_check
          %p305 = pneg %p75
        $region14: #{tpu_custom_call.1} parent=11 // pred_check_branch
          %307 = sbr.rel (%p305) target = $region16
        $region15: #{tpu_custom_call.1} parent=11 // pred_region
          %s309 = ssub.s32 16, 16
          %310 = vsyncadd [#allocation7], %s309
          %s312 = sshll.u32 [#allocation6], 4
          %s313 = int_to_ptr.vmem [resolvable:$true] %s312
          %315 = dma.hbm_to_vmem [thread:$0]  %s1, 16, %s313, [#allocation7]
        $region16: #{tpu_custom_call.1} parent=11 // pred_fallthru
          _
        // Predicated region
        $region17: #{tpu_custom_call.1} parent=11 // pred_check
          %p316 = pneg %p96
        $region18: #{tpu_custom_call.1} parent=11 // pred_check_branch
          %318 = sbr.rel (%p316) target = $region20
        $region19: #{tpu_custom_call.1} parent=11 // pred_region
          %s320 = ssub.s32 16, 16
          %321 = vsyncadd [#allocation7], %s320
          %s323 = sshll.u32 [#allocation8], 4
          %s324 = int_to_ptr.vmem [resolvable:$true] %s323
          %326 = dma.hbm_to_vmem [thread:$0]  %s2, 16, %s324, [#allocation7]
        $region20: #{tpu_custom_call.1} parent=11 // pred_fallthru
          _
        // Predicated region
        $region21: #{tpu_custom_call.1} parent=11 // pred_check
          %p327 = pneg %p117
        $region22: #{tpu_custom_call.1} parent=11 // pred_check_branch
          %329 = sbr.rel (%p327) target = $region24
        $region23: #{tpu_custom_call.1} parent=11 // pred_region
          %s331 = ssub.s32 512, 512
          %332 = vsyncadd [#allocation10], %s331
          %s333 = sshll.u32 [#allocation9], 4
          %s334 = int_to_ptr.vmem [resolvable:$true] %s333
          %339 = dma.hbm_to_vmem [thread:$0]  %s3, 512, %s334, [#allocation10], 128, 128, 8
        $region24: #{tpu_custom_call.1} parent=11 // pred_fallthru
          _
        // Predicated region
        $region25: #{tpu_custom_call.1} parent=11 // pred_check
          %p340 = pneg %p138
        $region26: #{tpu_custom_call.1} parent=11 // pred_check_branch
          %342 = sbr.rel (%p340) target = $region28
        $region27: #{tpu_custom_call.1} parent=11 // pred_region
          %s344 = ssub.s32 512, 512
          %345 = vsyncadd [#allocation10], %s344
          %s346 = sshll.u32 [#allocation11], 4
          %s347 = int_to_ptr.vmem [resolvable:$true] %s346
          %352 = dma.hbm_to_vmem [thread:$0]  %s4, 512, %s347, [#allocation10], 128, 128, 8
        $region28: #{tpu_custom_call.1} parent=11 // pred_fallthru
          _
        // Predicated region
        $region29: #{tpu_custom_call.1} parent=11 // pred_check
          %p353 = pneg %p159
        $region30: #{tpu_custom_call.1} parent=11 // pred_check_branch
          %355 = sbr.rel (%p353) target = $region32
        $region31: #{tpu_custom_call.1} parent=11 // pred_region
          %s357 = ssub.s32 16, 16
          %358 = vsyncadd [#allocation13], %s357
          %s360 = sshll.u32 [#allocation12], 4
          %s361 = int_to_ptr.vmem [resolvable:$true] %s360
          %363 = dma.hbm_to_vmem [thread:$0]  %s5, 16, %s361, [#allocation13]
        $region32: #{tpu_custom_call.1} parent=11 // pred_fallthru
          _
        // Predicated region
        $region33: #{tpu_custom_call.1} parent=11 // pred_check
          %p364 = pneg %p180
        $region34: #{tpu_custom_call.1} parent=11 // pred_check_branch
          %366 = sbr.rel (%p364) target = $region36
        $region35: #{tpu_custom_call.1} parent=11 // pred_region
          %s368 = ssub.s32 16, 16
          %369 = vsyncadd [#allocation13], %s368
          %s371 = sshll.u32 [#allocation14], 4
          %s372 = int_to_ptr.vmem [resolvable:$true] %s371
          %374 = dma.hbm_to_vmem [thread:$0]  %s6, 16, %s372, [#allocation13]
        $region36: #{tpu_custom_call.1} parent=11 // pred_fallthru
          _
        // Predicated region
        $region37: #{tpu_custom_call.1} parent=11 // pred_check
          %p375 = pneg %p201
        $region38: #{tpu_custom_call.1} parent=11 // pred_check_branch
          %377 = sbr.rel (%p375) target = $region40
        $region39: #{tpu_custom_call.1} parent=11 // pred_region
          %s379 = ssub.s32 512, 512
          %380 = vsyncadd [#allocation16], %s379
          %s381 = sshll.u32 [#allocation15], 4
          %s382 = int_to_ptr.vmem [resolvable:$true] %s381
          %387 = dma.hbm_to_vmem [thread:$0]  %s7, 512, %s382, [#allocation16], 128, 128, 8
        $region40: #{tpu_custom_call.1} parent=11 // pred_fallthru
          _
        // Predicated region
        $region41: #{tpu_custom_call.1} parent=11 // pred_check
          %p388 = pneg %p222
        $region42: #{tpu_custom_call.1} parent=11 // pred_check_branch
          %390 = sbr.rel (%p388) target = $region44
        $region43: #{tpu_custom_call.1} parent=11 // pred_region
          %s392 = ssub.s32 16, 16
          %393 = vsyncadd [#allocation16], %s392
          %s395 = sshll.u32 [#allocation17], 4
          %s396 = int_to_ptr.vmem [resolvable:$true] %s395
          %398 = dma.hbm_to_vmem [thread:$0]  %s8, 16, %s396, [#allocation16]
        $region44: #{tpu_custom_call.1} parent=11 // pred_fallthru
          _
        // Predicated region
        $region45: #{tpu_custom_call.1} parent=11 // pred_check
          %p399 = pneg %p243
        $region46: #{tpu_custom_call.1} parent=11 // pred_check_branch
          %401 = sbr.rel (%p399) target = $region48
        $region47: #{tpu_custom_call.1} parent=11 // pred_region
          %s403 = ssub.s32 2048, 2048
          %404 = vsyncadd [#allocation19], %s403
          %s405 = sshll.u32 [#allocation18], 4
          %s406 = int_to_ptr.vmem [resolvable:$true] %s405
          %411 = dma.hbm_to_vmem [thread:$0]  %s9, 2048, %s406, [#allocation19], 128, 128, 8
        $region48: #{tpu_custom_call.1} parent=11 // pred_fallthru
          _
        // Predicated region
        $region49: #{tpu_custom_call.1} parent=11 // pred_check
          %p412 = pneg %p264
        $region50: #{tpu_custom_call.1} parent=11 // pred_check_branch
          %414 = sbr.rel (%p412) target = $region52
        $region51: #{tpu_custom_call.1} parent=11 // pred_region
          %s416 = ssub.s32 16, 16
          %417 = vsyncadd [#allocation19], %s416
          %s419 = sshll.u32 [#allocation20], 4
          %s420 = int_to_ptr.vmem [resolvable:$true] %s419
          %422 = dma.hbm_to_vmem [thread:$0]  %s10, 16, %s420, [#allocation19]
        $region52: #{tpu_custom_call.1} parent=11 // pred_fallthru
          _
      $region12: #{tpu_custom_call.1} parent=5 // pred_fallthru
        _
      %p423 = scmp.lt.s32.totalorder %s28, 2
      // Predicated region
      $region53: #{tpu_custom_call.1} parent=5 // pred_check
        %p424 = pneg %p423
      $region54: #{tpu_custom_call.1} parent=5 // pred_check_branch
        %426 = sbr.rel (%p424) target = $region56
      $region55: #{tpu_custom_call.1} parent=5 // pred_region
        // Predicated region
        $region57: #{tpu_custom_call.1} parent=55 // pred_check
          %p427 = pneg %p48
        $region58: #{tpu_custom_call.1} parent=55 // pred_check_branch
          %429 = sbr.rel (%p427) target = $region60
        $region59: #{tpu_custom_call.1} parent=55 // pred_region
          %s430 = sand.u32 %s38, 1
          %s431 = scalar_lea.sflag [#allocation4], %s430
          %s432 = sand.u32 %s38, 1
          %s433 = smul.addr %s432, 16
          %s434 = scalar_lea.vmem [#allocation3], %s433
          %s435 = smul.u32 2, %s28
          %s437 = ssub.s32 256, 256
          %438 = vsyncadd %s431, %s437
          %s439 = smul.addr %s435, 128
          %s440 = scalar_lea.hbm %s0, %s439
          %s441 = sshll.u32 %s434, 4
          %s442 = int_to_ptr.vmem [resolvable:$true] %s441
          %447 = dma.hbm_to_vmem [thread:$0]  %s440, 256, %s442, %s431, 128, 128, 8
        $region60: #{tpu_custom_call.1} parent=55 // pred_fallthru
          _
      $region56: #{tpu_custom_call.1} parent=5 // pred_fallthru
        _
      %p448 = scmp.le.s32.totalorder 1, %s28
      %p449 = scmp.lt.s32.totalorder %s28, 3
      %p450 = pnand %p448, %p449
      %p451 = pneg %p450
      // Predicated region
      $region61: #{tpu_custom_call.1} parent=5 // pred_check
        _
      $region62: #{tpu_custom_call.1} parent=5 // pred_check_branch
        %453 = sbr.rel (%p450) target = $region64
      $region63: #{tpu_custom_call.1} parent=5 // pred_region
        %s454 = ssub.s32 %s28, 1
        %s455 = sand.u32 %s41, 1
        %s456 = scalar_lea.sflag [#allocation4], %s455
        %s457 = sand.u32 %s41, 1
        %s458 = smul.addr %s457, 16
        %s459 = scalar_lea.vmem [#allocation3], %s458
        // Predicated region
        $region65: #{tpu_custom_call.1} parent=63 // pred_check
          %p460 = pneg %p54
        $region66: #{tpu_custom_call.1} parent=63 // pred_check_branch
          %462 = sbr.rel (%p460) target = $region68
        $region67: #{tpu_custom_call.1} parent=63 // pred_region
          %463 = dma.done %s456, 256
        $region68: #{tpu_custom_call.1} parent=63 // pred_fallthru
          _
        // Predicated region
        $region69: #{tpu_custom_call.1} parent=63 // pred_check
          %p464 = pneg %p75
        $region70: #{tpu_custom_call.1} parent=63 // pred_check_branch
          %466 = sbr.rel (%p464) target = $region72
        $region71: #{tpu_custom_call.1} parent=63 // pred_region
          %467 = dma.done [#allocation7], 16
        $region72: #{tpu_custom_call.1} parent=63 // pred_fallthru
          _
        // Predicated region
        $region73: #{tpu_custom_call.1} parent=63 // pred_check
          %p468 = pneg %p96
        $region74: #{tpu_custom_call.1} parent=63 // pred_check_branch
          %470 = sbr.rel (%p468) target = $region76
        $region75: #{tpu_custom_call.1} parent=63 // pred_region
          %471 = dma.done [#allocation7], 16
        $region76: #{tpu_custom_call.1} parent=63 // pred_fallthru
          _
        // Predicated region
        $region77: #{tpu_custom_call.1} parent=63 // pred_check
          %p472 = pneg %p117
        $region78: #{tpu_custom_call.1} parent=63 // pred_check_branch
          %474 = sbr.rel (%p472) target = $region80
        $region79: #{tpu_custom_call.1} parent=63 // pred_region
          %475 = dma.done [#allocation10], 512
        $region80: #{tpu_custom_call.1} parent=63 // pred_fallthru
          _
        // Predicated region
        $region81: #{tpu_custom_call.1} parent=63 // pred_check
          %p476 = pneg %p138
        $region82: #{tpu_custom_call.1} parent=63 // pred_check_branch
          %478 = sbr.rel (%p476) target = $region84
        $region83: #{tpu_custom_call.1} parent=63 // pred_region
          %479 = dma.done [#allocation10], 512
        $region84: #{tpu_custom_call.1} parent=63 // pred_fallthru
          _
        // Predicated region
        $region85: #{tpu_custom_call.1} parent=63 // pred_check
          %p480 = pneg %p159
        $region86: #{tpu_custom_call.1} parent=63 // pred_check_branch
          %482 = sbr.rel (%p480) target = $region88
        $region87: #{tpu_custom_call.1} parent=63 // pred_region
          %483 = dma.done [#allocation13], 16
        $region88: #{tpu_custom_call.1} parent=63 // pred_fallthru
          _
        // Predicated region
        $region89: #{tpu_custom_call.1} parent=63 // pred_check
          %p484 = pneg %p180
        $region90: #{tpu_custom_call.1} parent=63 // pred_check_branch
          %486 = sbr.rel (%p484) target = $region92
        $region91: #{tpu_custom_call.1} parent=63 // pred_region
          %487 = dma.done [#allocation13], 16
        $region92: #{tpu_custom_call.1} parent=63 // pred_fallthru
          _
        // Predicated region
        $region93: #{tpu_custom_call.1} parent=63 // pred_check
          %p488 = pneg %p201
        $region94: #{tpu_custom_call.1} parent=63 // pred_check_branch
          %490 = sbr.rel (%p488) target = $region96
        $region95: #{tpu_custom_call.1} parent=63 // pred_region
          %491 = dma.done [#allocation16], 512
        $region96: #{tpu_custom_call.1} parent=63 // pred_fallthru
          _
        // Predicated region
        $region97: #{tpu_custom_call.1} parent=63 // pred_check
          %p492 = pneg %p222
        $region98: #{tpu_custom_call.1} parent=63 // pred_check_branch
          %494 = sbr.rel (%p492) target = $region100
        $region99: #{tpu_custom_call.1} parent=63 // pred_region
          %495 = dma.done [#allocation16], 16
        $region100: #{tpu_custom_call.1} parent=63 // pred_fallthru
          _
        // Predicated region
        $region101: #{tpu_custom_call.1} parent=63 // pred_check
          %p496 = pneg %p243
        $region102: #{tpu_custom_call.1} parent=63 // pred_check_branch
          %498 = sbr.rel (%p496) target = $region104
        $region103: #{tpu_custom_call.1} parent=63 // pred_region
          %499 = dma.done [#allocation19], 2048
        $region104: #{tpu_custom_call.1} parent=63 // pred_fallthru
          _
        // Predicated region
        $region105: #{tpu_custom_call.1} parent=63 // pred_check
          %p500 = pneg %p264
        $region106: #{tpu_custom_call.1} parent=63 // pred_check_branch
          %502 = sbr.rel (%p500) target = $region108
        $region107: #{tpu_custom_call.1} parent=63 // pred_region
          %503 = dma.done [#allocation19], 16
        $region108: #{tpu_custom_call.1} parent=63 // pred_fallthru
          _
        %s504 = sand.u32 %s41, 1
        %s505 = scalar_lea.sflag [#allocation4], %s504
        %s506 = sand.u32 %s41, 1
        %s507 = smul.addr %s506, 16
        %s508 = scalar_lea.vmem [#allocation3], %s507
        %p509 = pneg %p54
        %p510 = pneg %p51
        %p511 = pneg %p75
        %p512 = pneg %p72
        %p513 = pneg %p96
        %p514 = pneg %p93
        %p515 = pneg %p117
        %p516 = pneg %p114
        %p517 = pneg %p138
        %p518 = pneg %p135
        %p519 = pneg %p159
        %p520 = pneg %p156
        %p521 = pneg %p180
        %p522 = pneg %p177
        %p523 = pneg %p201
        %p524 = pneg %p198
        %p525 = pneg %p222
        %p526 = pneg %p219
        %p527 = pneg %p243
        %p528 = pneg %p240
        %p529 = pneg %p264
        %p530 = pneg %p261
        %p531 = pneg %p290
        %p532 = pneg %p287
        %s533 = sand.u32 %s277, 1
        %s534 = scalar_lea.sflag [#allocation5], %s533
        %s535 = sand.u32 %s277, 1
        %s536 = smul.addr %s535, 16
        %s537 = scalar_lea.vmem [#allocation21], %s536
        %s538 = smul.u32 2, %s33
        %s539 = smul.u32 2, %s33
        %v540 = vld [vmem:[%s459] sm:$0xff]
        %v541 = vld [vmem:[%s459 + $0x8] sm:$0xff]
        %v542 = vld [vmem:[#allocation6] sm:$0x1]
        %v543 = vld [vmem:[#allocation8] sm:$0x1]
        %vm544 = vcmask 261120
        %v545 = vsel %vm544, %v540, 0.0
        %546 = vadd.xlane.f32.xlu0 %v545
        %v547 = vpop.xlane.xlu0 %546
        %v548 = vsel %vm544, %v541, 0.0
        %549 = vadd.xlane.f32.xlu0 %v548
        %v550 = vpop.xlane.xlu0 %549
        %v551 = vrcp.pop 32.0
        %v552 = vmul.f32 %v547, %v551
        %v553 = vmul.f32 %v550, %v551
        %v554 = vsub.f32 %v540, %v552
        %v555 = vsub.f32 %v541, %v553
        %v556 = vmul.f32 %v554, %v554
        %v557 = vmul.f32 %v555, %v555
        %v558 = vsel %vm544, %v556, 0.0
        %559 = vadd.xlane.f32.xlu0 %v558
        %v560 = vpop.xlane.xlu0 %559
        %v561 = vsel %vm544, %v557, 0.0
        %562 = vadd.xlane.f32.xlu0 %v561
        %v563 = vpop.xlane.xlu0 %562
        %v564 = vmul.f32 %v560, %v551
        %v565 = vmul.f32 %v563, %v551
        %v566 = vadd.f32 %v564, 1e-05
        %v567 = vadd.f32 %v565, 1e-05
        %v568 = vrsqrt.pop %v566
        %v569 = vrsqrt.pop %v567
        %v570 = vmul.f32 %v554, %v568
        %v571 = vmul.f32 %v555, %v569
        %v573 = vlaneseq
        %v574 = vshrl.u32 %v573, 7
        %v575 = vsub.s32 0, %v574
        %v576 = vrot.slane %v542, %v575
        %v578 = vmul.f32 %v570, %v576
        %v579 = vmul.f32 %v571, %v576
        %v581 = vlaneseq
        %v582 = vshrl.u32 %v581, 7
        %v583 = vsub.s32 0, %v582
        %v584 = vrot.slane %v543, %v583
        %v586 = vadd.f32 %v578, %v584
        %v587 = vadd.f32 %v579, %v584
        %v588 = vld [vmem:[#allocation9] sm:$0xff]
        %v589 = vld [vmem:[#allocation9 + $0x8] sm:$0xff]
        %v590 = vld [vmem:[#allocation9 + $0x10] sm:$0xff]
        %v591 = vld [vmem:[#allocation9 + $0x18] sm:$0xff]
        %v593 = vsel %vm544, %v586, 0
        %v596 = vsel %vm544, %v587, 0
        %598 = vmatprep.subr.mxu0 0.0
        %599 = vmatpush1.msra.mxu0 %v588
        %600 = vmatprep.subr.mxu0 0.0
        %601 = vmatpush1.msra.mxu0 %v589
        %602 = vmatprep.subr.mxu0 0.0
        %603 = vmatpush1.msra.mxu0 %v590
        %604 = vmatprep.subr.mxu0 0.0
        %605 = vmatpush1.msra.mxu0 %v591
        %606 = vmatprep.subr.mxu0 0.0
        %607 = vmatpush1.msra.mxu0 0.0
        %608 = vmatprep.subr.mxu0 0.0
        %609 = vmatpush1.msra.mxu0 0.0
        %610 = vmatprep.subr.mxu0 0.0
        %611 = vmatpush1.msra.mxu0 0.0
        %612 = vmatprep.subr.mxu0 0.0
        %613 = vmatpush1.msra.mxu0 0.0
        %614 = vmatprep.subr.mxu0 0.0
        %615 = vmatpush1.msra.mxu0 0.0
        %616 = vmatprep.subr.mxu0 0.0
        %617 = vmatpush1.msra.mxu0 0.0
        %618 = vmatprep.subr.mxu0 0.0
        %619 = vmatpush1.msra.mxu0 0.0
        %620 = vmatprep.subr.mxu0 0.0
        %621 = vmatpush1.msra.mxu0 0.0
        %622 = vmatprep.subr.mxu0 0.0
        %623 = vmatpush1.msra.mxu0 0.0
        %624 = vmatprep.subr.mxu0 0.0
        %625 = vmatpush1.msra.mxu0 0.0
        %626 = vmatprep.subr.mxu0 0.0
        %627 = vmatpush1.msra.mxu0 0.0
        %628 = vmatprep.subr.mxu0 0.0
        %629 = vmatpush1.msra.mxu0 0.0
        %630 = vmatprep.subr.mxu0 0.0
        %631 = vmatpush1.msra.mxu0 0.0
        %632 = vmatprep.subr.mxu0 0.0
        %633 = vmatpush1.msra.mxu0 0.0
        %634 = vmatprep.subr.mxu0 0.0
        %635 = vmatpush1.msra.mxu0 0.0
        %636 = vmatprep.subr.mxu0 0.0
        %637 = vmatpush1.msra.mxu0 0.0
        %638 = vmatprep.subr.mxu0 0.0
        %639 = vmatpush1.msra.mxu0 0.0
        %640 = vmatprep.subr.mxu0 0.0
        %641 = vmatpush1.msra.mxu0 0.0
        %642 = vmatprep.subr.mxu0 0.0
        %643 = vmatpush1.msra.mxu0 0.0
        %644 = vmatprep.subr.mxu0 0.0
        %645 = vmatpush1.msra.mxu0 0.0
        %646 = vmatprep.subr.mxu0 0.0
        %647 = vmatpush1.msra.mxu0 0.0
        %648 = vmatprep.subr.mxu0 0.0
        %649 = vmatpush1.msra.mxu0 0.0
        %650 = vmatprep.subr.mxu0 0.0
        %651 = vmatpush1.msra.mxu0 0.0
        %652 = vmatprep.subr.mxu0 0.0
        %653 = vmatpush1.msra.mxu0 0.0
        %654 = vmatprep.subr.mxu0 0.0
        %655 = vmatpush1.msra.mxu0 0.0
        %656 = vmatprep.subr.mxu0 0.0
        %657 = vmatpush1.msra.mxu0 0.0
        %658 = vmatprep.subr.mxu0 0.0
        %659 = vmatpush1.msra.mxu0 0.0
        %660 = vmatprep.subr.mxu0 0.0
        %661 = vmatpush1.msra.mxu0 0.0
        %662 = vmatprep.mubr.f32.mxu0 0.0
        %663 = vmatmul.mubr.f32.gmra.mrb[0].mxu0 %v593
        %v664 = vpop.f32.mrb[0].mxu0
        %v665 = vadd.f32 0.0, %v664
        %v666 = vpop.f32.mrb[0].mxu0
        %667 = vmatprep.mubr.f32.mxu0 0.0
        %668 = vmatmul.mubr.f32.gmra.mrb[0].mxu0 %v596
        %v669 = vpop.f32.mrb[0].mxu0
        %v670 = vadd.f32 0.0, %v669
        %v671 = vpop.f32.mrb[0].mxu0
        %672 = vdwg.mxu0
        %v673 = vlaneseq
        %v674 = vshrl.u32 %v673, 7
        %v675 = vlaneseq
        %v676 = vand.u32 %v675, 127
        %vm677 = vcmp.eq.s32.totalorder %v674, %v676
        %v678 = vsel %vm677, -1e+30, 0.0
        %680 = vrot.lane.b32.xlu0 %v665, 96
        %v681 = vpop.permute.xlu0 %680
        %vm682 = vcmask 64512
        %v683 = vsel %vm682, %v665, 0
        %v685 = vsel %vm682, %v681, 0
        %687 = vmatprep.subr.mxu0 0.0
        %688 = vmatpush1.xpose.msra.mxu0 %v685
        %689 = vmatprep.subr.mxu0 0.0
        %690 = vmatpush1.xpose.msra.mxu0 0.0
        %691 = vmatprep.subr.mxu0 0.0
        %692 = vmatpush1.xpose.msra.mxu0 0.0
        %693 = vmatprep.subr.mxu0 0.0
        %694 = vmatpush1.xpose.msra.mxu0 0.0
        %695 = vmatprep.subr.mxu0 0.0
        %696 = vmatpush1.xpose.msra.mxu0 0.0
        %697 = vmatprep.subr.mxu0 0.0
        %698 = vmatpush1.xpose.msra.mxu0 0.0
        %699 = vmatprep.subr.mxu0 0.0
        %700 = vmatpush1.xpose.msra.mxu0 0.0
        %701 = vmatprep.subr.mxu0 0.0
        %702 = vmatpush1.xpose.msra.mxu0 0.0
        %703 = vmatprep.subr.mxu0 0.0
        %704 = vmatpush1.xpose.msra.mxu0 0.0
        %705 = vmatprep.subr.mxu0 0.0
        %706 = vmatpush1.xpose.msra.mxu0 0.0
        %707 = vmatprep.subr.mxu0 0.0
        %708 = vmatpush1.xpose.msra.mxu0 0.0
        %709 = vmatprep.subr.mxu0 0.0
        %710 = vmatpush1.xpose.msra.mxu0 0.0
        %711 = vmatprep.subr.mxu0 0.0
        %712 = vmatpush1.xpose.msra.mxu0 0.0
        %713 = vmatprep.subr.mxu0 0.0
        %714 = vmatpush1.xpose.msra.mxu0 0.0
        %715 = vmatprep.subr.mxu0 0.0
        %716 = vmatpush1.xpose.msra.mxu0 0.0
        %717 = vmatprep.subr.mxu0 0.0
        %718 = vmatpush1.xpose.msra.mxu0 0.0
        %719 = vmatprep.subr.mxu0 0.0
        %720 = vmatpush1.xpose.msra.mxu0 0.0
        %721 = vmatprep.subr.mxu0 0.0
        %722 = vmatpush1.xpose.msra.mxu0 0.0
        %723 = vmatprep.subr.mxu0 0.0
        %724 = vmatpush1.xpose.msra.mxu0 0.0
        %725 = vmatprep.subr.mxu0 0.0
        %726 = vmatpush1.xpose.msra.mxu0 0.0
        %727 = vmatprep.subr.mxu0 0.0
        %728 = vmatpush1.xpose.msra.mxu0 0.0
        %729 = vmatprep.subr.mxu0 0.0
        %730 = vmatpush1.xpose.msra.mxu0 0.0
        %731 = vmatprep.subr.mxu0 0.0
        %732 = vmatpush1.xpose.msra.mxu0 0.0
        %733 = vmatprep.subr.mxu0 0.0
        %734 = vmatpush1.xpose.msra.mxu0 0.0
        %735 = vmatprep.subr.mxu0 0.0
        %736 = vmatpush1.xpose.msra.mxu0 0.0
        %737 = vmatprep.subr.mxu0 0.0
        %738 = vmatpush1.xpose.msra.mxu0 0.0
        %739 = vmatprep.subr.mxu0 0.0
        %740 = vmatpush1.xpose.msra.mxu0 0.0
        %741 = vmatprep.subr.mxu0 0.0
        %742 = vmatpush1.xpose.msra.mxu0 0.0
        %743 = vmatprep.subr.mxu0 0.0
        %744 = vmatpush1.xpose.msra.mxu0 0.0
        %745 = vmatprep.subr.mxu0 0.0
        %746 = vmatpush1.xpose.msra.mxu0 0.0
        %747 = vmatprep.subr.mxu0 0.0
        %748 = vmatpush1.xpose.msra.mxu0 0.0
        %749 = vmatprep.subr.mxu0 0.0
        %750 = vmatpush1.xpose.msra.mxu0 0.0
        %751 = vmatprep.mubr.f32.mxu0 0.0
        %752 = vmatmul.mubr.f32.gmra.mrb[0].mxu0 %v683
        %v753 = vpop.f32.mrb[0].mxu0
        %v754 = vadd.f32 %v678, %v753
        %v755 = vpop.f32.mrb[0].mxu0
        %756 = vdwg.mxu0
        %758 = vrot.lane.b32.xlu0 %v670, 96
        %v759 = vpop.permute.xlu0 %758
        %v760 = vsel %vm682, %v670, 0
        %v762 = vsel %vm682, %v759, 0
        %764 = vmatprep.subr.mxu0 0.0
        %765 = vmatpush1.xpose.msra.mxu0 %v762
        %766 = vmatprep.subr.mxu0 0.0
        %767 = vmatpush1.xpose.msra.mxu0 0.0
        %768 = vmatprep.subr.mxu0 0.0
        %769 = vmatpush1.xpose.msra.mxu0 0.0
        %770 = vmatprep.subr.mxu0 0.0
        %771 = vmatpush1.xpose.msra.mxu0 0.0
        %772 = vmatprep.subr.mxu0 0.0
        %773 = vmatpush1.xpose.msra.mxu0 0.0
        %774 = vmatprep.subr.mxu0 0.0
        %775 = vmatpush1.xpose.msra.mxu0 0.0
        %776 = vmatprep.subr.mxu0 0.0
        %777 = vmatpush1.xpose.msra.mxu0 0.0
        %778 = vmatprep.subr.mxu0 0.0
        %779 = vmatpush1.xpose.msra.mxu0 0.0
        %780 = vmatprep.subr.mxu0 0.0
        %781 = vmatpush1.xpose.msra.mxu0 0.0
        %782 = vmatprep.subr.mxu0 0.0
        %783 = vmatpush1.xpose.msra.mxu0 0.0
        %784 = vmatprep.subr.mxu0 0.0
        %785 = vmatpush1.xpose.msra.mxu0 0.0
        %786 = vmatprep.subr.mxu0 0.0
        %787 = vmatpush1.xpose.msra.mxu0 0.0
        %788 = vmatprep.subr.mxu0 0.0
        %789 = vmatpush1.xpose.msra.mxu0 0.0
        %790 = vmatprep.subr.mxu0 0.0
        %791 = vmatpush1.xpose.msra.mxu0 0.0
        %792 = vmatprep.subr.mxu0 0.0
        %793 = vmatpush1.xpose.msra.mxu0 0.0
        %794 = vmatprep.subr.mxu0 0.0
        %795 = vmatpush1.xpose.msra.mxu0 0.0
        %796 = vmatprep.subr.mxu0 0.0
        %797 = vmatpush1.xpose.msra.mxu0 0.0
        %798 = vmatprep.subr.mxu0 0.0
        %799 = vmatpush1.xpose.msra.mxu0 0.0
        %800 = vmatprep.subr.mxu0 0.0
        %801 = vmatpush1.xpose.msra.mxu0 0.0
        %802 = vmatprep.subr.mxu0 0.0
        %803 = vmatpush1.xpose.msra.mxu0 0.0
        %804 = vmatprep.subr.mxu0 0.0
        %805 = vmatpush1.xpose.msra.mxu0 0.0
        %806 = vmatprep.subr.mxu0 0.0
        %807 = vmatpush1.xpose.msra.mxu0 0.0
        %808 = vmatprep.subr.mxu0 0.0
        %809 = vmatpush1.xpose.msra.mxu0 0.0
        %810 = vmatprep.subr.mxu0 0.0
        %811 = vmatpush1.xpose.msra.mxu0 0.0
        %812 = vmatprep.subr.mxu0 0.0
        %813 = vmatpush1.xpose.msra.mxu0 0.0
        %814 = vmatprep.subr.mxu0 0.0
        %815 = vmatpush1.xpose.msra.mxu0 0.0
        %816 = vmatprep.subr.mxu0 0.0
        %817 = vmatpush1.xpose.msra.mxu0 0.0
        %818 = vmatprep.subr.mxu0 0.0
        %819 = vmatpush1.xpose.msra.mxu0 0.0
        %820 = vmatprep.subr.mxu0 0.0
        %821 = vmatpush1.xpose.msra.mxu0 0.0
        %822 = vmatprep.subr.mxu0 0.0
        %823 = vmatpush1.xpose.msra.mxu0 0.0
        %824 = vmatprep.subr.mxu0 0.0
        %825 = vmatpush1.xpose.msra.mxu0 0.0
        %826 = vmatprep.subr.mxu0 0.0
        %827 = vmatpush1.xpose.msra.mxu0 0.0
        %828 = vmatprep.mubr.f32.mxu0 0.0
        %829 = vmatmul.mubr.f32.gmra.mrb[0].mxu0 %v760
        %v830 = vpop.f32.mrb[0].mxu0
        %v831 = vadd.f32 %v678, %v830
        %v832 = vpop.f32.mrb[0].mxu0
        %833 = vdwg.mxu0
        %v834 = vsel %vm682, %v754, -inf
        %835 = vmax.xlane.f32.xlu0 %v834
        %v836 = vpop.xlane.xlu0 %835
        %v837 = vsel %vm682, %v831, -inf
        %838 = vmax.xlane.f32.xlu0 %v837
        %v839 = vpop.xlane.xlu0 %838
        %v840 = vsub.f32 %v754, %v836
        %v841 = vsub.f32 %v831, %v839
        %v842 = vmul.f32 %v840, 1.442695
        %v843 = vpow.pop %v842
        %v844 = vmul.f32 %v841, 1.442695
        %v845 = vpow.pop %v844
        %v846 = vsel %vm682, %v843, 0.0
        %847 = vadd.xlane.f32.xlu0 %v846
        %v848 = vpop.xlane.xlu0 %847
        %v849 = vsel %vm682, %v845, 0.0
        %850 = vadd.xlane.f32.xlu0 %v849
        %v851 = vpop.xlane.xlu0 %850
        %v852 = vrcp.pop %v848
        %v853 = vrcp.pop %v851
        %v854 = vmul.f32 %v843, %v852
        %v855 = vmul.f32 %v845, %v853
        %856 = vrot.lane.b32.xlu0 %v665, 64
        %v857 = vpop.permute.xlu0 %856
        %v860 = vsel %vm682, %v854, 0
        %862 = vmatprep.subr.mxu0 0.0
        %863 = vmatpush1.msra.mxu0 %v857
        %864 = vmatprep.subr.mxu0 0.0
        %865 = vmatpush1.msra.mxu0 0.0
        %866 = vmatprep.subr.mxu0 0.0
        %867 = vmatpush1.msra.mxu0 0.0
        %868 = vmatprep.subr.mxu0 0.0
        %869 = vmatpush1.msra.mxu0 0.0
        %870 = vmatprep.subr.mxu0 0.0
        %871 = vmatpush1.msra.mxu0 0.0
        %872 = vmatprep.subr.mxu0 0.0
        %873 = vmatpush1.msra.mxu0 0.0
        %874 = vmatprep.subr.mxu0 0.0
        %875 = vmatpush1.msra.mxu0 0.0
        %876 = vmatprep.subr.mxu0 0.0
        %877 = vmatpush1.msra.mxu0 0.0
        %878 = vmatprep.subr.mxu0 0.0
        %879 = vmatpush1.msra.mxu0 0.0
        %880 = vmatprep.subr.mxu0 0.0
        %881 = vmatpush1.msra.mxu0 0.0
        %882 = vmatprep.subr.mxu0 0.0
        %883 = vmatpush1.msra.mxu0 0.0
        %884 = vmatprep.subr.mxu0 0.0
        %885 = vmatpush1.msra.mxu0 0.0
        %886 = vmatprep.subr.mxu0 0.0
        %887 = vmatpush1.msra.mxu0 0.0
        %888 = vmatprep.subr.mxu0 0.0
        %889 = vmatpush1.msra.mxu0 0.0
        %890 = vmatprep.subr.mxu0 0.0
        %891 = vmatpush1.msra.mxu0 0.0
        %892 = vmatprep.subr.mxu0 0.0
        %893 = vmatpush1.msra.mxu0 0.0
        %894 = vmatprep.subr.mxu0 0.0
        %895 = vmatpush1.msra.mxu0 0.0
        %896 = vmatprep.subr.mxu0 0.0
        %897 = vmatpush1.msra.mxu0 0.0
        %898 = vmatprep.subr.mxu0 0.0
        %899 = vmatpush1.msra.mxu0 0.0
        %900 = vmatprep.subr.mxu0 0.0
        %901 = vmatpush1.msra.mxu0 0.0
        %902 = vmatprep.subr.mxu0 0.0
        %903 = vmatpush1.msra.mxu0 0.0
        %904 = vmatprep.subr.mxu0 0.0
        %905 = vmatpush1.msra.mxu0 0.0
        %906 = vmatprep.subr.mxu0 0.0
        %907 = vmatpush1.msra.mxu0 0.0
        %908 = vmatprep.subr.mxu0 0.0
        %909 = vmatpush1.msra.mxu0 0.0
        %910 = vmatprep.subr.mxu0 0.0
        %911 = vmatpush1.msra.mxu0 0.0
        %912 = vmatprep.subr.mxu0 0.0
        %913 = vmatpush1.msra.mxu0 0.0
        %914 = vmatprep.subr.mxu0 0.0
        %915 = vmatpush1.msra.mxu0 0.0
        %916 = vmatprep.subr.mxu0 0.0
        %917 = vmatpush1.msra.mxu0 0.0
        %918 = vmatprep.subr.mxu0 0.0
        %919 = vmatpush1.msra.mxu0 0.0
        %920 = vmatprep.subr.mxu0 0.0
        %921 = vmatpush1.msra.mxu0 0.0
        %922 = vmatprep.subr.mxu0 0.0
        %923 = vmatpush1.msra.mxu0 0.0
        %924 = vmatprep.subr.mxu0 0.0
        %925 = vmatpush1.msra.mxu0 0.0
        %926 = vmatprep.mubr.f32.mxu0 0.0
        %927 = vmatmul.mubr.f32.gmra.mrb[0].mxu0 %v860
        %v928 = vpop.f32.mrb[0].mxu0
        %v929 = vadd.f32 0.0, %v928
        %v930 = vpop.f32.mrb[0].mxu0
        %931 = vdwg.mxu0
        %932 = vrot.lane.b32.xlu0 %v670, 64
        %v933 = vpop.permute.xlu0 %932
        %v936 = vsel %vm682, %v855, 0
        %938 = vmatprep.subr.mxu0 0.0
        %939 = vmatpush1.msra.mxu0 %v933
        %940 = vmatprep.subr.mxu0 0.0
        %941 = vmatpush1.msra.mxu0 0.0
        %942 = vmatprep.subr.mxu0 0.0
        %943 = vmatpush1.msra.mxu0 0.0
        %944 = vmatprep.subr.mxu0 0.0
        %945 = vmatpush1.msra.mxu0 0.0
        %946 = vmatprep.subr.mxu0 0.0
        %947 = vmatpush1.msra.mxu0 0.0
        %948 = vmatprep.subr.mxu0 0.0
        %949 = vmatpush1.msra.mxu0 0.0
        %950 = vmatprep.subr.mxu0 0.0
        %951 = vmatpush1.msra.mxu0 0.0
        %952 = vmatprep.subr.mxu0 0.0
        %953 = vmatpush1.msra.mxu0 0.0
        %954 = vmatprep.subr.mxu0 0.0
        %955 = vmatpush1.msra.mxu0 0.0
        %956 = vmatprep.subr.mxu0 0.0
        %957 = vmatpush1.msra.mxu0 0.0
        %958 = vmatprep.subr.mxu0 0.0
        %959 = vmatpush1.msra.mxu0 0.0
        %960 = vmatprep.subr.mxu0 0.0
        %961 = vmatpush1.msra.mxu0 0.0
        %962 = vmatprep.subr.mxu0 0.0
        %963 = vmatpush1.msra.mxu0 0.0
        %964 = vmatprep.subr.mxu0 0.0
        %965 = vmatpush1.msra.mxu0 0.0
        %966 = vmatprep.subr.mxu0 0.0
        %967 = vmatpush1.msra.mxu0 0.0
        %968 = vmatprep.subr.mxu0 0.0
        %969 = vmatpush1.msra.mxu0 0.0
        %970 = vmatprep.subr.mxu0 0.0
        %971 = vmatpush1.msra.mxu0 0.0
        %972 = vmatprep.subr.mxu0 0.0
        %973 = vmatpush1.msra.mxu0 0.0
        %974 = vmatprep.subr.mxu0 0.0
        %975 = vmatpush1.msra.mxu0 0.0
        %976 = vmatprep.subr.mxu0 0.0
        %977 = vmatpush1.msra.mxu0 0.0
        %978 = vmatprep.subr.mxu0 0.0
        %979 = vmatpush1.msra.mxu0 0.0
        %980 = vmatprep.subr.mxu0 0.0
        %981 = vmatpush1.msra.mxu0 0.0
        %982 = vmatprep.subr.mxu0 0.0
        %983 = vmatpush1.msra.mxu0 0.0
        %984 = vmatprep.subr.mxu0 0.0
        %985 = vmatpush1.msra.mxu0 0.0
        %986 = vmatprep.subr.mxu0 0.0
        %987 = vmatpush1.msra.mxu0 0.0
        %988 = vmatprep.subr.mxu0 0.0
        %989 = vmatpush1.msra.mxu0 0.0
        %990 = vmatprep.subr.mxu0 0.0
        %991 = vmatpush1.msra.mxu0 0.0
        %992 = vmatprep.subr.mxu0 0.0
        %993 = vmatpush1.msra.mxu0 0.0
        %994 = vmatprep.subr.mxu0 0.0
        %995 = vmatpush1.msra.mxu0 0.0
        %996 = vmatprep.subr.mxu0 0.0
        %997 = vmatpush1.msra.mxu0 0.0
        %998 = vmatprep.subr.mxu0 0.0
        %999 = vmatpush1.msra.mxu0 0.0
        %1000 = vmatprep.subr.mxu0 0.0
        %1001 = vmatpush1.msra.mxu0 0.0
        %1002 = vmatprep.mubr.f32.mxu0 0.0
        %1003 = vmatmul.mubr.f32.gmra.mrb[0].mxu0 %v936
        %v1004 = vpop.f32.mrb[0].mxu0
        %v1005 = vadd.f32 0.0, %v1004
        %v1006 = vpop.f32.mrb[0].mxu0
        %1007 = vdwg.mxu0
        %1008 = vst.msk [vmem:[#allocation2] sm:$0xff] %vm682, %v929
        %1009 = vst.msk [vmem:[#allocation2 + $0x8] sm:$0xff] %vm682, %v1005
        %1010 = vrot.lane.b32.xlu0 %v665, 120
        %v1011 = vpop.permute.xlu0 %1010
        %1012 = vrot.lane.b32.xlu0 %v665, 88
        %v1013 = vpop.permute.xlu0 %1012
        %v1014 = vsel %vm682, %v1011, 0
        %v1016 = vsel %vm682, %v1013, 0
        %1018 = vmatprep.subr.mxu0 0.0
        %1019 = vmatpush1.xpose.msra.mxu0 %v1016
        %1020 = vmatprep.subr.mxu0 0.0
        %1021 = vmatpush1.xpose.msra.mxu0 0.0
        %1022 = vmatprep.subr.mxu0 0.0
        %1023 = vmatpush1.xpose.msra.mxu0 0.0
        %1024 = vmatprep.subr.mxu0 0.0
        %1025 = vmatpush1.xpose.msra.mxu0 0.0
        %1026 = vmatprep.subr.mxu0 0.0
        %1027 = vmatpush1.xpose.msra.mxu0 0.0
        %1028 = vmatprep.subr.mxu0 0.0
        %1029 = vmatpush1.xpose.msra.mxu0 0.0
        %1030 = vmatprep.subr.mxu0 0.0
        %1031 = vmatpush1.xpose.msra.mxu0 0.0
        %1032 = vmatprep.subr.mxu0 0.0
        %1033 = vmatpush1.xpose.msra.mxu0 0.0
        %1034 = vmatprep.subr.mxu0 0.0
        %1035 = vmatpush1.xpose.msra.mxu0 0.0
        %1036 = vmatprep.subr.mxu0 0.0
        %1037 = vmatpush1.xpose.msra.mxu0 0.0
        %1038 = vmatprep.subr.mxu0 0.0
        %1039 = vmatpush1.xpose.msra.mxu0 0.0
        %1040 = vmatprep.subr.mxu0 0.0
        %1041 = vmatpush1.xpose.msra.mxu0 0.0
        %1042 = vmatprep.subr.mxu0 0.0
        %1043 = vmatpush1.xpose.msra.mxu0 0.0
        %1044 = vmatprep.subr.mxu0 0.0
        %1045 = vmatpush1.xpose.msra.mxu0 0.0
        %1046 = vmatprep.subr.mxu0 0.0
        %1047 = vmatpush1.xpose.msra.mxu0 0.0
        %1048 = vmatprep.subr.mxu0 0.0
        %1049 = vmatpush1.xpose.msra.mxu0 0.0
        %1050 = vmatprep.subr.mxu0 0.0
        %1051 = vmatpush1.xpose.msra.mxu0 0.0
        %1052 = vmatprep.subr.mxu0 0.0
        %1053 = vmatpush1.xpose.msra.mxu0 0.0
        %1054 = vmatprep.subr.mxu0 0.0
        %1055 = vmatpush1.xpose.msra.mxu0 0.0
        %1056 = vmatprep.subr.mxu0 0.0
        %1057 = vmatpush1.xpose.msra.mxu0 0.0
        %1058 = vmatprep.subr.mxu0 0.0
        %1059 = vmatpush1.xpose.msra.mxu0 0.0
        %1060 = vmatprep.subr.mxu0 0.0
        %1061 = vmatpush1.xpose.msra.mxu0 0.0
        %1062 = vmatprep.subr.mxu0 0.0
        %1063 = vmatpush1.xpose.msra.mxu0 0.0
        %1064 = vmatprep.subr.mxu0 0.0
        %1065 = vmatpush1.xpose.msra.mxu0 0.0
        %1066 = vmatprep.subr.mxu0 0.0
        %1067 = vmatpush1.xpose.msra.mxu0 0.0
        %1068 = vmatprep.subr.mxu0 0.0
        %1069 = vmatpush1.xpose.msra.mxu0 0.0
        %1070 = vmatprep.subr.mxu0 0.0
        %1071 = vmatpush1.xpose.msra.mxu0 0.0
        %1072 = vmatprep.subr.mxu0 0.0
        %1073 = vmatpush1.xpose.msra.mxu0 0.0
        %1074 = vmatprep.subr.mxu0 0.0
        %1075 = vmatpush1.xpose.msra.mxu0 0.0
        %1076 = vmatprep.subr.mxu0 0.0
        %1077 = vmatpush1.xpose.msra.mxu0 0.0
        %1078 = vmatprep.subr.mxu0 0.0
        %1079 = vmatpush1.xpose.msra.mxu0 0.0
        %1080 = vmatprep.subr.mxu0 0.0
        %1081 = vmatpush1.xpose.msra.mxu0 0.0
        %1082 = vmatprep.mubr.f32.mxu0 0.0
        %1083 = vmatmul.mubr.f32.gmra.mrb[0].mxu0 %v1014
        %v1084 = vpop.f32.mrb[0].mxu0
        %v1085 = vadd.f32 %v678, %v1084
        %v1086 = vpop.f32.mrb[0].mxu0
        %1087 = vdwg.mxu0
        %1088 = vrot.lane.b32.xlu0 %v670, 120
        %v1089 = vpop.permute.xlu0 %1088
        %1090 = vrot.lane.b32.xlu0 %v670, 88
        %v1091 = vpop.permute.xlu0 %1090
        %v1092 = vsel %vm682, %v1089, 0
        %v1094 = vsel %vm682, %v1091, 0
        %1096 = vmatprep.subr.mxu0 0.0
        %1097 = vmatpush1.xpose.msra.mxu0 %v1094
        %1098 = vmatprep.subr.mxu0 0.0
        %1099 = vmatpush1.xpose.msra.mxu0 0.0
        %1100 = vmatprep.subr.mxu0 0.0
        %1101 = vmatpush1.xpose.msra.mxu0 0.0
        %1102 = vmatprep.subr.mxu0 0.0
        %1103 = vmatpush1.xpose.msra.mxu0 0.0
        %1104 = vmatprep.subr.mxu0 0.0
        %1105 = vmatpush1.xpose.msra.mxu0 0.0
        %1106 = vmatprep.subr.mxu0 0.0
        %1107 = vmatpush1.xpose.msra.mxu0 0.0
        %1108 = vmatprep.subr.mxu0 0.0
        %1109 = vmatpush1.xpose.msra.mxu0 0.0
        %1110 = vmatprep.subr.mxu0 0.0
        %1111 = vmatpush1.xpose.msra.mxu0 0.0
        %1112 = vmatprep.subr.mxu0 0.0
        %1113 = vmatpush1.xpose.msra.mxu0 0.0
        %1114 = vmatprep.subr.mxu0 0.0
        %1115 = vmatpush1.xpose.msra.mxu0 0.0
        %1116 = vmatprep.subr.mxu0 0.0
        %1117 = vmatpush1.xpose.msra.mxu0 0.0
        %1118 = vmatprep.subr.mxu0 0.0
        %1119 = vmatpush1.xpose.msra.mxu0 0.0
        %1120 = vmatprep.subr.mxu0 0.0
        %1121 = vmatpush1.xpose.msra.mxu0 0.0
        %1122 = vmatprep.subr.mxu0 0.0
        %1123 = vmatpush1.xpose.msra.mxu0 0.0
        %1124 = vmatprep.subr.mxu0 0.0
        %1125 = vmatpush1.xpose.msra.mxu0 0.0
        %1126 = vmatprep.subr.mxu0 0.0
        %1127 = vmatpush1.xpose.msra.mxu0 0.0
        %1128 = vmatprep.subr.mxu0 0.0
        %1129 = vmatpush1.xpose.msra.mxu0 0.0
        %1130 = vmatprep.subr.mxu0 0.0
        %1131 = vmatpush1.xpose.msra.mxu0 0.0
        %1132 = vmatprep.subr.mxu0 0.0
        %1133 = vmatpush1.xpose.msra.mxu0 0.0
        %1134 = vmatprep.subr.mxu0 0.0
        %1135 = vmatpush1.xpose.msra.mxu0 0.0
        %1136 = vmatprep.subr.mxu0 0.0
        %1137 = vmatpush1.xpose.msra.mxu0 0.0
        %1138 = vmatprep.subr.mxu0 0.0
        %1139 = vmatpush1.xpose.msra.mxu0 0.0
        %1140 = vmatprep.subr.mxu0 0.0
        %1141 = vmatpush1.xpose.msra.mxu0 0.0
        %1142 = vmatprep.subr.mxu0 0.0
        %1143 = vmatpush1.xpose.msra.mxu0 0.0
        %1144 = vmatprep.subr.mxu0 0.0
        %1145 = vmatpush1.xpose.msra.mxu0 0.0
        %1146 = vmatprep.subr.mxu0 0.0
        %1147 = vmatpush1.xpose.msra.mxu0 0.0
        %1148 = vmatprep.subr.mxu0 0.0
        %1149 = vmatpush1.xpose.msra.mxu0 0.0
        %1150 = vmatprep.subr.mxu0 0.0
        %1151 = vmatpush1.xpose.msra.mxu0 0.0
        %1152 = vmatprep.subr.mxu0 0.0
        %1153 = vmatpush1.xpose.msra.mxu0 0.0
        %1154 = vmatprep.subr.mxu0 0.0
        %1155 = vmatpush1.xpose.msra.mxu0 0.0
        %1156 = vmatprep.subr.mxu0 0.0
        %1157 = vmatpush1.xpose.msra.mxu0 0.0
        %1158 = vmatprep.subr.mxu0 0.0
        %1159 = vmatpush1.xpose.msra.mxu0 0.0
        %1160 = vmatprep.mubr.f32.mxu0 0.0
        %1161 = vmatmul.mubr.f32.gmra.mrb[0].mxu0 %v1092
        %v1162 = vpop.f32.mrb[0].mxu0
        %v1163 = vadd.f32 %v678, %v1162
        %v1164 = vpop.f32.mrb[0].mxu0
        %1165 = vdwg.mxu0
        %v1166 = vsel %vm682, %v1085, -inf
        %1167 = vmax.xlane.f32.xlu0 %v1166
        %v1168 = vpop.xlane.xlu0 %1167
        %v1169 = vsel %vm682, %v1163, -inf
        %1170 = vmax.xlane.f32.xlu0 %v1169
        %v1171 = vpop.xlane.xlu0 %1170
        %v1172 = vsub.f32 %v1085, %v1168
        %v1173 = vsub.f32 %v1163, %v1171
        %v1174 = vmul.f32 %v1172, 1.442695
        %v1175 = vpow.pop %v1174
        %v1176 = vmul.f32 %v1173, 1.442695
        %v1177 = vpow.pop %v1176
        %v1178 = vsel %vm682, %v1175, 0.0
        %1179 = vadd.xlane.f32.xlu0 %v1178
        %v1180 = vpop.xlane.xlu0 %1179
        %v1181 = vsel %vm682, %v1177, 0.0
        %1182 = vadd.xlane.f32.xlu0 %v1181
        %v1183 = vpop.xlane.xlu0 %1182
        %v1184 = vrcp.pop %v1180
        %v1185 = vrcp.pop %v1183
        %v1186 = vmul.f32 %v1175, %v1184
        %v1187 = vmul.f32 %v1177, %v1185
        %1188 = vrot.lane.b32.xlu0 %v665, 56
        %v1189 = vpop.permute.xlu0 %1188
        %v1192 = vsel %vm682, %v1186, 0
        %1194 = vmatprep.subr.mxu0 0.0
        %1195 = vmatpush1.msra.mxu0 %v1189
        %1196 = vmatprep.subr.mxu0 0.0
        %1197 = vmatpush1.msra.mxu0 0.0
        %1198 = vmatprep.subr.mxu0 0.0
        %1199 = vmatpush1.msra.mxu0 0.0
        %1200 = vmatprep.subr.mxu0 0.0
        %1201 = vmatpush1.msra.mxu0 0.0
        %1202 = vmatprep.subr.mxu0 0.0
        %1203 = vmatpush1.msra.mxu0 0.0
        %1204 = vmatprep.subr.mxu0 0.0
        %1205 = vmatpush1.msra.mxu0 0.0
        %1206 = vmatprep.subr.mxu0 0.0
        %1207 = vmatpush1.msra.mxu0 0.0
        %1208 = vmatprep.subr.mxu0 0.0
        %1209 = vmatpush1.msra.mxu0 0.0
        %1210 = vmatprep.subr.mxu0 0.0
        %1211 = vmatpush1.msra.mxu0 0.0
        %1212 = vmatprep.subr.mxu0 0.0
        %1213 = vmatpush1.msra.mxu0 0.0
        %1214 = vmatprep.subr.mxu0 0.0
        %1215 = vmatpush1.msra.mxu0 0.0
        %1216 = vmatprep.subr.mxu0 0.0
        %1217 = vmatpush1.msra.mxu0 0.0
        %1218 = vmatprep.subr.mxu0 0.0
        %1219 = vmatpush1.msra.mxu0 0.0
        %1220 = vmatprep.subr.mxu0 0.0
        %1221 = vmatpush1.msra.mxu0 0.0
        %1222 = vmatprep.subr.mxu0 0.0
        %1223 = vmatpush1.msra.mxu0 0.0
        %1224 = vmatprep.subr.mxu0 0.0
        %1225 = vmatpush1.msra.mxu0 0.0
        %1226 = vmatprep.subr.mxu0 0.0
        %1227 = vmatpush1.msra.mxu0 0.0
        %1228 = vmatprep.subr.mxu0 0.0
        %1229 = vmatpush1.msra.mxu0 0.0
        %1230 = vmatprep.subr.mxu0 0.0
        %1231 = vmatpush1.msra.mxu0 0.0
        %1232 = vmatprep.subr.mxu0 0.0
        %1233 = vmatpush1.msra.mxu0 0.0
        %1234 = vmatprep.subr.mxu0 0.0
        %1235 = vmatpush1.msra.mxu0 0.0
        %1236 = vmatprep.subr.mxu0 0.0
        %1237 = vmatpush1.msra.mxu0 0.0
        %1238 = vmatprep.subr.mxu0 0.0
        %1239 = vmatpush1.msra.mxu0 0.0
        %1240 = vmatprep.subr.mxu0 0.0
        %1241 = vmatpush1.msra.mxu0 0.0
        %1242 = vmatprep.subr.mxu0 0.0
        %1243 = vmatpush1.msra.mxu0 0.0
        %1244 = vmatprep.subr.mxu0 0.0
        %1245 = vmatpush1.msra.mxu0 0.0
        %1246 = vmatprep.subr.mxu0 0.0
        %1247 = vmatpush1.msra.mxu0 0.0
        %1248 = vmatprep.subr.mxu0 0.0
        %1249 = vmatpush1.msra.mxu0 0.0
        %1250 = vmatprep.subr.mxu0 0.0
        %1251 = vmatpush1.msra.mxu0 0.0
        %1252 = vmatprep.subr.mxu0 0.0
        %1253 = vmatpush1.msra.mxu0 0.0
        %1254 = vmatprep.subr.mxu0 0.0
        %1255 = vmatpush1.msra.mxu0 0.0
        %1256 = vmatprep.subr.mxu0 0.0
        %1257 = vmatpush1.msra.mxu0 0.0
        %1258 = vmatprep.mubr.f32.mxu0 0.0
        %1259 = vmatmul.mubr.f32.gmra.mrb[0].mxu0 %v1192
        %v1260 = vpop.f32.mrb[0].mxu0
        %v1261 = vadd.f32 0.0, %v1260
        %v1262 = vpop.f32.mrb[0].mxu0
        %1263 = vdwg.mxu0
        %1264 = vrot.lane.b32.xlu0 %v670, 56
        %v1265 = vpop.permute.xlu0 %1264
        %v1268 = vsel %vm682, %v1187, 0
        %1270 = vmatprep.subr.mxu0 0.0
        %1271 = vmatpush1.msra.mxu0 %v1265
        %1272 = vmatprep.subr.mxu0 0.0
        %1273 = vmatpush1.msra.mxu0 0.0
        %1274 = vmatprep.subr.mxu0 0.0
        %1275 = vmatpush1.msra.mxu0 0.0
        %1276 = vmatprep.subr.mxu0 0.0
        %1277 = vmatpush1.msra.mxu0 0.0
        %1278 = vmatprep.subr.mxu0 0.0
        %1279 = vmatpush1.msra.mxu0 0.0
        %1280 = vmatprep.subr.mxu0 0.0
        %1281 = vmatpush1.msra.mxu0 0.0
        %1282 = vmatprep.subr.mxu0 0.0
        %1283 = vmatpush1.msra.mxu0 0.0
        %1284 = vmatprep.subr.mxu0 0.0
        %1285 = vmatpush1.msra.mxu0 0.0
        %1286 = vmatprep.subr.mxu0 0.0
        %1287 = vmatpush1.msra.mxu0 0.0
        %1288 = vmatprep.subr.mxu0 0.0
        %1289 = vmatpush1.msra.mxu0 0.0
        %1290 = vmatprep.subr.mxu0 0.0
        %1291 = vmatpush1.msra.mxu0 0.0
        %1292 = vmatprep.subr.mxu0 0.0
        %1293 = vmatpush1.msra.mxu0 0.0
        %1294 = vmatprep.subr.mxu0 0.0
        %1295 = vmatpush1.msra.mxu0 0.0
        %1296 = vmatprep.subr.mxu0 0.0
        %1297 = vmatpush1.msra.mxu0 0.0
        %1298 = vmatprep.subr.mxu0 0.0
        %1299 = vmatpush1.msra.mxu0 0.0
        %1300 = vmatprep.subr.mxu0 0.0
        %1301 = vmatpush1.msra.mxu0 0.0
        %1302 = vmatprep.subr.mxu0 0.0
        %1303 = vmatpush1.msra.mxu0 0.0
        %1304 = vmatprep.subr.mxu0 0.0
        %1305 = vmatpush1.msra.mxu0 0.0
        %1306 = vmatprep.subr.mxu0 0.0
        %1307 = vmatpush1.msra.mxu0 0.0
        %1308 = vmatprep.subr.mxu0 0.0
        %1309 = vmatpush1.msra.mxu0 0.0
        %1310 = vmatprep.subr.mxu0 0.0
        %1311 = vmatpush1.msra.mxu0 0.0
        %1312 = vmatprep.subr.mxu0 0.0
        %1313 = vmatpush1.msra.mxu0 0.0
        %1314 = vmatprep.subr.mxu0 0.0
        %1315 = vmatpush1.msra.mxu0 0.0
        %1316 = vmatprep.subr.mxu0 0.0
        %1317 = vmatpush1.msra.mxu0 0.0
        %1318 = vmatprep.subr.mxu0 0.0
        %1319 = vmatpush1.msra.mxu0 0.0
        %1320 = vmatprep.subr.mxu0 0.0
        %1321 = vmatpush1.msra.mxu0 0.0
        %1322 = vmatprep.subr.mxu0 0.0
        %1323 = vmatpush1.msra.mxu0 0.0
        %1324 = vmatprep.subr.mxu0 0.0
        %1325 = vmatpush1.msra.mxu0 0.0
        %1326 = vmatprep.subr.mxu0 0.0
        %1327 = vmatpush1.msra.mxu0 0.0
        %1328 = vmatprep.subr.mxu0 0.0
        %1329 = vmatpush1.msra.mxu0 0.0
        %1330 = vmatprep.subr.mxu0 0.0
        %1331 = vmatpush1.msra.mxu0 0.0
        %1332 = vmatprep.subr.mxu0 0.0
        %1333 = vmatpush1.msra.mxu0 0.0
        %1334 = vmatprep.mubr.f32.mxu0 0.0
        %1335 = vmatmul.mubr.f32.gmra.mrb[0].mxu0 %v1268
        %v1336 = vpop.f32.mrb[0].mxu0
        %v1337 = vadd.f32 0.0, %v1336
        %v1338 = vpop.f32.mrb[0].mxu0
        %1339 = vdwg.mxu0
        %1342 = vrot.lane.b32.xlu0 %v1261, 8
        %v1343 = vpop.permute.xlu0 %1342
        %1344 = vrot.lane.b32.xlu0 %v1337, 8
        %v1345 = vpop.permute.xlu0 %1344
        %vm1348 = vcmask 130112
        %1349 = vst.msk [vmem:[#allocation2] sm:$0xff] %vm1348, %v1343
        %1350 = vst.msk [vmem:[#allocation2 + $0x8] sm:$0xff] %vm1348, %v1345
        %1351 = vrot.lane.b32.xlu0 %v665, 112
        %v1352 = vpop.permute.xlu0 %1351
        %1353 = vrot.lane.b32.xlu0 %v665, 80
        %v1354 = vpop.permute.xlu0 %1353
        %v1355 = vsel %vm682, %v1352, 0
        %v1357 = vsel %vm682, %v1354, 0
        %1359 = vmatprep.subr.mxu0 0.0
        %1360 = vmatpush1.xpose.msra.mxu0 %v1357
        %1361 = vmatprep.subr.mxu0 0.0
        %1362 = vmatpush1.xpose.msra.mxu0 0.0
        %1363 = vmatprep.subr.mxu0 0.0
        %1364 = vmatpush1.xpose.msra.mxu0 0.0
        %1365 = vmatprep.subr.mxu0 0.0
        %1366 = vmatpush1.xpose.msra.mxu0 0.0
        %1367 = vmatprep.subr.mxu0 0.0
        %1368 = vmatpush1.xpose.msra.mxu0 0.0
        %1369 = vmatprep.subr.mxu0 0.0
        %1370 = vmatpush1.xpose.msra.mxu0 0.0
        %1371 = vmatprep.subr.mxu0 0.0
        %1372 = vmatpush1.xpose.msra.mxu0 0.0
        %1373 = vmatprep.subr.mxu0 0.0
        %1374 = vmatpush1.xpose.msra.mxu0 0.0
        %1375 = vmatprep.subr.mxu0 0.0
        %1376 = vmatpush1.xpose.msra.mxu0 0.0
        %1377 = vmatprep.subr.mxu0 0.0
        %1378 = vmatpush1.xpose.msra.mxu0 0.0
        %1379 = vmatprep.subr.mxu0 0.0
        %1380 = vmatpush1.xpose.msra.mxu0 0.0
        %1381 = vmatprep.subr.mxu0 0.0
        %1382 = vmatpush1.xpose.msra.mxu0 0.0
        %1383 = vmatprep.subr.mxu0 0.0
        %1384 = vmatpush1.xpose.msra.mxu0 0.0
        %1385 = vmatprep.subr.mxu0 0.0
        %1386 = vmatpush1.xpose.msra.mxu0 0.0
        %1387 = vmatprep.subr.mxu0 0.0
        %1388 = vmatpush1.xpose.msra.mxu0 0.0
        %1389 = vmatprep.subr.mxu0 0.0
        %1390 = vmatpush1.xpose.msra.mxu0 0.0
        %1391 = vmatprep.subr.mxu0 0.0
        %1392 = vmatpush1.xpose.msra.mxu0 0.0
        %1393 = vmatprep.subr.mxu0 0.0
        %1394 = vmatpush1.xpose.msra.mxu0 0.0
        %1395 = vmatprep.subr.mxu0 0.0
        %1396 = vmatpush1.xpose.msra.mxu0 0.0
        %1397 = vmatprep.subr.mxu0 0.0
        %1398 = vmatpush1.xpose.msra.mxu0 0.0
        %1399 = vmatprep.subr.mxu0 0.0
        %1400 = vmatpush1.xpose.msra.mxu0 0.0
        %1401 = vmatprep.subr.mxu0 0.0
        %1402 = vmatpush1.xpose.msra.mxu0 0.0
        %1403 = vmatprep.subr.mxu0 0.0
        %1404 = vmatpush1.xpose.msra.mxu0 0.0
        %1405 = vmatprep.subr.mxu0 0.0
        %1406 = vmatpush1.xpose.msra.mxu0 0.0
        %1407 = vmatprep.subr.mxu0 0.0
        %1408 = vmatpush1.xpose.msra.mxu0 0.0
        %1409 = vmatprep.subr.mxu0 0.0
        %1410 = vmatpush1.xpose.msra.mxu0 0.0
        %1411 = vmatprep.subr.mxu0 0.0
        %1412 = vmatpush1.xpose.msra.mxu0 0.0
        %1413 = vmatprep.subr.mxu0 0.0
        %1414 = vmatpush1.xpose.msra.mxu0 0.0
        %1415 = vmatprep.subr.mxu0 0.0
        %1416 = vmatpush1.xpose.msra.mxu0 0.0
        %1417 = vmatprep.subr.mxu0 0.0
        %1418 = vmatpush1.xpose.msra.mxu0 0.0
        %1419 = vmatprep.subr.mxu0 0.0
        %1420 = vmatpush1.xpose.msra.mxu0 0.0
        %1421 = vmatprep.subr.mxu0 0.0
        %1422 = vmatpush1.xpose.msra.mxu0 0.0
        %1423 = vmatprep.mubr.f32.mxu0 0.0
        %1424 = vmatmul.mubr.f32.gmra.mrb[0].mxu0 %v1355
        %v1425 = vpop.f32.mrb[0].mxu0
        %v1426 = vadd.f32 %v678, %v1425
        %v1427 = vpop.f32.mrb[0].mxu0
        %1428 = vdwg.mxu0
        %1429 = vrot.lane.b32.xlu0 %v670, 112
        %v1430 = vpop.permute.xlu0 %1429
        %1431 = vrot.lane.b32.xlu0 %v670, 80
        %v1432 = vpop.permute.xlu0 %1431
        %v1433 = vsel %vm682, %v1430, 0
        %v1435 = vsel %vm682, %v1432, 0
        %1437 = vmatprep.subr.mxu0 0.0
        %1438 = vmatpush1.xpose.msra.mxu0 %v1435
        %1439 = vmatprep.subr.mxu0 0.0
        %1440 = vmatpush1.xpose.msra.mxu0 0.0
        %1441 = vmatprep.subr.mxu0 0.0
        %1442 = vmatpush1.xpose.msra.mxu0 0.0
        %1443 = vmatprep.subr.mxu0 0.0
        %1444 = vmatpush1.xpose.msra.mxu0 0.0
        %1445 = vmatprep.subr.mxu0 0.0
        %1446 = vmatpush1.xpose.msra.mxu0 0.0
        %1447 = vmatprep.subr.mxu0 0.0
        %1448 = vmatpush1.xpose.msra.mxu0 0.0
        %1449 = vmatprep.subr.mxu0 0.0
        %1450 = vmatpush1.xpose.msra.mxu0 0.0
        %1451 = vmatprep.subr.mxu0 0.0
        %1452 = vmatpush1.xpose.msra.mxu0 0.0
        %1453 = vmatprep.subr.mxu0 0.0
        %1454 = vmatpush1.xpose.msra.mxu0 0.0
        %1455 = vmatprep.subr.mxu0 0.0
        %1456 = vmatpush1.xpose.msra.mxu0 0.0
        %1457 = vmatprep.subr.mxu0 0.0
        %1458 = vmatpush1.xpose.msra.mxu0 0.0
        %1459 = vmatprep.subr.mxu0 0.0
        %1460 = vmatpush1.xpose.msra.mxu0 0.0
        %1461 = vmatprep.subr.mxu0 0.0
        %1462 = vmatpush1.xpose.msra.mxu0 0.0
        %1463 = vmatprep.subr.mxu0 0.0
        %1464 = vmatpush1.xpose.msra.mxu0 0.0
        %1465 = vmatprep.subr.mxu0 0.0
        %1466 = vmatpush1.xpose.msra.mxu0 0.0
        %1467 = vmatprep.subr.mxu0 0.0
        %1468 = vmatpush1.xpose.msra.mxu0 0.0
        %1469 = vmatprep.subr.mxu0 0.0
        %1470 = vmatpush1.xpose.msra.mxu0 0.0
        %1471 = vmatprep.subr.mxu0 0.0
        %1472 = vmatpush1.xpose.msra.mxu0 0.0
        %1473 = vmatprep.subr.mxu0 0.0
        %1474 = vmatpush1.xpose.msra.mxu0 0.0
        %1475 = vmatprep.subr.mxu0 0.0
        %1476 = vmatpush1.xpose.msra.mxu0 0.0
        %1477 = vmatprep.subr.mxu0 0.0
        %1478 = vmatpush1.xpose.msra.mxu0 0.0
        %1479 = vmatprep.subr.mxu0 0.0
        %1480 = vmatpush1.xpose.msra.mxu0 0.0
        %1481 = vmatprep.subr.mxu0 0.0
        %1482 = vmatpush1.xpose.msra.mxu0 0.0
        %1483 = vmatprep.subr.mxu0 0.0
        %1484 = vmatpush1.xpose.msra.mxu0 0.0
        %1485 = vmatprep.subr.mxu0 0.0
        %1486 = vmatpush1.xpose.msra.mxu0 0.0
        %1487 = vmatprep.subr.mxu0 0.0
        %1488 = vmatpush1.xpose.msra.mxu0 0.0
        %1489 = vmatprep.subr.mxu0 0.0
        %1490 = vmatpush1.xpose.msra.mxu0 0.0
        %1491 = vmatprep.subr.mxu0 0.0
        %1492 = vmatpush1.xpose.msra.mxu0 0.0
        %1493 = vmatprep.subr.mxu0 0.0
        %1494 = vmatpush1.xpose.msra.mxu0 0.0
        %1495 = vmatprep.subr.mxu0 0.0
        %1496 = vmatpush1.xpose.msra.mxu0 0.0
        %1497 = vmatprep.subr.mxu0 0.0
        %1498 = vmatpush1.xpose.msra.mxu0 0.0
        %1499 = vmatprep.subr.mxu0 0.0
        %1500 = vmatpush1.xpose.msra.mxu0 0.0
        %1501 = vmatprep.mubr.f32.mxu0 0.0
        %1502 = vmatmul.mubr.f32.gmra.mrb[0].mxu0 %v1433
        %v1503 = vpop.f32.mrb[0].mxu0
        %v1504 = vadd.f32 %v678, %v1503
        %v1505 = vpop.f32.mrb[0].mxu0
        %1506 = vdwg.mxu0
        %v1507 = vsel %vm682, %v1426, -inf
        %1508 = vmax.xlane.f32.xlu0 %v1507
        %v1509 = vpop.xlane.xlu0 %1508
        %v1510 = vsel %vm682, %v1504, -inf
        %1511 = vmax.xlane.f32.xlu0 %v1510
        %v1512 = vpop.xlane.xlu0 %1511
        %v1513 = vsub.f32 %v1426, %v1509
        %v1514 = vsub.f32 %v1504, %v1512
        %v1515 = vmul.f32 %v1513, 1.442695
        %v1516 = vpow.pop %v1515
        %v1517 = vmul.f32 %v1514, 1.442695
        %v1518 = vpow.pop %v1517
        %v1519 = vsel %vm682, %v1516, 0.0
        %1520 = vadd.xlane.f32.xlu0 %v1519
        %v1521 = vpop.xlane.xlu0 %1520
        %v1522 = vsel %vm682, %v1518, 0.0
        %1523 = vadd.xlane.f32.xlu0 %v1522
        %v1524 = vpop.xlane.xlu0 %1523
        %v1525 = vrcp.pop %v1521
        %v1526 = vrcp.pop %v1524
        %v1527 = vmul.f32 %v1516, %v1525
        %v1528 = vmul.f32 %v1518, %v1526
        %1529 = vrot.lane.b32.xlu0 %v665, 48
        %v1530 = vpop.permute.xlu0 %1529
        %v1533 = vsel %vm682, %v1527, 0
        %1535 = vmatprep.subr.mxu0 0.0
        %1536 = vmatpush1.msra.mxu0 %v1530
        %1537 = vmatprep.subr.mxu0 0.0
        %1538 = vmatpush1.msra.mxu0 0.0
        %1539 = vmatprep.subr.mxu0 0.0
        %1540 = vmatpush1.msra.mxu0 0.0
        %1541 = vmatprep.subr.mxu0 0.0
        %1542 = vmatpush1.msra.mxu0 0.0
        %1543 = vmatprep.subr.mxu0 0.0
        %1544 = vmatpush1.msra.mxu0 0.0
        %1545 = vmatprep.subr.mxu0 0.0
        %1546 = vmatpush1.msra.mxu0 0.0
        %1547 = vmatprep.subr.mxu0 0.0
        %1548 = vmatpush1.msra.mxu0 0.0
        %1549 = vmatprep.subr.mxu0 0.0
        %1550 = vmatpush1.msra.mxu0 0.0
        %1551 = vmatprep.subr.mxu0 0.0
        %1552 = vmatpush1.msra.mxu0 0.0
        %1553 = vmatprep.subr.mxu0 0.0
        %1554 = vmatpush1.msra.mxu0 0.0
        %1555 = vmatprep.subr.mxu0 0.0
        %1556 = vmatpush1.msra.mxu0 0.0
        %1557 = vmatprep.subr.mxu0 0.0
        %1558 = vmatpush1.msra.mxu0 0.0
        %1559 = vmatprep.subr.mxu0 0.0
        %1560 = vmatpush1.msra.mxu0 0.0
        %1561 = vmatprep.subr.mxu0 0.0
        %1562 = vmatpush1.msra.mxu0 0.0
        %1563 = vmatprep.subr.mxu0 0.0
        %1564 = vmatpush1.msra.mxu0 0.0
        %1565 = vmatprep.subr.mxu0 0.0
        %1566 = vmatpush1.msra.mxu0 0.0
        %1567 = vmatprep.subr.mxu0 0.0
        %1568 = vmatpush1.msra.mxu0 0.0
        %1569 = vmatprep.subr.mxu0 0.0
        %1570 = vmatpush1.msra.mxu0 0.0
        %1571 = vmatprep.subr.mxu0 0.0
        %1572 = vmatpush1.msra.mxu0 0.0
        %1573 = vmatprep.subr.mxu0 0.0
        %1574 = vmatpush1.msra.mxu0 0.0
        %1575 = vmatprep.subr.mxu0 0.0
        %1576 = vmatpush1.msra.mxu0 0.0
        %1577 = vmatprep.subr.mxu0 0.0
        %1578 = vmatpush1.msra.mxu0 0.0
        %1579 = vmatprep.subr.mxu0 0.0
        %1580 = vmatpush1.msra.mxu0 0.0
        %1581 = vmatprep.subr.mxu0 0.0
        %1582 = vmatpush1.msra.mxu0 0.0
        %1583 = vmatprep.subr.mxu0 0.0
        %1584 = vmatpush1.msra.mxu0 0.0
        %1585 = vmatprep.subr.mxu0 0.0
        %1586 = vmatpush1.msra.mxu0 0.0
        %1587 = vmatprep.subr.mxu0 0.0
        %1588 = vmatpush1.msra.mxu0 0.0
        %1589 = vmatprep.subr.mxu0 0.0
        %1590 = vmatpush1.msra.mxu0 0.0
        %1591 = vmatprep.subr.mxu0 0.0
        %1592 = vmatpush1.msra.mxu0 0.0
        %1593 = vmatprep.subr.mxu0 0.0
        %1594 = vmatpush1.msra.mxu0 0.0
        %1595 = vmatprep.subr.mxu0 0.0
        %1596 = vmatpush1.msra.mxu0 0.0
        %1597 = vmatprep.subr.mxu0 0.0
        %1598 = vmatpush1.msra.mxu0 0.0
        %1599 = vmatprep.mubr.f32.mxu0 0.0
        %1600 = vmatmul.mubr.f32.gmra.mrb[0].mxu0 %v1533
        %v1601 = vpop.f32.mrb[0].mxu0
        %v1602 = vadd.f32 0.0, %v1601
        %v1603 = vpop.f32.mrb[0].mxu0
        %1604 = vdwg.mxu0
        %1605 = vrot.lane.b32.xlu0 %v670, 48
        %v1606 = vpop.permute.xlu0 %1605
        %v1609 = vsel %vm682, %v1528, 0
        %1611 = vmatprep.subr.mxu0 0.0
        %1612 = vmatpush1.msra.mxu0 %v1606
        %1613 = vmatprep.subr.mxu0 0.0
        %1614 = vmatpush1.msra.mxu0 0.0
        %1615 = vmatprep.subr.mxu0 0.0
        %1616 = vmatpush1.msra.mxu0 0.0
        %1617 = vmatprep.subr.mxu0 0.0
        %1618 = vmatpush1.msra.mxu0 0.0
        %1619 = vmatprep.subr.mxu0 0.0
        %1620 = vmatpush1.msra.mxu0 0.0
        %1621 = vmatprep.subr.mxu0 0.0
        %1622 = vmatpush1.msra.mxu0 0.0
        %1623 = vmatprep.subr.mxu0 0.0
        %1624 = vmatpush1.msra.mxu0 0.0
        %1625 = vmatprep.subr.mxu0 0.0
        %1626 = vmatpush1.msra.mxu0 0.0
        %1627 = vmatprep.subr.mxu0 0.0
        %1628 = vmatpush1.msra.mxu0 0.0
        %1629 = vmatprep.subr.mxu0 0.0
        %1630 = vmatpush1.msra.mxu0 0.0
        %1631 = vmatprep.subr.mxu0 0.0
        %1632 = vmatpush1.msra.mxu0 0.0
        %1633 = vmatprep.subr.mxu0 0.0
        %1634 = vmatpush1.msra.mxu0 0.0
        %1635 = vmatprep.subr.mxu0 0.0
        %1636 = vmatpush1.msra.mxu0 0.0
        %1637 = vmatprep.subr.mxu0 0.0
        %1638 = vmatpush1.msra.mxu0 0.0
        %1639 = vmatprep.subr.mxu0 0.0
        %1640 = vmatpush1.msra.mxu0 0.0
        %1641 = vmatprep.subr.mxu0 0.0
        %1642 = vmatpush1.msra.mxu0 0.0
        %1643 = vmatprep.subr.mxu0 0.0
        %1644 = vmatpush1.msra.mxu0 0.0
        %1645 = vmatprep.subr.mxu0 0.0
        %1646 = vmatpush1.msra.mxu0 0.0
        %1647 = vmatprep.subr.mxu0 0.0
        %1648 = vmatpush1.msra.mxu0 0.0
        %1649 = vmatprep.subr.mxu0 0.0
        %1650 = vmatpush1.msra.mxu0 0.0
        %1651 = vmatprep.subr.mxu0 0.0
        %1652 = vmatpush1.msra.mxu0 0.0
        %1653 = vmatprep.subr.mxu0 0.0
        %1654 = vmatpush1.msra.mxu0 0.0
        %1655 = vmatprep.subr.mxu0 0.0
        %1656 = vmatpush1.msra.mxu0 0.0
        %1657 = vmatprep.subr.mxu0 0.0
        %1658 = vmatpush1.msra.mxu0 0.0
        %1659 = vmatprep.subr.mxu0 0.0
        %1660 = vmatpush1.msra.mxu0 0.0
        %1661 = vmatprep.subr.mxu0 0.0
        %1662 = vmatpush1.msra.mxu0 0.0
        %1663 = vmatprep.subr.mxu0 0.0
        %1664 = vmatpush1.msra.mxu0 0.0
        %1665 = vmatprep.subr.mxu0 0.0
        %1666 = vmatpush1.msra.mxu0 0.0
        %1667 = vmatprep.subr.mxu0 0.0
        %1668 = vmatpush1.msra.mxu0 0.0
        %1669 = vmatprep.subr.mxu0 0.0
        %1670 = vmatpush1.msra.mxu0 0.0
        %1671 = vmatprep.subr.mxu0 0.0
        %1672 = vmatpush1.msra.mxu0 0.0
        %1673 = vmatprep.subr.mxu0 0.0
        %1674 = vmatpush1.msra.mxu0 0.0
        %1675 = vmatprep.mubr.f32.mxu0 0.0
        %1676 = vmatmul.mubr.f32.gmra.mrb[0].mxu0 %v1609
        %v1677 = vpop.f32.mrb[0].mxu0
        %v1678 = vadd.f32 0.0, %v1677
        %v1679 = vpop.f32.mrb[0].mxu0
        %1680 = vdwg.mxu0
        %1683 = vrot.lane.b32.xlu0 %v1602, 16
        %v1684 = vpop.permute.xlu0 %1683
        %1685 = vrot.lane.b32.xlu0 %v1678, 16
        %v1686 = vpop.permute.xlu0 %1685
        %vm1689 = vcmask 195712
        %1690 = vst.msk [vmem:[#allocation2] sm:$0xff] %vm1689, %v1684
        %1691 = vst.msk [vmem:[#allocation2 + $0x8] sm:$0xff] %vm1689, %v1686
        %1692 = vrot.lane.b32.xlu0 %v665, 104
        %v1693 = vpop.permute.xlu0 %1692
        %1694 = vrot.lane.b32.xlu0 %v665, 72
        %v1695 = vpop.permute.xlu0 %1694
        %v1696 = vsel %vm682, %v1693, 0
        %v1698 = vsel %vm682, %v1695, 0
        %1700 = vmatprep.subr.mxu0 0.0
        %1701 = vmatpush1.xpose.msra.mxu0 %v1698
        %1702 = vmatprep.subr.mxu0 0.0
        %1703 = vmatpush1.xpose.msra.mxu0 0.0
        %1704 = vmatprep.subr.mxu0 0.0
        %1705 = vmatpush1.xpose.msra.mxu0 0.0
        %1706 = vmatprep.subr.mxu0 0.0
        %1707 = vmatpush1.xpose.msra.mxu0 0.0
        %1708 = vmatprep.subr.mxu0 0.0
        %1709 = vmatpush1.xpose.msra.mxu0 0.0
        %1710 = vmatprep.subr.mxu0 0.0
        %1711 = vmatpush1.xpose.msra.mxu0 0.0
        %1712 = vmatprep.subr.mxu0 0.0
        %1713 = vmatpush1.xpose.msra.mxu0 0.0
        %1714 = vmatprep.subr.mxu0 0.0
        %1715 = vmatpush1.xpose.msra.mxu0 0.0
        %1716 = vmatprep.subr.mxu0 0.0
        %1717 = vmatpush1.xpose.msra.mxu0 0.0
        %1718 = vmatprep.subr.mxu0 0.0
        %1719 = vmatpush1.xpose.msra.mxu0 0.0
        %1720 = vmatprep.subr.mxu0 0.0
        %1721 = vmatpush1.xpose.msra.mxu0 0.0
        %1722 = vmatprep.subr.mxu0 0.0
        %1723 = vmatpush1.xpose.msra.mxu0 0.0
        %1724 = vmatprep.subr.mxu0 0.0
        %1725 = vmatpush1.xpose.msra.mxu0 0.0
        %1726 = vmatprep.subr.mxu0 0.0
        %1727 = vmatpush1.xpose.msra.mxu0 0.0
        %1728 = vmatprep.subr.mxu0 0.0
        %1729 = vmatpush1.xpose.msra.mxu0 0.0
        %1730 = vmatprep.subr.mxu0 0.0
        %1731 = vmatpush1.xpose.msra.mxu0 0.0
        %1732 = vmatprep.subr.mxu0 0.0
        %1733 = vmatpush1.xpose.msra.mxu0 0.0
        %1734 = vmatprep.subr.mxu0 0.0
        %1735 = vmatpush1.xpose.msra.mxu0 0.0
        %1736 = vmatprep.subr.mxu0 0.0
        %1737 = vmatpush1.xpose.msra.mxu0 0.0
        %1738 = vmatprep.subr.mxu0 0.0
        %1739 = vmatpush1.xpose.msra.mxu0 0.0
        %1740 = vmatprep.subr.mxu0 0.0
        %1741 = vmatpush1.xpose.msra.mxu0 0.0
        %1742 = vmatprep.subr.mxu0 0.0
        %1743 = vmatpush1.xpose.msra.mxu0 0.0
        %1744 = vmatprep.subr.mxu0 0.0
        %1745 = vmatpush1.xpose.msra.mxu0 0.0
        %1746 = vmatprep.subr.mxu0 0.0
        %1747 = vmatpush1.xpose.msra.mxu0 0.0
        %1748 = vmatprep.subr.mxu0 0.0
        %1749 = vmatpush1.xpose.msra.mxu0 0.0
        %1750 = vmatprep.subr.mxu0 0.0
        %1751 = vmatpush1.xpose.msra.mxu0 0.0
        %1752 = vmatprep.subr.mxu0 0.0
        %1753 = vmatpush1.xpose.msra.mxu0 0.0
        %1754 = vmatprep.subr.mxu0 0.0
        %1755 = vmatpush1.xpose.msra.mxu0 0.0
        %1756 = vmatprep.subr.mxu0 0.0
        %1757 = vmatpush1.xpose.msra.mxu0 0.0
        %1758 = vmatprep.subr.mxu0 0.0
        %1759 = vmatpush1.xpose.msra.mxu0 0.0
        %1760 = vmatprep.subr.mxu0 0.0
        %1761 = vmatpush1.xpose.msra.mxu0 0.0
        %1762 = vmatprep.subr.mxu0 0.0
        %1763 = vmatpush1.xpose.msra.mxu0 0.0
        %1764 = vmatprep.mubr.f32.mxu0 0.0
        %1765 = vmatmul.mubr.f32.gmra.mrb[0].mxu0 %v1696
        %v1766 = vpop.f32.mrb[0].mxu0
        %v1767 = vadd.f32 %v678, %v1766
        %v1768 = vpop.f32.mrb[0].mxu0
        %1769 = vdwg.mxu0
        %1770 = vrot.lane.b32.xlu0 %v670, 104
        %v1771 = vpop.permute.xlu0 %1770
        %1772 = vrot.lane.b32.xlu0 %v670, 72
        %v1773 = vpop.permute.xlu0 %1772
        %v1774 = vsel %vm682, %v1771, 0
        %v1776 = vsel %vm682, %v1773, 0
        %1778 = vmatprep.subr.mxu0 0.0
        %1779 = vmatpush1.xpose.msra.mxu0 %v1776
        %1780 = vmatprep.subr.mxu0 0.0
        %1781 = vmatpush1.xpose.msra.mxu0 0.0
        %1782 = vmatprep.subr.mxu0 0.0
        %1783 = vmatpush1.xpose.msra.mxu0 0.0
        %1784 = vmatprep.subr.mxu0 0.0
        %1785 = vmatpush1.xpose.msra.mxu0 0.0
        %1786 = vmatprep.subr.mxu0 0.0
        %1787 = vmatpush1.xpose.msra.mxu0 0.0
        %1788 = vmatprep.subr.mxu0 0.0
        %1789 = vmatpush1.xpose.msra.mxu0 0.0
        %1790 = vmatprep.subr.mxu0 0.0
        %1791 = vmatpush1.xpose.msra.mxu0 0.0
        %1792 = vmatprep.subr.mxu0 0.0
        %1793 = vmatpush1.xpose.msra.mxu0 0.0
        %1794 = vmatprep.subr.mxu0 0.0
        %1795 = vmatpush1.xpose.msra.mxu0 0.0
        %1796 = vmatprep.subr.mxu0 0.0
        %1797 = vmatpush1.xpose.msra.mxu0 0.0
        %1798 = vmatprep.subr.mxu0 0.0
        %1799 = vmatpush1.xpose.msra.mxu0 0.0
        %1800 = vmatprep.subr.mxu0 0.0
        %1801 = vmatpush1.xpose.msra.mxu0 0.0
        %1802 = vmatprep.subr.mxu0 0.0
        %1803 = vmatpush1.xpose.msra.mxu0 0.0
        %1804 = vmatprep.subr.mxu0 0.0
        %1805 = vmatpush1.xpose.msra.mxu0 0.0
        %1806 = vmatprep.subr.mxu0 0.0
        %1807 = vmatpush1.xpose.msra.mxu0 0.0
        %1808 = vmatprep.subr.mxu0 0.0
        %1809 = vmatpush1.xpose.msra.mxu0 0.0
        %1810 = vmatprep.subr.mxu0 0.0
        %1811 = vmatpush1.xpose.msra.mxu0 0.0
        %1812 = vmatprep.subr.mxu0 0.0
        %1813 = vmatpush1.xpose.msra.mxu0 0.0
        %1814 = vmatprep.subr.mxu0 0.0
        %1815 = vmatpush1.xpose.msra.mxu0 0.0
        %1816 = vmatprep.subr.mxu0 0.0
        %1817 = vmatpush1.xpose.msra.mxu0 0.0
        %1818 = vmatprep.subr.mxu0 0.0
        %1819 = vmatpush1.xpose.msra.mxu0 0.0
        %1820 = vmatprep.subr.mxu0 0.0
        %1821 = vmatpush1.xpose.msra.mxu0 0.0
        %1822 = vmatprep.subr.mxu0 0.0
        %1823 = vmatpush1.xpose.msra.mxu0 0.0
        %1824 = vmatprep.subr.mxu0 0.0
        %1825 = vmatpush1.xpose.msra.mxu0 0.0
        %1826 = vmatprep.subr.mxu0 0.0
        %1827 = vmatpush1.xpose.msra.mxu0 0.0
        %1828 = vmatprep.subr.mxu0 0.0
        %1829 = vmatpush1.xpose.msra.mxu0 0.0
        %1830 = vmatprep.subr.mxu0 0.0
        %1831 = vmatpush1.xpose.msra.mxu0 0.0
        %1832 = vmatprep.subr.mxu0 0.0
        %1833 = vmatpush1.xpose.msra.mxu0 0.0
        %1834 = vmatprep.subr.mxu0 0.0
        %1835 = vmatpush1.xpose.msra.mxu0 0.0
        %1836 = vmatprep.subr.mxu0 0.0
        %1837 = vmatpush1.xpose.msra.mxu0 0.0
        %1838 = vmatprep.subr.mxu0 0.0
        %1839 = vmatpush1.xpose.msra.mxu0 0.0
        %1840 = vmatprep.subr.mxu0 0.0
        %1841 = vmatpush1.xpose.msra.mxu0 0.0
        %1842 = vmatprep.mubr.f32.mxu0 0.0
        %1843 = vmatmul.mubr.f32.gmra.mrb[0].mxu0 %v1774
        %v1844 = vpop.f32.mrb[0].mxu0
        %v1845 = vadd.f32 %v678, %v1844
        %v1846 = vpop.f32.mrb[0].mxu0
        %1847 = vdwg.mxu0
        %v1848 = vsel %vm682, %v1767, -inf
        %1849 = vmax.xlane.f32.xlu0 %v1848
        %v1850 = vpop.xlane.xlu0 %1849
        %v1851 = vsel %vm682, %v1845, -inf
        %1852 = vmax.xlane.f32.xlu0 %v1851
        %v1853 = vpop.xlane.xlu0 %1852
        %v1854 = vsub.f32 %v1767, %v1850
        %v1855 = vsub.f32 %v1845, %v1853
        %v1856 = vmul.f32 %v1854, 1.442695
        %v1857 = vpow.pop %v1856
        %v1858 = vmul.f32 %v1855, 1.442695
        %v1859 = vpow.pop %v1858
        %v1860 = vsel %vm682, %v1857, 0.0
        %1861 = vadd.xlane.f32.xlu0 %v1860
        %v1862 = vpop.xlane.xlu0 %1861
        %v1863 = vsel %vm682, %v1859, 0.0
        %1864 = vadd.xlane.f32.xlu0 %v1863
        %v1865 = vpop.xlane.xlu0 %1864
        %v1866 = vrcp.pop %v1862
        %v1867 = vrcp.pop %v1865
        %v1868 = vmul.f32 %v1857, %v1866
        %v1869 = vmul.f32 %v1859, %v1867
        %1870 = vrot.lane.b32.xlu0 %v665, 40
        %v1871 = vpop.permute.xlu0 %1870
        %v1874 = vsel %vm682, %v1868, 0
        %1876 = vmatprep.subr.mxu0 0.0
        %1877 = vmatpush1.msra.mxu0 %v1871
        %1878 = vmatprep.subr.mxu0 0.0
        %1879 = vmatpush1.msra.mxu0 0.0
        %1880 = vmatprep.subr.mxu0 0.0
        %1881 = vmatpush1.msra.mxu0 0.0
        %1882 = vmatprep.subr.mxu0 0.0
        %1883 = vmatpush1.msra.mxu0 0.0
        %1884 = vmatprep.subr.mxu0 0.0
        %1885 = vmatpush1.msra.mxu0 0.0
        %1886 = vmatprep.subr.mxu0 0.0
        %1887 = vmatpush1.msra.mxu0 0.0
        %1888 = vmatprep.subr.mxu0 0.0
        %1889 = vmatpush1.msra.mxu0 0.0
        %1890 = vmatprep.subr.mxu0 0.0
        %1891 = vmatpush1.msra.mxu0 0.0
        %1892 = vmatprep.subr.mxu0 0.0
        %1893 = vmatpush1.msra.mxu0 0.0
        %1894 = vmatprep.subr.mxu0 0.0
        %1895 = vmatpush1.msra.mxu0 0.0
        %1896 = vmatprep.subr.mxu0 0.0
        %1897 = vmatpush1.msra.mxu0 0.0
        %1898 = vmatprep.subr.mxu0 0.0
        %1899 = vmatpush1.msra.mxu0 0.0
        %1900 = vmatprep.subr.mxu0 0.0
        %1901 = vmatpush1.msra.mxu0 0.0
        %1902 = vmatprep.subr.mxu0 0.0
        %1903 = vmatpush1.msra.mxu0 0.0
        %1904 = vmatprep.subr.mxu0 0.0
        %1905 = vmatpush1.msra.mxu0 0.0
        %1906 = vmatprep.subr.mxu0 0.0
        %1907 = vmatpush1.msra.mxu0 0.0
        %1908 = vmatprep.subr.mxu0 0.0
        %1909 = vmatpush1.msra.mxu0 0.0
        %1910 = vmatprep.subr.mxu0 0.0
        %1911 = vmatpush1.msra.mxu0 0.0
        %1912 = vmatprep.subr.mxu0 0.0
        %1913 = vmatpush1.msra.mxu0 0.0
        %1914 = vmatprep.subr.mxu0 0.0
        %1915 = vmatpush1.msra.mxu0 0.0
        %1916 = vmatprep.subr.mxu0 0.0
        %1917 = vmatpush1.msra.mxu0 0.0
        %1918 = vmatprep.subr.mxu0 0.0
        %1919 = vmatpush1.msra.mxu0 0.0
        %1920 = vmatprep.subr.mxu0 0.0
        %1921 = vmatpush1.msra.mxu0 0.0
        %1922 = vmatprep.subr.mxu0 0.0
        %1923 = vmatpush1.msra.mxu0 0.0
        %1924 = vmatprep.subr.mxu0 0.0
        %1925 = vmatpush1.msra.mxu0 0.0
        %1926 = vmatprep.subr.mxu0 0.0
        %1927 = vmatpush1.msra.mxu0 0.0
        %1928 = vmatprep.subr.mxu0 0.0
        %1929 = vmatpush1.msra.mxu0 0.0
        %1930 = vmatprep.subr.mxu0 0.0
        %1931 = vmatpush1.msra.mxu0 0.0
        %1932 = vmatprep.subr.mxu0 0.0
        %1933 = vmatpush1.msra.mxu0 0.0
        %1934 = vmatprep.subr.mxu0 0.0
        %1935 = vmatpush1.msra.mxu0 0.0
        %1936 = vmatprep.subr.mxu0 0.0
        %1937 = vmatpush1.msra.mxu0 0.0
        %1938 = vmatprep.subr.mxu0 0.0
        %1939 = vmatpush1.msra.mxu0 0.0
        %1940 = vmatprep.mubr.f32.mxu0 0.0
        %1941 = vmatmul.mubr.f32.gmra.mrb[0].mxu0 %v1874
        %v1942 = vpop.f32.mrb[0].mxu0
        %v1943 = vadd.f32 0.0, %v1942
        %v1944 = vpop.f32.mrb[0].mxu0
        %1945 = vdwg.mxu0
        %1946 = vrot.lane.b32.xlu0 %v670, 40
        %v1947 = vpop.permute.xlu0 %1946
        %v1950 = vsel %vm682, %v1869, 0
        %1952 = vmatprep.subr.mxu0 0.0
        %1953 = vmatpush1.msra.mxu0 %v1947
        %1954 = vmatprep.subr.mxu0 0.0
        %1955 = vmatpush1.msra.mxu0 0.0
        %1956 = vmatprep.subr.mxu0 0.0
        %1957 = vmatpush1.msra.mxu0 0.0
        %1958 = vmatprep.subr.mxu0 0.0
        %1959 = vmatpush1.msra.mxu0 0.0
        %1960 = vmatprep.subr.mxu0 0.0
        %1961 = vmatpush1.msra.mxu0 0.0
        %1962 = vmatprep.subr.mxu0 0.0
        %1963 = vmatpush1.msra.mxu0 0.0
        %1964 = vmatprep.subr.mxu0 0.0
        %1965 = vmatpush1.msra.mxu0 0.0
        %1966 = vmatprep.subr.mxu0 0.0
        %1967 = vmatpush1.msra.mxu0 0.0
        %1968 = vmatprep.subr.mxu0 0.0
        %1969 = vmatpush1.msra.mxu0 0.0
        %1970 = vmatprep.subr.mxu0 0.0
        %1971 = vmatpush1.msra.mxu0 0.0
        %1972 = vmatprep.subr.mxu0 0.0
        %1973 = vmatpush1.msra.mxu0 0.0
        %1974 = vmatprep.subr.mxu0 0.0
        %1975 = vmatpush1.msra.mxu0 0.0
        %1976 = vmatprep.subr.mxu0 0.0
        %1977 = vmatpush1.msra.mxu0 0.0
        %1978 = vmatprep.subr.mxu0 0.0
        %1979 = vmatpush1.msra.mxu0 0.0
        %1980 = vmatprep.subr.mxu0 0.0
        %1981 = vmatpush1.msra.mxu0 0.0
        %1982 = vmatprep.subr.mxu0 0.0
        %1983 = vmatpush1.msra.mxu0 0.0
        %1984 = vmatprep.subr.mxu0 0.0
        %1985 = vmatpush1.msra.mxu0 0.0
        %1986 = vmatprep.subr.mxu0 0.0
        %1987 = vmatpush1.msra.mxu0 0.0
        %1988 = vmatprep.subr.mxu0 0.0
        %1989 = vmatpush1.msra.mxu0 0.0
        %1990 = vmatprep.subr.mxu0 0.0
        %1991 = vmatpush1.msra.mxu0 0.0
        %1992 = vmatprep.subr.mxu0 0.0
        %1993 = vmatpush1.msra.mxu0 0.0
        %1994 = vmatprep.subr.mxu0 0.0
        %1995 = vmatpush1.msra.mxu0 0.0
        %1996 = vmatprep.subr.mxu0 0.0
        %1997 = vmatpush1.msra.mxu0 0.0
        %1998 = vmatprep.subr.mxu0 0.0
        %1999 = vmatpush1.msra.mxu0 0.0
        %2000 = vmatprep.subr.mxu0 0.0
        %2001 = vmatpush1.msra.mxu0 0.0
        %2002 = vmatprep.subr.mxu0 0.0
        %2003 = vmatpush1.msra.mxu0 0.0
        %2004 = vmatprep.subr.mxu0 0.0
        %2005 = vmatpush1.msra.mxu0 0.0
        %2006 = vmatprep.subr.mxu0 0.0
        %2007 = vmatpush1.msra.mxu0 0.0
        %2008 = vmatprep.subr.mxu0 0.0
        %2009 = vmatpush1.msra.mxu0 0.0
        %2010 = vmatprep.subr.mxu0 0.0
        %2011 = vmatpush1.msra.mxu0 0.0
        %2012 = vmatprep.subr.mxu0 0.0
        %2013 = vmatpush1.msra.mxu0 0.0
        %2014 = vmatprep.subr.mxu0 0.0
        %2015 = vmatpush1.msra.mxu0 0.0
        %2016 = vmatprep.mubr.f32.mxu0 0.0
        %2017 = vmatmul.mubr.f32.gmra.mrb[0].mxu0 %v1950
        %v2018 = vpop.f32.mrb[0].mxu0
        %v2019 = vadd.f32 0.0, %v2018
        %v2020 = vpop.f32.mrb[0].mxu0
        %2021 = vdwg.mxu0
        %2024 = vrot.lane.b32.xlu0 %v1943, 24
        %v2025 = vpop.permute.xlu0 %2024
        %2026 = vrot.lane.b32.xlu0 %v2019, 24
        %v2027 = vpop.permute.xlu0 %2026
        %vm2030 = vcmask 261312
        %2031 = vst.msk [vmem:[#allocation2] sm:$0xff] %vm2030, %v2025
        %2032 = vst.msk [vmem:[#allocation2 + $0x8] sm:$0xff] %vm2030, %v2027
        %v2033 = vld [vmem:[#allocation2] sm:$0xff]
        %v2034 = vld [vmem:[#allocation2 + $0x8] sm:$0xff]
        %v2035 = vld [vmem:[#allocation11] sm:$0xff]
        %v2036 = vld [vmem:[#allocation11 + $0x8] sm:$0xff]
        %v2037 = vld [vmem:[#allocation11 + $0x10] sm:$0xff]
        %v2038 = vld [vmem:[#allocation11 + $0x18] sm:$0xff]
        %v2040 = vsel %vm544, %v2033, 0
        %v2043 = vsel %vm544, %v2034, 0
        %2045 = vmatprep.subr.mxu0 0.0
        %2046 = vmatpush1.msra.mxu0 %v2035
        %2047 = vmatprep.subr.mxu0 0.0
        %2048 = vmatpush1.msra.mxu0 %v2036
        %2049 = vmatprep.subr.mxu0 0.0
        %2050 = vmatpush1.msra.mxu0 %v2037
        %2051 = vmatprep.subr.mxu0 0.0
        %2052 = vmatpush1.msra.mxu0 %v2038
        %2053 = vmatprep.subr.mxu0 0.0
        %2054 = vmatpush1.msra.mxu0 0.0
        %2055 = vmatprep.subr.mxu0 0.0
        %2056 = vmatpush1.msra.mxu0 0.0
        %2057 = vmatprep.subr.mxu0 0.0
        %2058 = vmatpush1.msra.mxu0 0.0
        %2059 = vmatprep.subr.mxu0 0.0
        %2060 = vmatpush1.msra.mxu0 0.0
        %2061 = vmatprep.subr.mxu0 0.0
        %2062 = vmatpush1.msra.mxu0 0.0
        %2063 = vmatprep.subr.mxu0 0.0
        %2064 = vmatpush1.msra.mxu0 0.0
        %2065 = vmatprep.subr.mxu0 0.0
        %2066 = vmatpush1.msra.mxu0 0.0
        %2067 = vmatprep.subr.mxu0 0.0
        %2068 = vmatpush1.msra.mxu0 0.0
        %2069 = vmatprep.subr.mxu0 0.0
        %2070 = vmatpush1.msra.mxu0 0.0
        %2071 = vmatprep.subr.mxu0 0.0
        %2072 = vmatpush1.msra.mxu0 0.0
        %2073 = vmatprep.subr.mxu0 0.0
        %2074 = vmatpush1.msra.mxu0 0.0
        %2075 = vmatprep.subr.mxu0 0.0
        %2076 = vmatpush1.msra.mxu0 0.0
        %2077 = vmatprep.subr.mxu0 0.0
        %2078 = vmatpush1.msra.mxu0 0.0
        %2079 = vmatprep.subr.mxu0 0.0
        %2080 = vmatpush1.msra.mxu0 0.0
        %2081 = vmatprep.subr.mxu0 0.0
        %2082 = vmatpush1.msra.mxu0 0.0
        %2083 = vmatprep.subr.mxu0 0.0
        %2084 = vmatpush1.msra.mxu0 0.0
        %2085 = vmatprep.subr.mxu0 0.0
        %2086 = vmatpush1.msra.mxu0 0.0
        %2087 = vmatprep.subr.mxu0 0.0
        %2088 = vmatpush1.msra.mxu0 0.0
        %2089 = vmatprep.subr.mxu0 0.0
        %2090 = vmatpush1.msra.mxu0 0.0
        %2091 = vmatprep.subr.mxu0 0.0
        %2092 = vmatpush1.msra.mxu0 0.0
        %2093 = vmatprep.subr.mxu0 0.0
        %2094 = vmatpush1.msra.mxu0 0.0
        %2095 = vmatprep.subr.mxu0 0.0
        %2096 = vmatpush1.msra.mxu0 0.0
        %2097 = vmatprep.subr.mxu0 0.0
        %2098 = vmatpush1.msra.mxu0 0.0
        %2099 = vmatprep.subr.mxu0 0.0
        %2100 = vmatpush1.msra.mxu0 0.0
        %2101 = vmatprep.subr.mxu0 0.0
        %2102 = vmatpush1.msra.mxu0 0.0
        %2103 = vmatprep.subr.mxu0 0.0
        %2104 = vmatpush1.msra.mxu0 0.0
        %2105 = vmatprep.subr.mxu0 0.0
        %2106 = vmatpush1.msra.mxu0 0.0
        %2107 = vmatprep.subr.mxu0 0.0
        %2108 = vmatpush1.msra.mxu0 0.0
        %2109 = vmatprep.mubr.f32.mxu0 0.0
        %2110 = vmatmul.mubr.f32.gmra.mrb[0].mxu0 %v2040
        %v2111 = vpop.f32.mrb[0].mxu0
        %v2112 = vadd.f32 0.0, %v2111
        %v2113 = vpop.f32.mrb[0].mxu0
        %2114 = vmatprep.mubr.f32.mxu0 0.0
        %2115 = vmatmul.mubr.f32.gmra.mrb[0].mxu0 %v2043
        %v2116 = vpop.f32.mrb[0].mxu0
        %v2117 = vadd.f32 0.0, %v2116
        %v2118 = vpop.f32.mrb[0].mxu0
        %2119 = vdwg.mxu0
        %v2120 = vadd.f32 %v586, %v2112
        %v2121 = vadd.f32 %v587, %v2117
        %v2122 = vld [vmem:[#allocation12] sm:$0x1]
        %v2123 = vld [vmem:[#allocation14] sm:$0x1]
        %v2124 = vsel %vm544, %v2120, 0.0
        %2125 = vadd.xlane.f32.xlu0 %v2124
        %v2126 = vpop.xlane.xlu0 %2125
        %v2127 = vsel %vm544, %v2121, 0.0
        %2128 = vadd.xlane.f32.xlu0 %v2127
        %v2129 = vpop.xlane.xlu0 %2128
        %v2130 = vmul.f32 %v2126, %v551
        %v2131 = vmul.f32 %v2129, %v551
        %v2132 = vsub.f32 %v2120, %v2130
        %v2133 = vsub.f32 %v2121, %v2131
        %v2134 = vmul.f32 %v2132, %v2132
        %v2135 = vmul.f32 %v2133, %v2133
        %v2136 = vsel %vm544, %v2134, 0.0
        %2137 = vadd.xlane.f32.xlu0 %v2136
        %v2138 = vpop.xlane.xlu0 %2137
        %v2139 = vsel %vm544, %v2135, 0.0
        %2140 = vadd.xlane.f32.xlu0 %v2139
        %v2141 = vpop.xlane.xlu0 %2140
        %v2142 = vmul.f32 %v2138, %v551
        %v2143 = vmul.f32 %v2141, %v551
        %v2144 = vadd.f32 %v2142, 1e-05
        %v2145 = vadd.f32 %v2143, 1e-05
        %v2146 = vrsqrt.pop %v2144
        %v2147 = vrsqrt.pop %v2145
        %v2148 = vmul.f32 %v2132, %v2146
        %v2149 = vmul.f32 %v2133, %v2147
        %v2151 = vlaneseq
        %v2152 = vshrl.u32 %v2151, 7
        %v2153 = vsub.s32 0, %v2152
        %v2154 = vrot.slane %v2122, %v2153
        %v2156 = vmul.f32 %v2148, %v2154
        %v2157 = vmul.f32 %v2149, %v2154
        %v2159 = vlaneseq
        %v2160 = vshrl.u32 %v2159, 7
        %v2161 = vsub.s32 0, %v2160
        %v2162 = vrot.slane %v2123, %v2161
        %v2164 = vadd.f32 %v2156, %v2162
        %v2165 = vadd.f32 %v2157, %v2162
        %v2166 = vld [vmem:[#allocation15] sm:$0xff]
        %v2167 = vld [vmem:[#allocation15 + $0x8] sm:$0xff]
        %v2168 = vld [vmem:[#allocation15 + $0x10] sm:$0xff]
        %v2169 = vld [vmem:[#allocation15 + $0x18] sm:$0xff]
        %v2170 = vld [vmem:[#allocation17] sm:$0x1]
        %v2172 = vlaneseq
        %v2173 = vshrl.u32 %v2172, 7
        %v2174 = vsub.s32 0, %v2173
        %v2175 = vrot.slane %v2170, %v2174
        %v2178 = vsel %vm544, %v2164, 0
        %v2181 = vsel %vm544, %v2165, 0
        %2183 = vmatprep.subr.mxu0 0.0
        %2184 = vmatpush1.msra.mxu0 %v2166
        %2185 = vmatprep.subr.mxu0 0.0
        %2186 = vmatpush1.msra.mxu0 %v2167
        %2187 = vmatprep.subr.mxu0 0.0
        %2188 = vmatpush1.msra.mxu0 %v2168
        %2189 = vmatprep.subr.mxu0 0.0
        %2190 = vmatpush1.msra.mxu0 %v2169
        %2191 = vmatprep.subr.mxu0 0.0
        %2192 = vmatpush1.msra.mxu0 0.0
        %2193 = vmatprep.subr.mxu0 0.0
        %2194 = vmatpush1.msra.mxu0 0.0
        %2195 = vmatprep.subr.mxu0 0.0
        %2196 = vmatpush1.msra.mxu0 0.0
        %2197 = vmatprep.subr.mxu0 0.0
        %2198 = vmatpush1.msra.mxu0 0.0
        %2199 = vmatprep.subr.mxu0 0.0
        %2200 = vmatpush1.msra.mxu0 0.0
        %2201 = vmatprep.subr.mxu0 0.0
        %2202 = vmatpush1.msra.mxu0 0.0
        %2203 = vmatprep.subr.mxu0 0.0
        %2204 = vmatpush1.msra.mxu0 0.0
        %2205 = vmatprep.subr.mxu0 0.0
        %2206 = vmatpush1.msra.mxu0 0.0
        %2207 = vmatprep.subr.mxu0 0.0
        %2208 = vmatpush1.msra.mxu0 0.0
        %2209 = vmatprep.subr.mxu0 0.0
        %2210 = vmatpush1.msra.mxu0 0.0
        %2211 = vmatprep.subr.mxu0 0.0
        %2212 = vmatpush1.msra.mxu0 0.0
        %2213 = vmatprep.subr.mxu0 0.0
        %2214 = vmatpush1.msra.mxu0 0.0
        %2215 = vmatprep.subr.mxu0 0.0
        %2216 = vmatpush1.msra.mxu0 0.0
        %2217 = vmatprep.subr.mxu0 0.0
        %2218 = vmatpush1.msra.mxu0 0.0
        %2219 = vmatprep.subr.mxu0 0.0
        %2220 = vmatpush1.msra.mxu0 0.0
        %2221 = vmatprep.subr.mxu0 0.0
        %2222 = vmatpush1.msra.mxu0 0.0
        %2223 = vmatprep.subr.mxu0 0.0
        %2224 = vmatpush1.msra.mxu0 0.0
        %2225 = vmatprep.subr.mxu0 0.0
        %2226 = vmatpush1.msra.mxu0 0.0
        %2227 = vmatprep.subr.mxu0 0.0
        %2228 = vmatpush1.msra.mxu0 0.0
        %2229 = vmatprep.subr.mxu0 0.0
        %2230 = vmatpush1.msra.mxu0 0.0
        %2231 = vmatprep.subr.mxu0 0.0
        %2232 = vmatpush1.msra.mxu0 0.0
        %2233 = vmatprep.subr.mxu0 0.0
        %2234 = vmatpush1.msra.mxu0 0.0
        %2235 = vmatprep.subr.mxu0 0.0
        %2236 = vmatpush1.msra.mxu0 0.0
        %2237 = vmatprep.subr.mxu0 0.0
        %2238 = vmatpush1.msra.mxu0 0.0
        %2239 = vmatprep.subr.mxu0 0.0
        %2240 = vmatpush1.msra.mxu0 0.0
        %2241 = vmatprep.subr.mxu0 0.0
        %2242 = vmatpush1.msra.mxu0 0.0
        %2243 = vmatprep.subr.mxu0 0.0
        %2244 = vmatpush1.msra.mxu0 0.0
        %2245 = vmatprep.subr.mxu0 0.0
        %2246 = vmatpush1.msra.mxu0 0.0
        %2247 = vmatprep.mubr.f32.mxu0 0.0
        %2248 = vmatmul.mubr.f32.gmra.mrb[0].mxu0 %v2178
        %v2249 = vpop.f32.mrb[0].mxu0
        %v2250 = vadd.f32 %v2175, %v2249
        %v2251 = vpop.f32.mrb[0].mxu0
        %2252 = vmatprep.mubr.f32.mxu0 0.0
        %2253 = vmatmul.mubr.f32.gmra.mrb[0].mxu0 %v2181
        %v2254 = vpop.f32.mrb[0].mxu0
        %v2255 = vadd.f32 %v2175, %v2254
        %v2256 = vpop.f32.mrb[0].mxu0
        %2257 = vdwg.mxu0
        %v2258 = vmul.f32 %v2250, 0.5
        %v2259 = vmul.f32 %v2255, 0.5
        %v2260 = vmul.f32 %v2250, 0.044715
        %v2261 = vmul.f32 %v2255, 0.044715
        %v2262 = vmul.f32 %v2260, %v2250
        %v2263 = vmul.f32 %v2261, %v2255
        %v2264 = vmul.f32 %v2262, %v2250
        %v2265 = vmul.f32 %v2263, %v2255
        %v2266 = vadd.f32 %v2250, %v2264
        %v2267 = vadd.f32 %v2255, %v2265
        %v2268 = vmul.f32 %v2266, 0.7978846
        %v2269 = vmul.f32 %v2267, 0.7978846
        %v2270 = vtanh.pop %v2268
        %v2271 = vtanh.pop %v2269
        %v2272 = vadd.f32 %v2270, 1.0
        %v2273 = vadd.f32 %v2271, 1.0
        %v2274 = vmul.f32 %v2258, %v2272
        %v2275 = vmul.f32 %v2259, %v2273
        %v2276 = vld [vmem:[#allocation18] sm:$0xff]
        %v2277 = vld [vmem:[#allocation18 + $0x8] sm:$0xff]
        %v2278 = vld [vmem:[#allocation18 + $0x10] sm:$0xff]
        %v2279 = vld [vmem:[#allocation18 + $0x18] sm:$0xff]
        %v2280 = vld [vmem:[#allocation18 + $0x20] sm:$0xff]
        %v2281 = vld [vmem:[#allocation18 + $0x28] sm:$0xff]
        %v2282 = vld [vmem:[#allocation18 + $0x30] sm:$0xff]
        %v2283 = vld [vmem:[#allocation18 + $0x38] sm:$0xff]
        %v2284 = vld [vmem:[#allocation18 + $0x40] sm:$0xff]
        %v2285 = vld [vmem:[#allocation18 + $0x48] sm:$0xff]
        %v2286 = vld [vmem:[#allocation18 + $0x50] sm:$0xff]
        %v2287 = vld [vmem:[#allocation18 + $0x58] sm:$0xff]
        %v2288 = vld [vmem:[#allocation18 + $0x60] sm:$0xff]
        %v2289 = vld [vmem:[#allocation18 + $0x68] sm:$0xff]
        %v2290 = vld [vmem:[#allocation18 + $0x70] sm:$0xff]
        %v2291 = vld [vmem:[#allocation18 + $0x78] sm:$0xff]
        %v2292 = vld [vmem:[#allocation20] sm:$0x1]
        %v2294 = vlaneseq
        %v2295 = vshrl.u32 %v2294, 7
        %v2296 = vsub.s32 0, %v2295
        %v2297 = vrot.slane %v2292, %v2296
        %2299 = vmatprep.subr.mxu0 0.0
        %2300 = vmatpush1.msra.mxu0 %v2276
        %2301 = vmatprep.subr.mxu0 0.0
        %2302 = vmatpush1.msra.mxu0 %v2277
        %2303 = vmatprep.subr.mxu0 0.0
        %2304 = vmatpush1.msra.mxu0 %v2278
        %2305 = vmatprep.subr.mxu0 0.0
        %2306 = vmatpush1.msra.mxu0 %v2279
        %2307 = vmatprep.subr.mxu0 0.0
        %2308 = vmatpush1.msra.mxu0 %v2280
        %2309 = vmatprep.subr.mxu0 0.0
        %2310 = vmatpush1.msra.mxu0 %v2281
        %2311 = vmatprep.subr.mxu0 0.0
        %2312 = vmatpush1.msra.mxu0 %v2282
        %2313 = vmatprep.subr.mxu0 0.0
        %2314 = vmatpush1.msra.mxu0 %v2283
        %2315 = vmatprep.subr.mxu0 0.0
        %2316 = vmatpush1.msra.mxu0 %v2284
        %2317 = vmatprep.subr.mxu0 0.0
        %2318 = vmatpush1.msra.mxu0 %v2285
        %2319 = vmatprep.subr.mxu0 0.0
        %2320 = vmatpush1.msra.mxu0 %v2286
        %2321 = vmatprep.subr.mxu0 0.0
        %2322 = vmatpush1.msra.mxu0 %v2287
        %2323 = vmatprep.subr.mxu0 0.0
        %2324 = vmatpush1.msra.mxu0 %v2288
        %2325 = vmatprep.subr.mxu0 0.0
        %2326 = vmatpush1.msra.mxu0 %v2289
        %2327 = vmatprep.subr.mxu0 0.0
        %2328 = vmatpush1.msra.mxu0 %v2290
        %2329 = vmatprep.subr.mxu0 0.0
        %2330 = vmatpush1.msra.mxu0 %v2291
        %2331 = vmatprep.subr.mxu0 0.0
        %2332 = vmatpush1.msra.mxu0 0.0
        %2333 = vmatprep.subr.mxu0 0.0
        %2334 = vmatpush1.msra.mxu0 0.0
        %2335 = vmatprep.subr.mxu0 0.0
        %2336 = vmatpush1.msra.mxu0 0.0
        %2337 = vmatprep.subr.mxu0 0.0
        %2338 = vmatpush1.msra.mxu0 0.0
        %2339 = vmatprep.subr.mxu0 0.0
        %2340 = vmatpush1.msra.mxu0 0.0
        %2341 = vmatprep.subr.mxu0 0.0
        %2342 = vmatpush1.msra.mxu0 0.0
        %2343 = vmatprep.subr.mxu0 0.0
        %2344 = vmatpush1.msra.mxu0 0.0
        %2345 = vmatprep.subr.mxu0 0.0
        %2346 = vmatpush1.msra.mxu0 0.0
        %2347 = vmatprep.subr.mxu0 0.0
        %2348 = vmatpush1.msra.mxu0 0.0
        %2349 = vmatprep.subr.mxu0 0.0
        %2350 = vmatpush1.msra.mxu0 0.0
        %2351 = vmatprep.subr.mxu0 0.0
        %2352 = vmatpush1.msra.mxu0 0.0
        %2353 = vmatprep.subr.mxu0 0.0
        %2354 = vmatpush1.msra.mxu0 0.0
        %2355 = vmatprep.subr.mxu0 0.0
        %2356 = vmatpush1.msra.mxu0 0.0
        %2357 = vmatprep.subr.mxu0 0.0
        %2358 = vmatpush1.msra.mxu0 0.0
        %2359 = vmatprep.subr.mxu0 0.0
        %2360 = vmatpush1.msra.mxu0 0.0
        %2361 = vmatprep.subr.mxu0 0.0
        %2362 = vmatpush1.msra.mxu0 0.0
        %2363 = vmatprep.mubr.f32.mxu0 0.0
        %2364 = vmatmul.mubr.f32.gmra.mrb[0].mxu0 %v2274
        %v2365 = vpop.f32.mrb[0].mxu0
        %v2366 = vadd.f32 %v2297, %v2365
        %v2367 = vpop.f32.mrb[0].mxu0
        %2368 = vmatprep.mubr.f32.mxu0 0.0
        %2369 = vmatmul.mubr.f32.gmra.mrb[0].mxu0 %v2275
        %v2370 = vpop.f32.mrb[0].mxu0
        %v2371 = vadd.f32 %v2297, %v2370
        %v2372 = vpop.f32.mrb[0].mxu0
        %2373 = vdwg.mxu0
        %v2374 = vadd.f32 %v2164, %v2366
        %v2375 = vadd.f32 %v2165, %v2371
        %2376 = vst.msk [vmem:[%s537] sm:$0xff] %vm544, %v2374
        %2377 = vst.msk [vmem:[%s537 + $0x8] sm:$0xff] %vm544, %v2375
        %s2378 = sand.u32 %s277, 1
        %s2379 = scalar_lea.sflag [#allocation5], %s2378
        %s2380 = sand.u32 %s277, 1
        %s2381 = smul.addr %s2380, 16
        %s2382 = scalar_lea.vmem [#allocation21], %s2381
        // Predicated region
        $region109: #{tpu_custom_call.1} parent=63 // pred_check
          %p2383 = pneg %p287
        $region110: #{tpu_custom_call.1} parent=63 // pred_check_branch
          %2385 = sbr.rel (%p2383) target = $region112
        $region111: #{tpu_custom_call.1} parent=63 // pred_region
          %s2386 = smul.u32 2, %s33
          %s2388 = ssub.s32 256, 256
          %2389 = vsyncadd %s2379, %s2388
          %s2390 = smul.addr %s2386, 128
          %s2391 = scalar_lea.hbm %s11, %s2390
          %s2392 = sshll.u32 %s2382, 4
          %s2393 = int_to_ptr.vmem [resolvable:$true] %s2392
          %2398 = dma.vmem_to_hbm [thread:$0]  %s2393, 256, %s2391, %s2379, 128, 128, 8
        $region112: #{tpu_custom_call.1} parent=63 // pred_fallthru
          _
      $region64: #{tpu_custom_call.1} parent=5 // pred_fallthru
        _
      %p2399 = scmp.le.s32.totalorder 2, %s28
      // Predicated region
      $region113: #{tpu_custom_call.1} parent=5 // pred_check
        %p2400 = pneg %p2399
      $region114: #{tpu_custom_call.1} parent=5 // pred_check_branch
        %2402 = sbr.rel (%p2400) target = $region116
      $region115: #{tpu_custom_call.1} parent=5 // pred_region
        %s2403 = ssub.s32 %s28, 2
        // Predicated region
        $region117: #{tpu_custom_call.1} parent=115 // pred_check
          %p2404 = pneg %p293
        $region118: #{tpu_custom_call.1} parent=115 // pred_check_branch
          %2406 = sbr.rel (%p2404) target = $region120
        $region119: #{tpu_custom_call.1} parent=115 // pred_region
          %s2407 = sand.u32 %s278, 1
          %s2408 = scalar_lea.sflag [#allocation5], %s2407
          %s2409 = sand.u32 %s278, 1
          %s2410 = smul.addr %s2409, 16
          %s2411 = scalar_lea.vmem [#allocation21], %s2410
          %2412 = dma.done %s2408, 256
        $region120: #{tpu_custom_call.1} parent=115 // pred_fallthru
          _
      $region116: #{tpu_custom_call.1} parent=5 // pred_fallthru
        _
    $region6: #{tpu_custom_call.1} parent=1 // loop_footer
      %s32 = sadd.s32 1, %s28
    $region7: #{tpu_custom_call.1} parent=1 // loop_footer_branch
      %27 = sbr.rel target = $region3
    $region8: #{tpu_custom_call.1} parent=1 // loop_exit
      _
    %2413 = vsyncpa [#allocation4], 1
    %s2414 = scalar_lea.sflag [#allocation4], 1
    %2415 = vsyncpa %s2414, 1
    %2416 = vsyncpa [#allocation7], 1
    %2417 = vsyncpa [#allocation10], 1
    %2418 = vsyncpa [#allocation13], 1
    %2419 = vsyncpa [#allocation16], 1
    %2420 = vsyncpa [#allocation19], 1
    %2421 = vsyncpa [#allocation5], 1
    %s2422 = scalar_lea.sflag [#allocation5], 1
    %2423 = vsyncpa %s2422, 1

</llo_original>
